<compile_context>
chip_gen: v6e
topology: v6e:2x2x1
jax: 0.10.0
libtpu: 0.0.40
codegen_flags: <defaults>
</compile_context>

<pallas_src>
import functools

import jax
import jax.numpy as jnp
from jax.experimental import pallas as pl
from jax.experimental.pallas import tpu as pltpu

HALO = 8  # halo block height (sublane-aligned); only its first 2 rows are used


def _shortcut_kernel(xm_ref, xh_ref, w_ref, b_ref, o_ref, slab_ref, *, th, wd, ch):
    """One (image, row-block) step: o = x + relu(conv3x3(x) + b)."""
    # Assemble the (TH+2, W+2, C) halo slab: TH padded rows from the main block
    # plus the first 2 rows of the 8-row halo block that follows it.
    slab_ref[0:th] = xm_ref[0]
    slab_ref[th:th + 2] = xh_ref[0, 0:2]

    # 3x3 conv as nine shifted (TH*W, C) @ (C, C) matmuls, f32 accumulation.
    acc = jnp.zeros((th * wd, ch), jnp.float32)
    for kh in range(3):
        for kw in range(3):
            tap = slab_ref[kh:kh + th, kw:kw + wd, :].reshape(th * wd, ch)
            acc = acc + jnp.dot(tap, w_ref[kh, kw],
                                preferred_element_type=jnp.float32)

    y = jnp.maximum(acc + b_ref[...].astype(jnp.float32), 0.0)     # bias + ReLU
    res = slab_ref[1:th + 1, 1:wd + 1, :].reshape(th * wd, ch)      # shortcut x
    out = res.astype(jnp.float32) + y
    o_ref[0] = out.reshape(th, wd, ch).astype(o_ref.dtype)


@jax.jit
def shortcut_block(x_nchw, w_hwio, bias):
    """out = x + relu(conv3x3_same(x, w) + b); NCHW in / NCHW out."""
    n, ch, h, wd = x_nchw.shape
    assert w_hwio.shape == (3, 3, ch, ch)
    dt = x_nchw.dtype
    esize = jnp.dtype(dt).itemsize

    # ---- VMEM-aware row-tile selection (multiple of 8) ----------------------
    try:
        vmem_cap = int(pltpu.get_tpu_info().vmem_capacity_bytes)
    except Exception:
        vmem_cap = 64 * 1024 * 1024          # conservative (v7x-sized) fallback
    budget = vmem_cap // 3                   # headroom for double buffers etc.
    # Conservative per-tile-row byte count: double-buffered in/out blocks,
    # slab scratch, f32 accumulator + matmul temps.
    per_row = (2 * (wd + 2) * ch * esize
               + 2 * wd * ch * esize
               + (wd + 2) * ch * esize
               + 3 * wd * ch * 4)
    th = (budget // max(per_row, 1)) // 8 * 8
    th = int(max(8, min(th, pl.cdiv(h, 8) * 8, 2048)))

    n_hb = pl.cdiv(h, th)                    # row blocks per image
    hp_out = n_hb * th                       # padded output height
    hp_in = (n_hb + 1) * th                  # padded input height (room for halo reads)

    # ---- glue: NCHW -> NHWC + zero pad (fused copies under jit) -------------
    x = jnp.transpose(x_nchw, (0, 2, 3, 1))                      # (N, H, W, C)
    xpad = jnp.pad(x, ((0, 0), (1, hp_in - h - 1), (1, 1), (0, 0)))
    b2 = bias.reshape(1, ch)

    kernel = functools.partial(_shortcut_kernel, th=th, wd=wd, ch=ch)

    flops = 2 * n * h * wd * 9 * ch * ch
    bytes_accessed = (xpad.size + n * hp_out * wd * ch + w_hwio.size + b2.size) * esize

    out_nhwc = pl.pallas_call(
        kernel,
        out_shape=jax.ShapeDtypeStruct((n, hp_out, wd, ch), dt),
        grid=(n, n_hb),
        in_specs=[
            # main TH-row block of the padded input
            pl.BlockSpec((1, th, wd + 2, ch), lambda b, i: (b, i, 0, 0)),
            # 8-row halo block immediately below the main block
            pl.BlockSpec((1, HALO, wd + 2, ch),
                         lambda b, i: (b, (i + 1) * (th // HALO), 0, 0)),
            # conv weight (3, 3, Cin, Cout): constant index map -> resident
            pl.BlockSpec((3, 3, ch, ch), lambda b, i: (0, 0, 0, 0)),
            # bias
            pl.BlockSpec((1, ch), lambda b, i: (0, 0)),
        ],
        out_specs=pl.BlockSpec((1, th, wd, ch), lambda b, i: (b, i, 0, 0)),
        scratch_shapes=[pltpu.VMEM((th + 2, wd + 2, ch), dt)],
        compiler_params=pltpu.CompilerParams(
            dimension_semantics=("parallel", "parallel"),
            vmem_limit_bytes=int(vmem_cap * 0.7),
        ),
        cost_estimate=pl.CostEstimate(
            flops=int(flops), transcendentals=0,
            bytes_accessed=int(bytes_accessed)),
    )(xpad, xpad, w_hwio, b2)

    out = out_nhwc[:, :h] if hp_out != h else out_nhwc
    return jnp.transpose(out, (0, 3, 1, 2))                      # back to NCHW


def reference_forward(x_nchw, w_hwio, bias):
    """Pure-JAX reference: x + relu(conv3x3(x) + b) in NCHW."""
    w_oihw = jnp.transpose(w_hwio, (3, 2, 0, 1))                 # (Cout, Cin, 3, 3)
    y = jax.lax.conv_general_dilated(
        x_nchw, w_oihw, window_strides=(1, 1), padding="SAME",
        dimension_numbers=("NCHW", "OIHW", "NCHW"))
    y = y + bias.reshape(1, -1, 1, 1)
    y = jnp.maximum(y, 0.0)
    return x_nchw + y


if __name__ == "__main__":
    N, C, H, W = 2, 4, 16, 16

    key = jax.random.PRNGKey(0)
    kx, kw, kb = jax.random.split(key, 3)
    x = jax.random.normal(kx, (N, C, H, W), dtype=jnp.float32)
    w = jax.random.normal(kw, (3, 3, C, C), dtype=jnp.float32) * 0.1   # HWIO
    b = jax.random.normal(kb, (C,), dtype=jnp.float32) * 0.1

    out = jax.block_until_ready(shortcut_block(x, w, b))
    ref = jax.block_until_ready(reference_forward(x, w, b))

    assert out.shape == (N, C, H, W)
    assert jnp.allclose(out, ref, rtol=1e-4, atol=1e-4), "mismatch vs reference"

    print("KERNEL_OK")
</pallas_src>

<mosaic_0001>
module attributes {stable_mosaic.version = 11 : i64} {
  func.func @_shortcut_kernel(%arg0: i32, %arg1: i32, %arg2: memref<1x16x18x4xf32, #tpu.memory_space<vmem>>, %arg3: memref<1x8x18x4xf32, #tpu.memory_space<vmem>>, %arg4: memref<3x3x4x4xf32, #tpu.memory_space<vmem>>, %arg5: memref<1x4xf32, #tpu.memory_space<vmem>>, %arg6: memref<1x16x16x4xf32, #tpu.memory_space<vmem>>, %arg7: memref<18x18x4xf32, #tpu.memory_space<vmem>>) attributes {dimension_semantics = [#tpu.dimension_semantics<parallel>, #tpu.dimension_semantics<parallel>], iteration_bounds = array<i64: 2, 1>, scalar_prefetch = 0 : i64, scratch_operands = 1 : i64, tpu.core_type = #tpu.core_type<tc>, window_params = [{transform_indices = @transform_0, window_bounds = array<i64: 1, 16, 18, 4>}, {transform_indices = @transform_1, window_bounds = array<i64: 1, 8, 18, 4>}, {pipeline_mode = #tpu.pipeline_mode<synchronous>, transform_indices = @transform_2, window_bounds = array<i64: 3, 3, 4, 4>}, {pipeline_mode = #tpu.pipeline_mode<synchronous>, transform_indices = @transform_3, window_bounds = array<i64: 1, 4>}, {transform_indices = @transform_4, window_bounds = array<i64: 1, 16, 16, 4>}]} {
    %c0 = arith.constant 0 : index
    %c0_0 = arith.constant 0 : index
    %c0_1 = arith.constant 0 : index
    %c0_2 = arith.constant 0 : index
    %0 = vector.load %arg2[%c0, %c0_0, %c0_1, %c0_2] : memref<1x16x18x4xf32, #tpu.memory_space<vmem>>, vector<1x16x18x4xf32>
    %1 = vector.shape_cast %0 : vector<1x16x18x4xf32> to vector<16x18x4xf32>
    %c0_3 = arith.constant 0 : index
    %c0_4 = arith.constant 0 : index
    %c0_5 = arith.constant 0 : index
    %2 = vector.load %arg7[%c0_3, %c0_4, %c0_5] : memref<18x18x4xf32, #tpu.memory_space<vmem>>, vector<16x18x4xf32>
    tpu.vector_store %arg7[%c0_3, %c0_4, %c0_5], %1 {strides = array<i32>} : memref<18x18x4xf32, #tpu.memory_space<vmem>>, vector<16x18x4xf32>,
    %c0_6 = arith.constant 0 : index
    %c0_7 = arith.constant 0 : index
    %c0_8 = arith.constant 0 : index
    %c0_9 = arith.constant 0 : index
    %3 = vector.load %arg3[%c0_6, %c0_7, %c0_8, %c0_9] : memref<1x8x18x4xf32, #tpu.memory_space<vmem>>, vector<1x2x18x4xf32>
    %4 = vector.shape_cast %3 : vector<1x2x18x4xf32> to vector<2x18x4xf32>
    %c16 = arith.constant 16 : index
    %c0_10 = arith.constant 0 : index
    %c0_11 = arith.constant 0 : index
    %5 = vector.load %arg7[%c16, %c0_10, %c0_11] : memref<18x18x4xf32, #tpu.memory_space<vmem>>, vector<2x18x4xf32>
    tpu.vector_store %arg7[%c16, %c0_10, %c0_11], %4 {strides = array<i32>} : memref<18x18x4xf32, #tpu.memory_space<vmem>>, vector<2x18x4xf32>,
    %cst = arith.constant 0.000000e+00 : f32
    %6 = vector.broadcast %cst : f32 to vector<256x4xf32>
    %c0_12 = arith.constant 0 : index
    %c0_13 = arith.constant 0 : index
    %c0_14 = arith.constant 0 : index
    %7 = vector.load %arg7[%c0_12, %c0_13, %c0_14] : memref<18x18x4xf32, #tpu.memory_space<vmem>>, vector<16x16x4xf32>
    %8 = vector.shape_cast %7 : vector<16x16x4xf32> to vector<256x4xf32>
    %c0_15 = arith.constant 0 : index
    %c0_16 = arith.constant 0 : index
    %c0_17 = arith.constant 0 : index
    %c0_18 = arith.constant 0 : index
    %9 = vector.load %arg4[%c0_15, %c0_16, %c0_17, %c0_18] : memref<3x3x4x4xf32, #tpu.memory_space<vmem>>, vector<1x1x4x4xf32>
    %10 = vector.shape_cast %9 : vector<1x1x4x4xf32> to vector<4x4xf32>
    %cst_19 = arith.constant dense<0.000000e+00> : vector<256x4xf32>
    %11 = tpu.matmul %8, %10, %cst_19 {dimension_numbers = #tpu.dot_dimension_numbers<[1], [0], [0], [1], [0, 0, 1, 1], [], []>} : vector<256x4xf32>, vector<4x4xf32>, vector<256x4xf32> -> vector<256x4xf32>
    %12 = arith.addf %6, %11 : vector<256x4xf32>
    %c0_20 = arith.constant 0 : index
    %c1 = arith.constant 1 : index
    %c0_21 = arith.constant 0 : index
    %13 = vector.load %arg7[%c0_20, %c1, %c0_21] : memref<18x18x4xf32, #tpu.memory_space<vmem>>, vector<16x16x4xf32>
    %14 = vector.shape_cast %13 : vector<16x16x4xf32> to vector<256x4xf32>
    %c0_22 = arith.constant 0 : index
    %c1_23 = arith.constant 1 : index
    %c0_24 = arith.constant 0 : index
    %c0_25 = arith.constant 0 : index
    %15 = vector.load %arg4[%c0_22, %c1_23, %c0_24, %c0_25] : memref<3x3x4x4xf32, #tpu.memory_space<vmem>>, vector<1x1x4x4xf32>
    %16 = vector.shape_cast %15 : vector<1x1x4x4xf32> to vector<4x4xf32>
    %cst_26 = arith.constant dense<0.000000e+00> : vector<256x4xf32>
    %17 = tpu.matmul %14, %16, %cst_26 {dimension_numbers = #tpu.dot_dimension_numbers<[1], [0], [0], [1], [0, 0, 1, 1], [], []>} : vector<256x4xf32>, vector<4x4xf32>, vector<256x4xf32> -> vector<256x4xf32>
    %18 = arith.addf %12, %17 : vector<256x4xf32>
    %c0_27 = arith.constant 0 : index
    %c2 = arith.constant 2 : index
    %c0_28 = arith.constant 0 : index
    %19 = vector.load %arg7[%c0_27, %c2, %c0_28] : memref<18x18x4xf32, #tpu.memory_space<vmem>>, vector<16x16x4xf32>
    %20 = vector.shape_cast %19 : vector<16x16x4xf32> to vector<256x4xf32>
    %c0_29 = arith.constant 0 : index
    %c2_30 = arith.constant 2 : index
    %c0_31 = arith.constant 0 : index
    %c0_32 = arith.constant 0 : index
    %21 = vector.load %arg4[%c0_29, %c2_30, %c0_31, %c0_32] : memref<3x3x4x4xf32, #tpu.memory_space<vmem>>, vector<1x1x4x4xf32>
    %22 = vector.shape_cast %21 : vector<1x1x4x4xf32> to vector<4x4xf32>
    %cst_33 = arith.constant dense<0.000000e+00> : vector<256x4xf32>
    %23 = tpu.matmul %20, %22, %cst_33 {dimension_numbers = #tpu.dot_dimension_numbers<[1], [0], [0], [1], [0, 0, 1, 1], [], []>} : vector<256x4xf32>, vector<4x4xf32>, vector<256x4xf32> -> vector<256x4xf32>
    %24 = arith.addf %18, %23 : vector<256x4xf32>
    %c1_34 = arith.constant 1 : index
    %c0_35 = arith.constant 0 : index
    %c0_36 = arith.constant 0 : index
    %25 = vector.load %arg7[%c1_34, %c0_35, %c0_36] : memref<18x18x4xf32, #tpu.memory_space<vmem>>, vector<16x16x4xf32>
    %26 = vector.shape_cast %25 : vector<16x16x4xf32> to vector<256x4xf32>
    %c1_37 = arith.constant 1 : index
    %c0_38 = arith.constant 0 : index
    %c0_39 = arith.constant 0 : index
    %c0_40 = arith.constant 0 : index
    %27 = vector.load %arg4[%c1_37, %c0_38, %c0_39, %c0_40] : memref<3x3x4x4xf32, #tpu.memory_space<vmem>>, vector<1x1x4x4xf32>
    %28 = vector.shape_cast %27 : vector<1x1x4x4xf32> to vector<4x4xf32>
    %cst_41 = arith.constant dense<0.000000e+00> : vector<256x4xf32>
    %29 = tpu.matmul %26, %28, %cst_41 {dimension_numbers = #tpu.dot_dimension_numbers<[1], [0], [0], [1], [0, 0, 1, 1], [], []>} : vector<256x4xf32>, vector<4x4xf32>, vector<256x4xf32> -> vector<256x4xf32>
    %30 = arith.addf %24, %29 : vector<256x4xf32>
    %c1_42 = arith.constant 1 : index
    %c1_43 = arith.constant 1 : index
    %c0_44 = arith.constant 0 : index
    %31 = vector.load %arg7[%c1_42, %c1_43, %c0_44] : memref<18x18x4xf32, #tpu.memory_space<vmem>>, vector<16x16x4xf32>
    %32 = vector.shape_cast %31 : vector<16x16x4xf32> to vector<256x4xf32>
    %c1_45 = arith.constant 1 : index
    %c1_46 = arith.constant 1 : index
    %c0_47 = arith.constant 0 : index
    %c0_48 = arith.constant 0 : index
    %33 = vector.load %arg4[%c1_45, %c1_46, %c0_47, %c0_48] : memref<3x3x4x4xf32, #tpu.memory_space<vmem>>, vector<1x1x4x4xf32>
    %34 = vector.shape_cast %33 : vector<1x1x4x4xf32> to vector<4x4xf32>
    %cst_49 = arith.constant dense<0.000000e+00> : vector<256x4xf32>
    %35 = tpu.matmul %32, %34, %cst_49 {dimension_numbers = #tpu.dot_dimension_numbers<[1], [0], [0], [1], [0, 0, 1, 1], [], []>} : vector<256x4xf32>, vector<4x4xf32>, vector<256x4xf32> -> vector<256x4xf32>
    %36 = arith.addf %30, %35 : vector<256x4xf32>
    %c1_50 = arith.constant 1 : index
    %c2_51 = arith.constant 2 : index
    %c0_52 = arith.constant 0 : index
    %37 = vector.load %arg7[%c1_50, %c2_51, %c0_52] : memref<18x18x4xf32, #tpu.memory_space<vmem>>, vector<16x16x4xf32>
    %38 = vector.shape_cast %37 : vector<16x16x4xf32> to vector<256x4xf32>
    %c1_53 = arith.constant 1 : index
    %c2_54 = arith.constant 2 : index
    %c0_55 = arith.constant 0 : index
    %c0_56 = arith.constant 0 : index
    %39 = vector.load %arg4[%c1_53, %c2_54, %c0_55, %c0_56] : memref<3x3x4x4xf32, #tpu.memory_space<vmem>>, vector<1x1x4x4xf32>
    %40 = vector.shape_cast %39 : vector<1x1x4x4xf32> to vector<4x4xf32>
    %cst_57 = arith.constant dense<0.000000e+00> : vector<256x4xf32>
    %41 = tpu.matmul %38, %40, %cst_57 {dimension_numbers = #tpu.dot_dimension_numbers<[1], [0], [0], [1], [0, 0, 1, 1], [], []>} : vector<256x4xf32>, vector<4x4xf32>, vector<256x4xf32> -> vector<256x4xf32>
    %42 = arith.addf %36, %41 : vector<256x4xf32>
    %c2_58 = arith.constant 2 : index
    %c0_59 = arith.constant 0 : index
    %c0_60 = arith.constant 0 : index
    %43 = vector.load %arg7[%c2_58, %c0_59, %c0_60] : memref<18x18x4xf32, #tpu.memory_space<vmem>>, vector<16x16x4xf32>
    %44 = vector.shape_cast %43 : vector<16x16x4xf32> to vector<256x4xf32>
    %c2_61 = arith.constant 2 : index
    %c0_62 = arith.constant 0 : index
    %c0_63 = arith.constant 0 : index
    %c0_64 = arith.constant 0 : index
    %45 = vector.load %arg4[%c2_61, %c0_62, %c0_63, %c0_64] : memref<3x3x4x4xf32, #tpu.memory_space<vmem>>, vector<1x1x4x4xf32>
    %46 = vector.shape_cast %45 : vector<1x1x4x4xf32> to vector<4x4xf32>
    %cst_65 = arith.constant dense<0.000000e+00> : vector<256x4xf32>
    %47 = tpu.matmul %44, %46, %cst_65 {dimension_numbers = #tpu.dot_dimension_numbers<[1], [0], [0], [1], [0, 0, 1, 1], [], []>} : vector<256x4xf32>, vector<4x4xf32>, vector<256x4xf32> -> vector<256x4xf32>
    %48 = arith.addf %42, %47 : vector<256x4xf32>
    %c2_66 = arith.constant 2 : index
    %c1_67 = arith.constant 1 : index
    %c0_68 = arith.constant 0 : index
    %49 = vector.load %arg7[%c2_66, %c1_67, %c0_68] : memref<18x18x4xf32, #tpu.memory_space<vmem>>, vector<16x16x4xf32>
    %50 = vector.shape_cast %49 : vector<16x16x4xf32> to vector<256x4xf32>
    %c2_69 = arith.constant 2 : index
    %c1_70 = arith.constant 1 : index
    %c0_71 = arith.constant 0 : index
    %c0_72 = arith.constant 0 : index
    %51 = vector.load %arg4[%c2_69, %c1_70, %c0_71, %c0_72] : memref<3x3x4x4xf32, #tpu.memory_space<vmem>>, vector<1x1x4x4xf32>
    %52 = vector.shape_cast %51 : vector<1x1x4x4xf32> to vector<4x4xf32>
    %cst_73 = arith.constant dense<0.000000e+00> : vector<256x4xf32>
    %53 = tpu.matmul %50, %52, %cst_73 {dimension_numbers = #tpu.dot_dimension_numbers<[1], [0], [0], [1], [0, 0, 1, 1], [], []>} : vector<256x4xf32>, vector<4x4xf32>, vector<256x4xf32> -> vector<256x4xf32>
    %54 = arith.addf %48, %53 : vector<256x4xf32>
    %c2_74 = arith.constant 2 : index
    %c2_75 = arith.constant 2 : index
    %c0_76 = arith.constant 0 : index
    %55 = vector.load %arg7[%c2_74, %c2_75, %c0_76] : memref<18x18x4xf32, #tpu.memory_space<vmem>>, vector<16x16x4xf32>
    %56 = vector.shape_cast %55 : vector<16x16x4xf32> to vector<256x4xf32>
    %c2_77 = arith.constant 2 : index
    %c2_78 = arith.constant 2 : index
    %c0_79 = arith.constant 0 : index
    %c0_80 = arith.constant 0 : index
    %57 = vector.load %arg4[%c2_77, %c2_78, %c0_79, %c0_80] : memref<3x3x4x4xf32, #tpu.memory_space<vmem>>, vector<1x1x4x4xf32>
    %58 = vector.shape_cast %57 : vector<1x1x4x4xf32> to vector<4x4xf32>
    %cst_81 = arith.constant dense<0.000000e+00> : vector<256x4xf32>
    %59 = tpu.matmul %56, %58, %cst_81 {dimension_numbers = #tpu.dot_dimension_numbers<[1], [0], [0], [1], [0, 0, 1, 1], [], []>} : vector<256x4xf32>, vector<4x4xf32>, vector<256x4xf32> -> vector<256x4xf32>
    %60 = arith.addf %54, %59 : vector<256x4xf32>
    %c0_82 = arith.constant 0 : index
    %c0_83 = arith.constant 0 : index
    %61 = vector.load %arg5[%c0_82, %c0_83] : memref<1x4xf32, #tpu.memory_space<vmem>>, vector<1x4xf32>
    %62 = vector.broadcast %61 : vector<1x4xf32> to vector<256x4xf32>
    %63 = arith.addf %60, %62 : vector<256x4xf32>
    %cst_84 = arith.constant 0.000000e+00 : f32
    %64 = vector.broadcast %cst_84 : f32 to vector<256x4xf32>
    %65 = arith.maximumf %63, %64 : vector<256x4xf32>
    %c1_85 = arith.constant 1 : index
    %c1_86 = arith.constant 1 : index
    %c0_87 = arith.constant 0 : index
    %66 = vector.load %arg7[%c1_85, %c1_86, %c0_87] : memref<18x18x4xf32, #tpu.memory_space<vmem>>, vector<16x16x4xf32>
    %67 = vector.shape_cast %66 : vector<16x16x4xf32> to vector<256x4xf32>
    %68 = arith.addf %67, %65 : vector<256x4xf32>
    %69 = vector.shape_cast %68 : vector<256x4xf32> to vector<16x16x4xf32>
    %c0_88 = arith.constant 0 : index
    %c0_89 = arith.constant 0 : index
    %c0_90 = arith.constant 0 : index
    %c0_91 = arith.constant 0 : index
    %70 = vector.load %arg6[%c0_88, %c0_89, %c0_90, %c0_91] : memref<1x16x16x4xf32, #tpu.memory_space<vmem>>, vector<1x16x16x4xf32>
    %71 = vector.shape_cast %70 : vector<1x16x16x4xf32> to vector<16x16x4xf32>
    %72 = vector.shape_cast %69 : vector<16x16x4xf32> to vector<1x16x16x4xf32>
    tpu.vector_store %arg6[%c0_88, %c0_89, %c0_90, %c0_91], %72 {strides = array<i32>} : memref<1x16x16x4xf32, #tpu.memory_space<vmem>>, vector<1x16x16x4xf32>,
    return
  }
  func.func @transform_0(%arg0: i32, %arg1: i32) -> (i32, i32, i32, i32) {
    %c0_i32 = arith.constant 0 : i32
    %c0_i32_0 = arith.constant 0 : i32
    %c0_i32_1 = arith.constant 0 : i32
    return %arg0, %arg1, %c0_i32, %c0_i32_0 : i32, i32, i32, i32
  }
  func.func @transform_1(%arg0: i32, %arg1: i32) -> (i32, i32, i32, i32) {
    %c1_i32 = arith.constant 1 : i32
    %0 = arith.addi %arg1, %c1_i32 : i32
    %c2_i32 = arith.constant 2 : i32
    %1 = arith.muli %0, %c2_i32 : i32
    %c0_i32 = arith.constant 0 : i32
    %c0_i32_0 = arith.constant 0 : i32
    %c0_i32_1 = arith.constant 0 : i32
    return %arg0, %1, %c0_i32, %c0_i32_0 : i32, i32, i32, i32
  }
  func.func @transform_2(%arg0: i32, %arg1: i32) -> (i32, i32, i32, i32) {
    %c0_i32 = arith.constant 0 : i32
    %c0_i32_0 = arith.constant 0 : i32
    %c0_i32_1 = arith.constant 0 : i32
    %c0_i32_2 = arith.constant 0 : i32
    %c0_i32_3 = arith.constant 0 : i32
    return %c0_i32, %c0_i32_0, %c0_i32_1, %c0_i32_2 : i32, i32, i32, i32
  }
  func.func @transform_3(%arg0: i32, %arg1: i32) -> (i32, i32) {
    %c0_i32 = arith.constant 0 : i32
    %c0_i32_0 = arith.constant 0 : i32
    %c0_i32_1 = arith.constant 0 : i32
    return %c0_i32, %c0_i32_0 : i32, i32
  }
  func.func @transform_4(%arg0: i32, %arg1: i32) -> (i32, i32, i32, i32) {
    %c0_i32 = arith.constant 0 : i32
    %c0_i32_0 = arith.constant 0 : i32
    %c0_i32_1 = arith.constant 0 : i32
    return %arg0, %arg1, %c0_i32, %c0_i32_0 : i32, i32, i32, i32
  }
}

</mosaic_0001>

<llo_original>
// kernel: shortcut_block.1
$region0: #{shortcut_block.1}
  #allocation0 [shape = 'u32[]', space=smem, size = 0x4, offset = 0x4, fixed_abs, tag = 'smem constant byte address 0x4 - core index']
  #allocation1 [shape = 'u32[144,128]{1,0:T(1,128)}', space=vmem, size = 0x12000, scoped, tag = 'internal scratch']
  #allocation2 [shape = 'f32[18,18,4]{2,1,0:T(8,128)}', space=vmem, size = 0x36000, scoped, tag = 'scratch operand']
  %s0 = inlined_call_operand.vmem [shape: f32[2,32,18,4], index: 0, kind: input, shape index: {}, may-alias: {0,1}]
  %s1 = inlined_call_operand.vmem [shape: f32[2,32,18,4], index: 1, kind: input, shape index: {}, may-alias: {0,1}]
  %s2 = inlined_call_operand.vmem [shape: f32[3,3,4,4], index: 2, kind: input, shape index: {}]
  %s3 = inlined_call_operand.vmem [shape: f32[1,4], index: 3, kind: input, shape index: {}]
  %s4 = inlined_call_operand.vmem [shape: f32[2,16,16,4], index: 4, kind: output, shape index: {}]
  %s5 = sld [smem:[#allocation0]]
  $region49: #{shortcut_block.1} parent=0
    _
  %s7 = ssub.s32 1, %s5
  %s8 = scalar_select 0, %s7, %s5
  loop: start=0, step=1, limit=4
  $region2: #{shortcut_block.1} parent=0 // loop_pre_header
    _
  $region3: #{shortcut_block.1} parent=0 // loop_header
    %s10 = sphi 0, %s14
    %p11 = scmp.ge.s32.totalorder %s10, 4
    %s17 = sphi 0, %s29
    %s18 = sphi 0, %s25
    %s19 = sphi 0, %s17
    %s20 = sphi 0, %s18
    %s21 = sphi 0, %s19
    %s22 = sphi 0, %s20
    %s34 = sphi 0, %s36
    %s37 = sphi 0, %s34
    %s38 = sphi 0, %s37
    %s54 = sphi 0, %s38
    %s66 = sphi 0, %s68
    %s69 = sphi 0, %s66
    %s70 = sphi 0, %s69
    %s86 = sphi 0, %s70
    %s90 = sphi 0, %s90
    %s92 = sphi 0, %s90
    %s93 = sphi 0, %s92
    %s107 = sphi 0, %s93
    %s111 = sphi 0, %s111
    %s113 = sphi 0, %s111
    %s114 = sphi 0, %s113
    %s128 = sphi 0, %s114
    %s136 = sphi 0, %s138
    %s139 = sphi 0, %s136
    %s140 = sphi 0, %s139
    %s156 = sphi 0, %s140
  $region4: #{shortcut_block.1} parent=0 // loop_header_branch
    %13 = sbr.rel (%p11) target = $region8
  $region5: #{shortcut_block.1} parent=0 // loop_body
    %s15 = ssub.s32 %s10, 1
    %s16 = ssub.s32 %s10, 2
    %s23 = sadd.s32 1, %s18
    %p24 = scmp.ge.s32.totalorder %s23, 1
    %s25 = scalar_select %p24, 0, %s23
    %s26 = sadd.s32 1, %s17
    %s27 = scalar_select %p24, %s26, %s17
    %p28 = scmp.ge.s32.totalorder %s27, 2
    %s29 = scalar_select %p28, 0, %s27
    %s30 = ssub.s32 %s17, %s29
    %s31 = ssub.s32 %s18, %s25
    %s32 = sor.u32 %s30, %s31
    %p33 = scmp.eq.s32.totalorder %s32, 0
    %s35 = sadd.s32 %s34, 1
    %s36 = scalar_select %p33, %s34, %s35
    %p39 = pneg %p33
    %p40 = scmp.eq.s32.totalorder %s10, 1
    %p41 = por %p39, %p40
    %p42 = scmp.ne.s32.totalorder %s34, %s37
    %p43 = scmp.eq.s32.totalorder %s10, 0
    %p44 = por %p42, %p43
    %p45 = scmp.ne.s32.totalorder %s34, %s37
    %p46 = scmp.eq.s32.totalorder %s15, 1
    %p47 = por %p45, %p46
    %p48 = scmp.ne.s32.totalorder %s37, %s38
    %p49 = scmp.eq.s32.totalorder %s15, 0
    %p50 = por %p48, %p49
    %p51 = scmp.ne.s32.totalorder %s37, %s38
    %p52 = scmp.eq.s32.totalorder %s16, 1
    %p53 = por %p51, %p52
    %p55 = scmp.ne.s32.totalorder %s38, %s54
    %p56 = scmp.eq.s32.totalorder %s16, 0
    %p57 = por %p55, %p56
    %s58 = sadd.s32 %s18, 1
    %s59 = smul.u32 %s58, 2
    %s60 = sadd.s32 %s25, 1
    %s61 = smul.u32 %s60, 2
    %s62 = ssub.s32 %s17, %s29
    %s63 = ssub.s32 %s59, %s61
    %s64 = sor.u32 %s62, %s63
    %p65 = scmp.eq.s32.totalorder %s64, 0
    %s67 = sadd.s32 %s66, 1
    %s68 = scalar_select %p65, %s66, %s67
    %p71 = pneg %p65
    %p72 = scmp.eq.s32.totalorder %s10, 1
    %p73 = por %p71, %p72
    %p74 = scmp.ne.s32.totalorder %s66, %s69
    %p75 = scmp.eq.s32.totalorder %s10, 0
    %p76 = por %p74, %p75
    %p77 = scmp.ne.s32.totalorder %s66, %s69
    %p78 = scmp.eq.s32.totalorder %s15, 1
    %p79 = por %p77, %p78
    %p80 = scmp.ne.s32.totalorder %s69, %s70
    %p81 = scmp.eq.s32.totalorder %s15, 0
    %p82 = por %p80, %p81
    %p83 = scmp.ne.s32.totalorder %s69, %s70
    %p84 = scmp.eq.s32.totalorder %s16, 1
    %p85 = por %p83, %p84
    %p87 = scmp.ne.s32.totalorder %s70, %s86
    %p88 = scmp.eq.s32.totalorder %s16, 0
    %p89 = por %p87, %p88
    %s91 = sadd.s32 %s90, 1
    %p94 = scmp.eq.s32.totalorder %s10, 1
    %p95 = scmp.ne.s32.totalorder %s90, %s92
    %p96 = scmp.eq.s32.totalorder %s10, 0
    %p97 = por %p95, %p96
    %p98 = scmp.ne.s32.totalorder %s90, %s92
    %p99 = scmp.eq.s32.totalorder %s15, 1
    %p100 = por %p98, %p99
    %p101 = scmp.ne.s32.totalorder %s92, %s93
    %p102 = scmp.eq.s32.totalorder %s15, 0
    %p103 = por %p101, %p102
    %p104 = scmp.ne.s32.totalorder %s92, %s93
    %p105 = scmp.eq.s32.totalorder %s16, 1
    %p106 = por %p104, %p105
    %p108 = scmp.ne.s32.totalorder %s93, %s107
    %p109 = scmp.eq.s32.totalorder %s16, 0
    %p110 = por %p108, %p109
    %s112 = sadd.s32 %s111, 1
    %p115 = scmp.eq.s32.totalorder %s10, 1
    %p116 = scmp.ne.s32.totalorder %s111, %s113
    %p117 = scmp.eq.s32.totalorder %s10, 0
    %p118 = por %p116, %p117
    %p119 = scmp.ne.s32.totalorder %s111, %s113
    %p120 = scmp.eq.s32.totalorder %s15, 1
    %p121 = por %p119, %p120
    %p122 = scmp.ne.s32.totalorder %s113, %s114
    %p123 = scmp.eq.s32.totalorder %s15, 0
    %p124 = por %p122, %p123
    %p125 = scmp.ne.s32.totalorder %s113, %s114
    %p126 = scmp.eq.s32.totalorder %s16, 1
    %p127 = por %p125, %p126
    %p129 = scmp.ne.s32.totalorder %s114, %s128
    %p130 = scmp.eq.s32.totalorder %s16, 0
    %p131 = por %p129, %p130
    %s132 = ssub.s32 %s17, %s29
    %s133 = ssub.s32 %s18, %s25
    %s134 = sor.u32 %s132, %s133
    %p135 = scmp.eq.s32.totalorder %s134, 0
    %s137 = sadd.s32 %s136, 1
    %s138 = scalar_select %p135, %s136, %s137
    %p141 = pneg %p135
    %p142 = scmp.eq.s32.totalorder %s10, 1
    %p143 = por %p141, %p142
    %p144 = scmp.ne.s32.totalorder %s136, %s139
    %p145 = scmp.eq.s32.totalorder %s10, 0
    %p146 = por %p144, %p145
    %p147 = scmp.ne.s32.totalorder %s136, %s139
    %p148 = scmp.eq.s32.totalorder %s15, 1
    %p149 = por %p147, %p148
    %p150 = scmp.ne.s32.totalorder %s139, %s140
    %p151 = scmp.eq.s32.totalorder %s15, 0
    %p152 = por %p150, %p151
    %p153 = scmp.ne.s32.totalorder %s139, %s140
    %p154 = scmp.eq.s32.totalorder %s16, 1
    %p155 = por %p153, %p154
    %p157 = scmp.ne.s32.totalorder %s140, %s156
    %p158 = scmp.eq.s32.totalorder %s16, 0
    %p159 = por %p157, %p158
    %p160 = scmp.le.s32.totalorder 1, %s10
    %p161 = scmp.lt.s32.totalorder %s10, 3
    %p162 = pnand %p160, %p161
    %p163 = pneg %p162
    // Predicated region
    $region9: #{shortcut_block.1} parent=5 // pred_check
      _
    $region10: #{shortcut_block.1} parent=5 // pred_check_branch
      %165 = sbr.rel (%p162) target = $region12
    $region11: #{shortcut_block.1} parent=5 // pred_region
      %s166 = ssub.s32 %s10, 1
      // Predicated region
      $region13: #{shortcut_block.1} parent=11 // pred_check
        %p167 = pneg %p103
      $region14: #{shortcut_block.1} parent=11 // pred_check_branch
        %169 = sbr.rel (%p167) target = $region16
      $region15: #{shortcut_block.1} parent=11 // pred_region
        _
      $region16: #{shortcut_block.1} parent=11 // pred_fallthru
        _
      // Predicated region
      $region17: #{shortcut_block.1} parent=11 // pred_check
        %p170 = pneg %p124
      $region18: #{shortcut_block.1} parent=11 // pred_check_branch
        %172 = sbr.rel (%p170) target = $region20
      $region19: #{shortcut_block.1} parent=11 // pred_region
        _
      $region20: #{shortcut_block.1} parent=11 // pred_fallthru
        _
    $region12: #{shortcut_block.1} parent=5 // pred_fallthru
      _
    %p173 = scmp.lt.s32.totalorder %s10, 2
    // Predicated region
    $region21: #{shortcut_block.1} parent=5 // pred_check
      %p174 = pneg %p173
    $region22: #{shortcut_block.1} parent=5 // pred_check_branch
      %176 = sbr.rel (%p174) target = $region24
    $region23: #{shortcut_block.1} parent=5 // pred_region
      // Predicated region
      $region25: #{shortcut_block.1} parent=23 // pred_check
        %p177 = pneg %p44
      $region26: #{shortcut_block.1} parent=23 // pred_check_branch
        %179 = sbr.rel (%p177) target = $region28
      $region27: #{shortcut_block.1} parent=23 // pred_region
        %s180 = smul.u32 16, %s18
        %p181 = scmp.lt.s32.totalorder %s17, 1
        %s182 = scalar_select %p181, %s17, 1
        %p183 = scmp.lt.s32.totalorder %s180, 31
        %s184 = scalar_select %p183, %s180, 31
        %s185 = smul.addr %s184, 3
        %s186 = smul.addr %s182, 96
        %s187 = sadd.s32 %s185, %s186
        %s188 = smul.addr %s187, 8
        %s189 = scalar_lea.vmem %s0, %s188
        %s190 = smul.u32 16, %s18
      $region28: #{shortcut_block.1} parent=23 // pred_fallthru
        _
      // Predicated region
      $region29: #{shortcut_block.1} parent=23 // pred_check
        %p191 = pneg %p76
      $region30: #{shortcut_block.1} parent=23 // pred_check_branch
        %193 = sbr.rel (%p191) target = $region32
      $region31: #{shortcut_block.1} parent=23 // pred_region
        %s194 = sadd.s32 %s18, 1
        %s195 = smul.u32 %s194, 2
        %s196 = smul.u32 8, %s195
        %p197 = scmp.lt.s32.totalorder %s17, 1
        %s198 = scalar_select %p197, %s17, 1
        %p199 = scmp.lt.s32.totalorder %s196, 31
        %s200 = scalar_select %p199, %s196, 31
        %s201 = smul.addr %s200, 3
        %s202 = smul.addr %s198, 96
        %s203 = sadd.s32 %s201, %s202
        %s204 = smul.addr %s203, 8
        %s205 = scalar_lea.vmem %s1, %s204
        %s206 = sadd.s32 %s18, 1
        %s207 = smul.u32 %s206, 2
        %s208 = smul.u32 8, %s207
      $region32: #{shortcut_block.1} parent=23 // pred_fallthru
        _
    $region24: #{shortcut_block.1} parent=5 // pred_fallthru
      _
    %p209 = scmp.le.s32.totalorder 1, %s10
    %p210 = scmp.lt.s32.totalorder %s10, 3
    %p211 = pnand %p209, %p210
    %p212 = pneg %p211
    // Predicated region
    $region33: #{shortcut_block.1} parent=5 // pred_check
      _
    $region34: #{shortcut_block.1} parent=5 // pred_check_branch
      %214 = sbr.rel (%p211) target = $region36
    $region35: #{shortcut_block.1} parent=5 // pred_region
      %s215 = ssub.s32 %s10, 1
      %s216 = smul.u32 16, %s20
      %p217 = scmp.lt.s32.totalorder %s19, 1
      %s218 = scalar_select %p217, %s19, 1
      %p219 = scmp.lt.s32.totalorder %s216, 31
      %s220 = scalar_select %p219, %s216, 31
      %s221 = smul.addr %s220, 3
      %s222 = smul.addr %s218, 96
      %s223 = sadd.s32 %s221, %s222
      %s224 = smul.addr %s223, 8
      %s225 = scalar_lea.vmem %s0, %s224
      %p226 = pneg %p50
      %p227 = pneg %p47
      %s228 = sadd.s32 %s20, 1
      %s229 = smul.u32 %s228, 2
      %s230 = smul.u32 8, %s229
      %p231 = scmp.lt.s32.totalorder %s19, 1
      %s232 = scalar_select %p231, %s19, 1
      %p233 = scmp.lt.s32.totalorder %s230, 31
      %s234 = scalar_select %p233, %s230, 31
      %s235 = smul.addr %s234, 3
      %s236 = smul.addr %s232, 96
      %s237 = sadd.s32 %s235, %s236
      %s238 = smul.addr %s237, 8
      %s239 = scalar_lea.vmem %s1, %s238
      %p240 = pneg %p82
      %p241 = pneg %p79
      %p242 = pneg %p103
      %p243 = pneg %p100
      %p244 = pneg %p124
      %p245 = pneg %p121
      %p246 = pneg %p152
      %p247 = pneg %p149
      %s248 = smul.u32 16, %s20
      %p249 = scmp.lt.s32.totalorder %s19, 1
      %s250 = scalar_select %p249, %s19, 1
      %p251 = scmp.lt.s32.totalorder %s248, 15
      %s252 = scalar_select %p251, %s248, 15
      %s253 = smul.addr %s252, 2
      %s254 = smul.addr %s250, 32
      %s255 = sadd.s32 %s253, %s254
      %s256 = smul.addr %s255, 8
      %s257 = scalar_lea.vmem %s4, %s256
      %s258 = smul.u32 16, %s20
      %p259 = scmp.lt.s32.totalorder %s19, 1
      %s260 = scalar_select %p259, %s19, 1
      %p261 = scmp.lt.s32.totalorder %s258, 31
      %s262 = scalar_select %p261, %s258, 31
      %s263 = smul.addr %s262, 3
      %s264 = smul.addr %s260, 96
      %s265 = sadd.s32 %s263, %s264
      %s266 = smul.addr %s265, 8
      %s267 = scalar_lea.vmem %s0, %s266
      %s268 = smul.u32 16, %s20
      %s269 = sadd.s32 %s20, 1
      %s270 = smul.u32 %s269, 2
      %s271 = smul.u32 8, %s270
      %p272 = scmp.lt.s32.totalorder %s19, 1
      %s273 = scalar_select %p272, %s19, 1
      %p274 = scmp.lt.s32.totalorder %s271, 31
      %s275 = scalar_select %p274, %s271, 31
      %s276 = smul.addr %s275, 3
      %s277 = smul.addr %s273, 96
      %s278 = sadd.s32 %s276, %s277
      %s279 = smul.addr %s278, 8
      %s280 = scalar_lea.vmem %s1, %s279
      %s281 = sadd.s32 %s20, 1
      %s282 = smul.u32 %s281, 2
      %s283 = smul.u32 8, %s282
      %s284 = smul.u32 16, %s20
      %p285 = scmp.lt.s32.totalorder %s19, 1
      %s286 = scalar_select %p285, %s19, 1
      %p287 = scmp.lt.s32.totalorder %s284, 15
      %s288 = scalar_select %p287, %s284, 15
      %s289 = smul.addr %s288, 2
      %s290 = smul.addr %s286, 32
      %s291 = sadd.s32 %s289, %s290
      %s292 = smul.addr %s291, 8
      %s293 = scalar_lea.vmem %s4, %s292
      %s294 = smul.u32 16, %s20
      %v295 = vld [vmem:[%s267] sm:$0xff]
      %v296 = vld [vmem:[%s267 + $0x8] sm:$0xff]
      %v297 = vld [vmem:[%s267 + $0x10] sm:$0x3]
      %v298 = vld [vmem:[%s267 + $0x18] sm:$0xff]
      %v299 = vld [vmem:[%s267 + $0x20] sm:$0xff]
      %v300 = vld [vmem:[%s267 + $0x28] sm:$0x3]
      %v301 = vld [vmem:[%s267 + $0x30] sm:$0xff]
      %v302 = vld [vmem:[%s267 + $0x38] sm:$0xff]
      %v303 = vld [vmem:[%s267 + $0x40] sm:$0x3]
      %v304 = vld [vmem:[%s267 + $0x48] sm:$0xff]
      %v305 = vld [vmem:[%s267 + $0x50] sm:$0xff]
      %v306 = vld [vmem:[%s267 + $0x58] sm:$0x3]
      %v307 = vld [vmem:[%s267 + $0x60] sm:$0xff]
      %v308 = vld [vmem:[%s267 + $0x68] sm:$0xff]
      %v309 = vld [vmem:[%s267 + $0x70] sm:$0x3]
      %v310 = vld [vmem:[%s267 + $0x78] sm:$0xff]
      %v311 = vld [vmem:[%s267 + $0x80] sm:$0xff]
      %v312 = vld [vmem:[%s267 + $0x88] sm:$0x3]
      %v313 = vld [vmem:[%s267 + $0x90] sm:$0xff]
      %v314 = vld [vmem:[%s267 + $0x98] sm:$0xff]
      %v315 = vld [vmem:[%s267 + $0xa0] sm:$0x3]
      %v316 = vld [vmem:[%s267 + $0xa8] sm:$0xff]
      %v317 = vld [vmem:[%s267 + $0xb0] sm:$0xff]
      %v318 = vld [vmem:[%s267 + $0xb8] sm:$0x3]
      %v319 = vld [vmem:[%s267 + $0xc0] sm:$0xff]
      %v320 = vld [vmem:[%s267 + $0xc8] sm:$0xff]
      %v321 = vld [vmem:[%s267 + $0xd0] sm:$0x3]
      %v322 = vld [vmem:[%s267 + $0xd8] sm:$0xff]
      %v323 = vld [vmem:[%s267 + $0xe0] sm:$0xff]
      %v324 = vld [vmem:[%s267 + $0xe8] sm:$0x3]
      %v325 = vld [vmem:[%s267 + $0xf0] sm:$0xff]
      %v326 = vld [vmem:[%s267 + $0xf8] sm:$0xff]
      %v327 = vld [vmem:[%s267 + $0x100] sm:$0x3]
      %v328 = vld [vmem:[%s267 + $0x108] sm:$0xff]
      %v329 = vld [vmem:[%s267 + $0x110] sm:$0xff]
      %v330 = vld [vmem:[%s267 + $0x118] sm:$0x3]
      %v331 = vld [vmem:[%s267 + $0x120] sm:$0xff]
      %v332 = vld [vmem:[%s267 + $0x128] sm:$0xff]
      %v333 = vld [vmem:[%s267 + $0x130] sm:$0x3]
      %v334 = vld [vmem:[%s267 + $0x138] sm:$0xff]
      %v335 = vld [vmem:[%s267 + $0x140] sm:$0xff]
      %v336 = vld [vmem:[%s267 + $0x148] sm:$0x3]
      %v337 = vld [vmem:[%s267 + $0x150] sm:$0xff]
      %v338 = vld [vmem:[%s267 + $0x158] sm:$0xff]
      %v339 = vld [vmem:[%s267 + $0x160] sm:$0x3]
      %v340 = vld [vmem:[%s267 + $0x168] sm:$0xff]
      %v341 = vld [vmem:[%s267 + $0x170] sm:$0xff]
      %v342 = vld [vmem:[%s267 + $0x178] sm:$0x3]
      %vm343 = vcmask 31744
      %344 = vst.msk [vmem:[#allocation2] sm:$0xff] %vm343, %v295
      %345 = vst.msk [vmem:[#allocation2 + $0x8] sm:$0xff] %vm343, %v296
      %vm346 = vcmask 25600
      %347 = vst.msk [vmem:[#allocation2 + $0x10] sm:$0x3] %vm346, %v297
      %348 = vst.msk [vmem:[#allocation2 + $0x18] sm:$0xff] %vm343, %v298
      %349 = vst.msk [vmem:[#allocation2 + $0x20] sm:$0xff] %vm343, %v299
      %350 = vst.msk [vmem:[#allocation2 + $0x28] sm:$0x3] %vm346, %v300
      %351 = vst.msk [vmem:[#allocation2 + $0x30] sm:$0xff] %vm343, %v301
      %352 = vst.msk [vmem:[#allocation2 + $0x38] sm:$0xff] %vm343, %v302
      %353 = vst.msk [vmem:[#allocation2 + $0x40] sm:$0x3] %vm346, %v303
      %354 = vst.msk [vmem:[#allocation2 + $0x48] sm:$0xff] %vm343, %v304
      %355 = vst.msk [vmem:[#allocation2 + $0x50] sm:$0xff] %vm343, %v305
      %356 = vst.msk [vmem:[#allocation2 + $0x58] sm:$0x3] %vm346, %v306
      %357 = vst.msk [vmem:[#allocation2 + $0x60] sm:$0xff] %vm343, %v307
      %358 = vst.msk [vmem:[#allocation2 + $0x68] sm:$0xff] %vm343, %v308
      %359 = vst.msk [vmem:[#allocation2 + $0x70] sm:$0x3] %vm346, %v309
      %360 = vst.msk [vmem:[#allocation2 + $0x78] sm:$0xff] %vm343, %v310
      %361 = vst.msk [vmem:[#allocation2 + $0x80] sm:$0xff] %vm343, %v311
      %362 = vst.msk [vmem:[#allocation2 + $0x88] sm:$0x3] %vm346, %v312
      %363 = vst.msk [vmem:[#allocation2 + $0x90] sm:$0xff] %vm343, %v313
      %364 = vst.msk [vmem:[#allocation2 + $0x98] sm:$0xff] %vm343, %v314
      %365 = vst.msk [vmem:[#allocation2 + $0xa0] sm:$0x3] %vm346, %v315
      %366 = vst.msk [vmem:[#allocation2 + $0xa8] sm:$0xff] %vm343, %v316
      %367 = vst.msk [vmem:[#allocation2 + $0xb0] sm:$0xff] %vm343, %v317
      %368 = vst.msk [vmem:[#allocation2 + $0xb8] sm:$0x3] %vm346, %v318
      %369 = vst.msk [vmem:[#allocation2 + $0xc0] sm:$0xff] %vm343, %v319
      %370 = vst.msk [vmem:[#allocation2 + $0xc8] sm:$0xff] %vm343, %v320
      %371 = vst.msk [vmem:[#allocation2 + $0xd0] sm:$0x3] %vm346, %v321
      %372 = vst.msk [vmem:[#allocation2 + $0xd8] sm:$0xff] %vm343, %v322
      %373 = vst.msk [vmem:[#allocation2 + $0xe0] sm:$0xff] %vm343, %v323
      %374 = vst.msk [vmem:[#allocation2 + $0xe8] sm:$0x3] %vm346, %v324
      %375 = vst.msk [vmem:[#allocation2 + $0xf0] sm:$0xff] %vm343, %v325
      %376 = vst.msk [vmem:[#allocation2 + $0xf8] sm:$0xff] %vm343, %v326
      %377 = vst.msk [vmem:[#allocation2 + $0x100] sm:$0x3] %vm346, %v327
      %378 = vst.msk [vmem:[#allocation2 + $0x108] sm:$0xff] %vm343, %v328
      %379 = vst.msk [vmem:[#allocation2 + $0x110] sm:$0xff] %vm343, %v329
      %380 = vst.msk [vmem:[#allocation2 + $0x118] sm:$0x3] %vm346, %v330
      %381 = vst.msk [vmem:[#allocation2 + $0x120] sm:$0xff] %vm343, %v331
      %382 = vst.msk [vmem:[#allocation2 + $0x128] sm:$0xff] %vm343, %v332
      %383 = vst.msk [vmem:[#allocation2 + $0x130] sm:$0x3] %vm346, %v333
      %384 = vst.msk [vmem:[#allocation2 + $0x138] sm:$0xff] %vm343, %v334
      %385 = vst.msk [vmem:[#allocation2 + $0x140] sm:$0xff] %vm343, %v335
      %386 = vst.msk [vmem:[#allocation2 + $0x148] sm:$0x3] %vm346, %v336
      %387 = vst.msk [vmem:[#allocation2 + $0x150] sm:$0xff] %vm343, %v337
      %388 = vst.msk [vmem:[#allocation2 + $0x158] sm:$0xff] %vm343, %v338
      %389 = vst.msk [vmem:[#allocation2 + $0x160] sm:$0x3] %vm346, %v339
      %390 = vst.msk [vmem:[#allocation2 + $0x168] sm:$0xff] %vm343, %v340
      %391 = vst.msk [vmem:[#allocation2 + $0x170] sm:$0xff] %vm343, %v341
      %392 = vst.msk [vmem:[#allocation2 + $0x178] sm:$0x3] %vm346, %v342
      %v393 = vld [vmem:[%s280] sm:$0xff]
      %v394 = vld [vmem:[%s280 + $0x8] sm:$0xff]
      %v395 = vld [vmem:[%s280 + $0x10] sm:$0x3]
      %v396 = vld [vmem:[%s280 + $0x18] sm:$0xff]
      %v397 = vld [vmem:[%s280 + $0x20] sm:$0xff]
      %v398 = vld [vmem:[%s280 + $0x28] sm:$0x3]
      %s399 = scalar_lea.vmem [#allocation2], 384
      %400 = vst.msk [vmem:[%s399] sm:$0xff] %vm343, %v393
      %401 = vst.msk [vmem:[%s399 + $0x8] sm:$0xff] %vm343, %v394
      %402 = vst.msk [vmem:[%s399 + $0x10] sm:$0x3] %vm346, %v395
      %403 = vst.msk [vmem:[%s399 + $0x18] sm:$0xff] %vm343, %v396
      %404 = vst.msk [vmem:[%s399 + $0x20] sm:$0xff] %vm343, %v397
      %405 = vst.msk [vmem:[%s399 + $0x28] sm:$0x3] %vm346, %v398
      %v406 = vld [vmem:[#allocation2] sm:$0xff]
      %v407 = vld [vmem:[#allocation2 + $0x8] sm:$0xff]
      %v408 = vld [vmem:[#allocation2 + $0x18] sm:$0xff]
      %v409 = vld [vmem:[#allocation2 + $0x20] sm:$0xff]
      %v410 = vld [vmem:[#allocation2 + $0x30] sm:$0xff]
      %v411 = vld [vmem:[#allocation2 + $0x38] sm:$0xff]
      %v412 = vld [vmem:[#allocation2 + $0x48] sm:$0xff]
      %v413 = vld [vmem:[#allocation2 + $0x50] sm:$0xff]
      %v414 = vld [vmem:[#allocation2 + $0x60] sm:$0xff]
      %v415 = vld [vmem:[#allocation2 + $0x68] sm:$0xff]
      %v416 = vld [vmem:[#allocation2 + $0x78] sm:$0xff]
      %v417 = vld [vmem:[#allocation2 + $0x80] sm:$0xff]
      %v418 = vld [vmem:[#allocation2 + $0x90] sm:$0xff]
      %v419 = vld [vmem:[#allocation2 + $0x98] sm:$0xff]
      %v420 = vld [vmem:[#allocation2 + $0xa8] sm:$0xff]
      %v421 = vld [vmem:[#allocation2 + $0xb0] sm:$0xff]
      %v422 = vld [vmem:[#allocation2 + $0xc0] sm:$0xff]
      %v423 = vld [vmem:[#allocation2 + $0xc8] sm:$0xff]
      %v424 = vld [vmem:[#allocation2 + $0xd8] sm:$0xff]
      %v425 = vld [vmem:[#allocation2 + $0xe0] sm:$0xff]
      %v426 = vld [vmem:[#allocation2 + $0xf0] sm:$0xff]
      %v427 = vld [vmem:[#allocation2 + $0xf8] sm:$0xff]
      %v428 = vld [vmem:[#allocation2 + $0x108] sm:$0xff]
      %v429 = vld [vmem:[#allocation2 + $0x110] sm:$0xff]
      %v430 = vld [vmem:[#allocation2 + $0x120] sm:$0xff]
      %v431 = vld [vmem:[#allocation2 + $0x128] sm:$0xff]
      %v432 = vld [vmem:[#allocation2 + $0x138] sm:$0xff]
      %v433 = vld [vmem:[#allocation2 + $0x140] sm:$0xff]
      %v434 = vld [vmem:[#allocation2 + $0x150] sm:$0xff]
      %v435 = vld [vmem:[#allocation2 + $0x158] sm:$0xff]
      %v436 = vld [vmem:[#allocation2 + $0x168] sm:$0xff]
      %v437 = vld [vmem:[#allocation2 + $0x170] sm:$0xff]
      %v438 = vld [vmem:[%s2] sm:$0xf]
      %v439 = vld [vmem:[#allocation2 + $0x1] sm:$0xff]
      %v440 = vld [vmem:[#allocation2 + $0x9] sm:$0xff]
      %v441 = vld [vmem:[#allocation2 + $0x19] sm:$0xff]
      %v442 = vld [vmem:[#allocation2 + $0x21] sm:$0xff]
      %v443 = vld [vmem:[#allocation2 + $0x31] sm:$0xff]
      %v444 = vld [vmem:[#allocation2 + $0x39] sm:$0xff]
      %v445 = vld [vmem:[#allocation2 + $0x49] sm:$0xff]
      %v446 = vld [vmem:[#allocation2 + $0x51] sm:$0xff]
      %v447 = vld [vmem:[#allocation2 + $0x61] sm:$0xff]
      %v448 = vld [vmem:[#allocation2 + $0x69] sm:$0xff]
      %v449 = vld [vmem:[#allocation2 + $0x79] sm:$0xff]
      %v450 = vld [vmem:[#allocation2 + $0x81] sm:$0xff]
      %v451 = vld [vmem:[#allocation2 + $0x91] sm:$0xff]
      %v452 = vld [vmem:[#allocation2 + $0x99] sm:$0xff]
      %v453 = vld [vmem:[#allocation2 + $0xa9] sm:$0xff]
      %v454 = vld [vmem:[#allocation2 + $0xb1] sm:$0xff]
      %v455 = vld [vmem:[#allocation2 + $0xc1] sm:$0xff]
      %v456 = vld [vmem:[#allocation2 + $0xc9] sm:$0xff]
      %v457 = vld [vmem:[#allocation2 + $0xd9] sm:$0xff]
      %v458 = vld [vmem:[#allocation2 + $0xe1] sm:$0xff]
      %v459 = vld [vmem:[#allocation2 + $0xf1] sm:$0xff]
      %v460 = vld [vmem:[#allocation2 + $0xf9] sm:$0xff]
      %v461 = vld [vmem:[#allocation2 + $0x109] sm:$0xff]
      %v462 = vld [vmem:[#allocation2 + $0x111] sm:$0xff]
      %v463 = vld [vmem:[#allocation2 + $0x121] sm:$0xff]
      %v464 = vld [vmem:[#allocation2 + $0x129] sm:$0xff]
      %v465 = vld [vmem:[#allocation2 + $0x139] sm:$0xff]
      %v466 = vld [vmem:[#allocation2 + $0x141] sm:$0xff]
      %v467 = vld [vmem:[#allocation2 + $0x151] sm:$0xff]
      %v468 = vld [vmem:[#allocation2 + $0x159] sm:$0xff]
      %v469 = vld [vmem:[#allocation2 + $0x169] sm:$0xff]
      %v470 = vld [vmem:[#allocation2 + $0x171] sm:$0xff]
      %s471 = scalar_lea.vmem %s2, 4
      %v472 = vld [vmem:[%s471] sm:$0xf]
      %v474 = vsel %vm343, %v439, 0
      %v477 = vsel %vm343, %v440, 0
      %v480 = vsel %vm343, %v441, 0
      %v483 = vsel %vm343, %v442, 0
      %v486 = vsel %vm343, %v443, 0
      %v489 = vsel %vm343, %v444, 0
      %v492 = vsel %vm343, %v445, 0
      %v495 = vsel %vm343, %v446, 0
      %v498 = vsel %vm343, %v447, 0
      %v501 = vsel %vm343, %v448, 0
      %v504 = vsel %vm343, %v449, 0
      %v507 = vsel %vm343, %v450, 0
      %v510 = vsel %vm343, %v451, 0
      %v513 = vsel %vm343, %v452, 0
      %v516 = vsel %vm343, %v453, 0
      %v519 = vsel %vm343, %v454, 0
      %v522 = vsel %vm343, %v455, 0
      %v525 = vsel %vm343, %v456, 0
      %v528 = vsel %vm343, %v457, 0
      %v531 = vsel %vm343, %v458, 0
      %v534 = vsel %vm343, %v459, 0
      %v537 = vsel %vm343, %v460, 0
      %v540 = vsel %vm343, %v461, 0
      %v543 = vsel %vm343, %v462, 0
      %v546 = vsel %vm343, %v463, 0
      %v549 = vsel %vm343, %v464, 0
      %v552 = vsel %vm343, %v465, 0
      %v555 = vsel %vm343, %v466, 0
      %v558 = vsel %vm343, %v467, 0
      %v561 = vsel %vm343, %v468, 0
      %v564 = vsel %vm343, %v469, 0
      %v567 = vsel %vm343, %v470, 0
      %vm569 = vcmask 1043456
      %v571 = vsel %vm569, %v472, 0
      %573 = vmatprep.subr.mxu0 0.0
      %574 = vmatpush1.msra.mxu0 0.0
      %575 = vmatprep.subr.mxu0 0.0
      %576 = vmatpush1.msra.mxu0 0.0
      %577 = vmatprep.subr.mxu0 0.0
      %578 = vmatpush1.msra.mxu0 0.0
      %579 = vmatprep.subr.mxu0 0.0
      %580 = vmatpush1.msra.mxu0 0.0
      %581 = vmatprep.subr.mxu0 0.0
      %582 = vmatpush1.msra.mxu0 0.0
      %583 = vmatprep.subr.mxu0 0.0
      %584 = vmatpush1.msra.mxu0 0.0
      %585 = vmatprep.subr.mxu0 0.0
      %586 = vmatpush1.msra.mxu0 0.0
      %587 = vmatprep.subr.mxu0 0.0
      %588 = vmatpush1.msra.mxu0 0.0
      %589 = vmatprep.subr.mxu0 0.0
      %590 = vmatpush1.msra.mxu0 0.0
      %591 = vmatprep.subr.mxu0 0.0
      %592 = vmatpush1.msra.mxu0 0.0
      %593 = vmatprep.subr.mxu0 0.0
      %594 = vmatpush1.msra.mxu0 0.0
      %595 = vmatprep.subr.mxu0 0.0
      %596 = vmatpush1.msra.mxu0 0.0
      %597 = vmatprep.subr.mxu0 0.0
      %598 = vmatpush1.msra.mxu0 0.0
      %599 = vmatprep.subr.mxu0 0.0
      %600 = vmatpush1.msra.mxu0 0.0
      %601 = vmatprep.subr.mxu0 0.0
      %602 = vmatpush1.msra.mxu0 0.0
      %603 = vmatprep.subr.mxu0 0.0
      %604 = vmatpush1.msra.mxu0 %v571
      %605 = vmatprep.subr.mxu0 0.0
      %606 = vmatpush2.msra.mxu0 0.0
      %607 = vmatprep.subr.mxu0 0.0
      %608 = vmatpush2.msra.mxu0 0.0
      %609 = vmatprep.subr.mxu0 0.0
      %610 = vmatpush2.msra.mxu0 0.0
      %611 = vmatprep.subr.mxu0 0.0
      %612 = vmatpush2.msra.mxu0 0.0
      %613 = vmatprep.subr.mxu0 0.0
      %614 = vmatpush2.msra.mxu0 0.0
      %615 = vmatprep.subr.mxu0 0.0
      %616 = vmatpush2.msra.mxu0 0.0
      %617 = vmatprep.subr.mxu0 0.0
      %618 = vmatpush2.msra.mxu0 0.0
      %619 = vmatprep.subr.mxu0 0.0
      %620 = vmatpush2.msra.mxu0 0.0
      %621 = vmatprep.subr.mxu0 0.0
      %622 = vmatpush2.msra.mxu0 0.0
      %623 = vmatprep.subr.mxu0 0.0
      %624 = vmatpush2.msra.mxu0 0.0
      %625 = vmatprep.subr.mxu0 0.0
      %626 = vmatpush2.msra.mxu0 0.0
      %627 = vmatprep.subr.mxu0 0.0
      %628 = vmatpush2.msra.mxu0 0.0
      %629 = vmatprep.subr.mxu0 0.0
      %630 = vmatpush2.msra.mxu0 0.0
      %631 = vmatprep.subr.mxu0 0.0
      %632 = vmatpush2.msra.mxu0 0.0
      %633 = vmatprep.subr.mxu0 0.0
      %634 = vmatpush2.msra.mxu0 0.0
      %635 = vmatprep.subr.mxu0 0.0
      %636 = vmatpush2.msra.mxu0 0.0
      %637 = vmatprep.mubr.f32.mxu0 0.0
      %638 = vmatmul.mubr.f32.gmra.mxu0 %v474
      %v639 = vpop.f32.mrf.mxu0
      %v640 = vadd.f32 0.0, %v639
      %v641 = vpop.f32.mrf.mxu0
      %642 = vmatprep.mubr.f32.mxu0 0.0
      %643 = vmatmul.mubr.f32.gmra.mxu0 %v477
      %v644 = vpop.f32.mrf.mxu0
      %v645 = vadd.f32 0.0, %v644
      %v646 = vpop.f32.mrf.mxu0
      %647 = vmatprep.mubr.f32.mxu0 0.0
      %648 = vmatmul.mubr.f32.gmra.mxu0 %v480
      %v649 = vpop.f32.mrf.mxu0
      %v650 = vadd.f32 0.0, %v649
      %v651 = vpop.f32.mrf.mxu0
      %652 = vmatprep.mubr.f32.mxu0 0.0
      %653 = vmatmul.mubr.f32.gmra.mxu0 %v483
      %v654 = vpop.f32.mrf.mxu0
      %v655 = vadd.f32 0.0, %v654
      %v656 = vpop.f32.mrf.mxu0
      %657 = vmatprep.mubr.f32.mxu0 0.0
      %658 = vmatmul.mubr.f32.gmra.mxu0 %v486
      %v659 = vpop.f32.mrf.mxu0
      %v660 = vadd.f32 0.0, %v659
      %v661 = vpop.f32.mrf.mxu0
      %662 = vmatprep.mubr.f32.mxu0 0.0
      %663 = vmatmul.mubr.f32.gmra.mxu0 %v489
      %v664 = vpop.f32.mrf.mxu0
      %v665 = vadd.f32 0.0, %v664
      %v666 = vpop.f32.mrf.mxu0
      %667 = vmatprep.mubr.f32.mxu0 0.0
      %668 = vmatmul.mubr.f32.gmra.mxu0 %v492
      %v669 = vpop.f32.mrf.mxu0
      %v670 = vadd.f32 0.0, %v669
      %v671 = vpop.f32.mrf.mxu0
      %672 = vmatprep.mubr.f32.mxu0 0.0
      %673 = vmatmul.mubr.f32.gmra.mxu0 %v495
      %v674 = vpop.f32.mrf.mxu0
      %v675 = vadd.f32 0.0, %v674
      %v676 = vpop.f32.mrf.mxu0
      %677 = vmatprep.mubr.f32.mxu0 0.0
      %678 = vmatmul.mubr.f32.gmra.mxu0 %v498
      %v679 = vpop.f32.mrf.mxu0
      %v680 = vadd.f32 0.0, %v679
      %v681 = vpop.f32.mrf.mxu0
      %682 = vmatprep.mubr.f32.mxu0 0.0
      %683 = vmatmul.mubr.f32.gmra.mxu0 %v501
      %v684 = vpop.f32.mrf.mxu0
      %v685 = vadd.f32 0.0, %v684
      %v686 = vpop.f32.mrf.mxu0
      %687 = vmatprep.mubr.f32.mxu0 0.0
      %688 = vmatmul.mubr.f32.gmra.mxu0 %v504
      %v689 = vpop.f32.mrf.mxu0
      %v690 = vadd.f32 0.0, %v689
      %v691 = vpop.f32.mrf.mxu0
      %692 = vmatprep.mubr.f32.mxu0 0.0
      %693 = vmatmul.mubr.f32.gmra.mxu0 %v507
      %v694 = vpop.f32.mrf.mxu0
      %v695 = vadd.f32 0.0, %v694
      %v696 = vpop.f32.mrf.mxu0
      %697 = vmatprep.mubr.f32.mxu0 0.0
      %698 = vmatmul.mubr.f32.gmra.mxu0 %v510
      %v699 = vpop.f32.mrf.mxu0
      %v700 = vadd.f32 0.0, %v699
      %v701 = vpop.f32.mrf.mxu0
      %702 = vmatprep.mubr.f32.mxu0 0.0
      %703 = vmatmul.mubr.f32.gmra.mxu0 %v513
      %v704 = vpop.f32.mrf.mxu0
      %v705 = vadd.f32 0.0, %v704
      %v706 = vpop.f32.mrf.mxu0
      %707 = vmatprep.mubr.f32.mxu0 0.0
      %708 = vmatmul.mubr.f32.gmra.mxu0 %v516
      %v709 = vpop.f32.mrf.mxu0
      %v710 = vadd.f32 0.0, %v709
      %v711 = vpop.f32.mrf.mxu0
      %712 = vmatprep.mubr.f32.mxu0 0.0
      %713 = vmatmul.mubr.f32.gmra.mxu0 %v519
      %v714 = vpop.f32.mrf.mxu0
      %v715 = vadd.f32 0.0, %v714
      %v716 = vpop.f32.mrf.mxu0
      %717 = vmatprep.mubr.f32.mxu0 0.0
      %718 = vmatmul.mubr.f32.gmra.mxu0 %v522
      %v719 = vpop.f32.mrf.mxu0
      %v720 = vadd.f32 0.0, %v719
      %v721 = vpop.f32.mrf.mxu0
      %722 = vmatprep.mubr.f32.mxu0 0.0
      %723 = vmatmul.mubr.f32.gmra.mxu0 %v525
      %v724 = vpop.f32.mrf.mxu0
      %v725 = vadd.f32 0.0, %v724
      %v726 = vpop.f32.mrf.mxu0
      %727 = vmatprep.mubr.f32.mxu0 0.0
      %728 = vmatmul.mubr.f32.gmra.mxu0 %v528
      %v729 = vpop.f32.mrf.mxu0
      %v730 = vadd.f32 0.0, %v729
      %v731 = vpop.f32.mrf.mxu0
      %732 = vmatprep.mubr.f32.mxu0 0.0
      %733 = vmatmul.mubr.f32.gmra.mxu0 %v531
      %v734 = vpop.f32.mrf.mxu0
      %v735 = vadd.f32 0.0, %v734
      %v736 = vpop.f32.mrf.mxu0
      %737 = vmatprep.mubr.f32.mxu0 0.0
      %738 = vmatmul.mubr.f32.gmra.mxu0 %v534
      %v739 = vpop.f32.mrf.mxu0
      %v740 = vadd.f32 0.0, %v739
      %v741 = vpop.f32.mrf.mxu0
      %742 = vmatprep.mubr.f32.mxu0 0.0
      %743 = vmatmul.mubr.f32.gmra.mxu0 %v537
      %v744 = vpop.f32.mrf.mxu0
      %v745 = vadd.f32 0.0, %v744
      %v746 = vpop.f32.mrf.mxu0
      %747 = vmatprep.mubr.f32.mxu0 0.0
      %748 = vmatmul.mubr.f32.gmra.mxu0 %v540
      %v749 = vpop.f32.mrf.mxu0
      %v750 = vadd.f32 0.0, %v749
      %v751 = vpop.f32.mrf.mxu0
      %752 = vmatprep.mubr.f32.mxu0 0.0
      %753 = vmatmul.mubr.f32.gmra.mxu0 %v543
      %v754 = vpop.f32.mrf.mxu0
      %v755 = vadd.f32 0.0, %v754
      %v756 = vpop.f32.mrf.mxu0
      %757 = vmatprep.mubr.f32.mxu0 0.0
      %758 = vmatmul.mubr.f32.gmra.mxu0 %v546
      %v759 = vpop.f32.mrf.mxu0
      %v760 = vadd.f32 0.0, %v759
      %v761 = vpop.f32.mrf.mxu0
      %762 = vmatprep.mubr.f32.mxu0 0.0
      %763 = vmatmul.mubr.f32.gmra.mxu0 %v549
      %v764 = vpop.f32.mrf.mxu0
      %v765 = vadd.f32 0.0, %v764
      %v766 = vpop.f32.mrf.mxu0
      %767 = vmatprep.mubr.f32.mxu0 0.0
      %768 = vmatmul.mubr.f32.gmra.mxu0 %v552
      %v769 = vpop.f32.mrf.mxu0
      %v770 = vadd.f32 0.0, %v769
      %v771 = vpop.f32.mrf.mxu0
      %772 = vmatprep.mubr.f32.mxu0 0.0
      %773 = vmatmul.mubr.f32.gmra.mxu0 %v555
      %v774 = vpop.f32.mrf.mxu0
      %v775 = vadd.f32 0.0, %v774
      %v776 = vpop.f32.mrf.mxu0
      %777 = vmatprep.mubr.f32.mxu0 0.0
      %778 = vmatmul.mubr.f32.gmra.mxu0 %v558
      %v779 = vpop.f32.mrf.mxu0
      %v780 = vadd.f32 0.0, %v779
      %v781 = vpop.f32.mrf.mxu0
      %782 = vmatprep.mubr.f32.mxu0 0.0
      %783 = vmatmul.mubr.f32.gmra.mxu0 %v561
      %v784 = vpop.f32.mrf.mxu0
      %v785 = vadd.f32 0.0, %v784
      %v786 = vpop.f32.mrf.mxu0
      %787 = vmatprep.mubr.f32.mxu0 0.0
      %788 = vmatmul.mubr.f32.gmra.mxu0 %v564
      %v789 = vpop.f32.mrf.mxu0
      %v790 = vadd.f32 0.0, %v789
      %v791 = vpop.f32.mrf.mxu0
      %792 = vmatprep.mubr.f32.mxu0 0.0
      %793 = vmatmul.mubr.f32.gmra.mxu0 %v567
      %v794 = vpop.f32.mrf.mxu0
      %v795 = vadd.f32 0.0, %v794
      %v796 = vpop.f32.mrf.mxu0
      %797 = vdwg.mxu0
      %v799 = vsel %vm343, %v406, 0
      %v802 = vsel %vm343, %v407, 0
      %v805 = vsel %vm343, %v408, 0
      %v808 = vsel %vm343, %v409, 0
      %v811 = vsel %vm343, %v410, 0
      %v814 = vsel %vm343, %v411, 0
      %v817 = vsel %vm343, %v412, 0
      %v820 = vsel %vm343, %v413, 0
      %v823 = vsel %vm343, %v414, 0
      %v826 = vsel %vm343, %v415, 0
      %v829 = vsel %vm343, %v416, 0
      %v832 = vsel %vm343, %v417, 0
      %v835 = vsel %vm343, %v418, 0
      %v838 = vsel %vm343, %v419, 0
      %v841 = vsel %vm343, %v420, 0
      %v844 = vsel %vm343, %v421, 0
      %v847 = vsel %vm343, %v422, 0
      %v850 = vsel %vm343, %v423, 0
      %v853 = vsel %vm343, %v424, 0
      %v856 = vsel %vm343, %v425, 0
      %v859 = vsel %vm343, %v426, 0
      %v862 = vsel %vm343, %v427, 0
      %v865 = vsel %vm343, %v428, 0
      %v868 = vsel %vm343, %v429, 0
      %v871 = vsel %vm343, %v430, 0
      %v874 = vsel %vm343, %v431, 0
      %v877 = vsel %vm343, %v432, 0
      %v880 = vsel %vm343, %v433, 0
      %v883 = vsel %vm343, %v434, 0
      %v886 = vsel %vm343, %v435, 0
      %v889 = vsel %vm343, %v436, 0
      %v892 = vsel %vm343, %v437, 0
      %v895 = vsel %vm569, %v438, 0
      %897 = vmatprep.subr.mxu0 0.0
      %898 = vmatpush1.msra.mxu0 0.0
      %899 = vmatprep.subr.mxu0 0.0
      %900 = vmatpush1.msra.mxu0 0.0
      %901 = vmatprep.subr.mxu0 0.0
      %902 = vmatpush1.msra.mxu0 0.0
      %903 = vmatprep.subr.mxu0 0.0
      %904 = vmatpush1.msra.mxu0 0.0
      %905 = vmatprep.subr.mxu0 0.0
      %906 = vmatpush1.msra.mxu0 0.0
      %907 = vmatprep.subr.mxu0 0.0
      %908 = vmatpush1.msra.mxu0 0.0
      %909 = vmatprep.subr.mxu0 0.0
      %910 = vmatpush1.msra.mxu0 0.0
      %911 = vmatprep.subr.mxu0 0.0
      %912 = vmatpush1.msra.mxu0 0.0
      %913 = vmatprep.subr.mxu0 0.0
      %914 = vmatpush1.msra.mxu0 0.0
      %915 = vmatprep.subr.mxu0 0.0
      %916 = vmatpush1.msra.mxu0 0.0
      %917 = vmatprep.subr.mxu0 0.0
      %918 = vmatpush1.msra.mxu0 0.0
      %919 = vmatprep.subr.mxu0 0.0
      %920 = vmatpush1.msra.mxu0 0.0
      %921 = vmatprep.subr.mxu0 0.0
      %922 = vmatpush1.msra.mxu0 0.0
      %923 = vmatprep.subr.mxu0 0.0
      %924 = vmatpush1.msra.mxu0 0.0
      %925 = vmatprep.subr.mxu0 0.0
      %926 = vmatpush1.msra.mxu0 0.0
      %927 = vmatprep.subr.mxu0 0.0
      %928 = vmatpush1.msra.mxu0 %v895
      %929 = vmatprep.subr.mxu0 0.0
      %930 = vmatpush2.msra.mxu0 0.0
      %931 = vmatprep.subr.mxu0 0.0
      %932 = vmatpush2.msra.mxu0 0.0
      %933 = vmatprep.subr.mxu0 0.0
      %934 = vmatpush2.msra.mxu0 0.0
      %935 = vmatprep.subr.mxu0 0.0
      %936 = vmatpush2.msra.mxu0 0.0
      %937 = vmatprep.subr.mxu0 0.0
      %938 = vmatpush2.msra.mxu0 0.0
      %939 = vmatprep.subr.mxu0 0.0
      %940 = vmatpush2.msra.mxu0 0.0
      %941 = vmatprep.subr.mxu0 0.0
      %942 = vmatpush2.msra.mxu0 0.0
      %943 = vmatprep.subr.mxu0 0.0
      %944 = vmatpush2.msra.mxu0 0.0
      %945 = vmatprep.subr.mxu0 0.0
      %946 = vmatpush2.msra.mxu0 0.0
      %947 = vmatprep.subr.mxu0 0.0
      %948 = vmatpush2.msra.mxu0 0.0
      %949 = vmatprep.subr.mxu0 0.0
      %950 = vmatpush2.msra.mxu0 0.0
      %951 = vmatprep.subr.mxu0 0.0
      %952 = vmatpush2.msra.mxu0 0.0
      %953 = vmatprep.subr.mxu0 0.0
      %954 = vmatpush2.msra.mxu0 0.0
      %955 = vmatprep.subr.mxu0 0.0
      %956 = vmatpush2.msra.mxu0 0.0
      %957 = vmatprep.subr.mxu0 0.0
      %958 = vmatpush2.msra.mxu0 0.0
      %959 = vmatprep.subr.mxu0 0.0
      %960 = vmatpush2.msra.mxu0 0.0
      %961 = vmatprep.mubr.f32.mxu0 0.0
      %962 = vmatmul.mubr.f32.gmra.mxu0 %v799
      %v963 = vpop.f32.mrf.mxu0
      %v964 = vadd.f32 %v640, %v963
      %v965 = vpop.f32.mrf.mxu0
      %966 = vmatprep.mubr.f32.mxu0 0.0
      %967 = vmatmul.mubr.f32.gmra.mxu0 %v802
      %v968 = vpop.f32.mrf.mxu0
      %v969 = vadd.f32 %v645, %v968
      %v970 = vpop.f32.mrf.mxu0
      %971 = vmatprep.mubr.f32.mxu0 0.0
      %972 = vmatmul.mubr.f32.gmra.mxu0 %v805
      %v973 = vpop.f32.mrf.mxu0
      %v974 = vadd.f32 %v650, %v973
      %v975 = vpop.f32.mrf.mxu0
      %976 = vmatprep.mubr.f32.mxu0 0.0
      %977 = vmatmul.mubr.f32.gmra.mxu0 %v808
      %v978 = vpop.f32.mrf.mxu0
      %v979 = vadd.f32 %v655, %v978
      %v980 = vpop.f32.mrf.mxu0
      %981 = vmatprep.mubr.f32.mxu0 0.0
      %982 = vmatmul.mubr.f32.gmra.mxu0 %v811
      %v983 = vpop.f32.mrf.mxu0
      %v984 = vadd.f32 %v660, %v983
      %v985 = vpop.f32.mrf.mxu0
      %986 = vmatprep.mubr.f32.mxu0 0.0
      %987 = vmatmul.mubr.f32.gmra.mxu0 %v814
      %v988 = vpop.f32.mrf.mxu0
      %v989 = vadd.f32 %v665, %v988
      %v990 = vpop.f32.mrf.mxu0
      %991 = vmatprep.mubr.f32.mxu0 0.0
      %992 = vmatmul.mubr.f32.gmra.mxu0 %v817
      %v993 = vpop.f32.mrf.mxu0
      %v994 = vadd.f32 %v670, %v993
      %v995 = vpop.f32.mrf.mxu0
      %996 = vmatprep.mubr.f32.mxu0 0.0
      %997 = vmatmul.mubr.f32.gmra.mxu0 %v820
      %v998 = vpop.f32.mrf.mxu0
      %v999 = vadd.f32 %v675, %v998
      %v1000 = vpop.f32.mrf.mxu0
      %1001 = vmatprep.mubr.f32.mxu0 0.0
      %1002 = vmatmul.mubr.f32.gmra.mxu0 %v823
      %v1003 = vpop.f32.mrf.mxu0
      %v1004 = vadd.f32 %v680, %v1003
      %v1005 = vpop.f32.mrf.mxu0
      %1006 = vmatprep.mubr.f32.mxu0 0.0
      %1007 = vmatmul.mubr.f32.gmra.mxu0 %v826
      %v1008 = vpop.f32.mrf.mxu0
      %v1009 = vadd.f32 %v685, %v1008
      %v1010 = vpop.f32.mrf.mxu0
      %1011 = vmatprep.mubr.f32.mxu0 0.0
      %1012 = vmatmul.mubr.f32.gmra.mxu0 %v829
      %v1013 = vpop.f32.mrf.mxu0
      %v1014 = vadd.f32 %v690, %v1013
      %v1015 = vpop.f32.mrf.mxu0
      %1016 = vmatprep.mubr.f32.mxu0 0.0
      %1017 = vmatmul.mubr.f32.gmra.mxu0 %v832
      %v1018 = vpop.f32.mrf.mxu0
      %v1019 = vadd.f32 %v695, %v1018
      %v1020 = vpop.f32.mrf.mxu0
      %1021 = vmatprep.mubr.f32.mxu0 0.0
      %1022 = vmatmul.mubr.f32.gmra.mxu0 %v835
      %v1023 = vpop.f32.mrf.mxu0
      %v1024 = vadd.f32 %v700, %v1023
      %v1025 = vpop.f32.mrf.mxu0
      %1026 = vmatprep.mubr.f32.mxu0 0.0
      %1027 = vmatmul.mubr.f32.gmra.mxu0 %v838
      %v1028 = vpop.f32.mrf.mxu0
      %v1029 = vadd.f32 %v705, %v1028
      %v1030 = vpop.f32.mrf.mxu0
      %1031 = vmatprep.mubr.f32.mxu0 0.0
      %1032 = vmatmul.mubr.f32.gmra.mxu0 %v841
      %v1033 = vpop.f32.mrf.mxu0
      %v1034 = vadd.f32 %v710, %v1033
      %v1035 = vpop.f32.mrf.mxu0
      %1036 = vmatprep.mubr.f32.mxu0 0.0
      %1037 = vmatmul.mubr.f32.gmra.mxu0 %v844
      %v1038 = vpop.f32.mrf.mxu0
      %v1039 = vadd.f32 %v715, %v1038
      %v1040 = vpop.f32.mrf.mxu0
      %1041 = vmatprep.mubr.f32.mxu0 0.0
      %1042 = vmatmul.mubr.f32.gmra.mxu0 %v847
      %v1043 = vpop.f32.mrf.mxu0
      %v1044 = vadd.f32 %v720, %v1043
      %v1045 = vpop.f32.mrf.mxu0
      %1046 = vmatprep.mubr.f32.mxu0 0.0
      %1047 = vmatmul.mubr.f32.gmra.mxu0 %v850
      %v1048 = vpop.f32.mrf.mxu0
      %v1049 = vadd.f32 %v725, %v1048
      %v1050 = vpop.f32.mrf.mxu0
      %1051 = vmatprep.mubr.f32.mxu0 0.0
      %1052 = vmatmul.mubr.f32.gmra.mxu0 %v853
      %v1053 = vpop.f32.mrf.mxu0
      %v1054 = vadd.f32 %v730, %v1053
      %v1055 = vpop.f32.mrf.mxu0
      %1056 = vmatprep.mubr.f32.mxu0 0.0
      %1057 = vmatmul.mubr.f32.gmra.mxu0 %v856
      %v1058 = vpop.f32.mrf.mxu0
      %v1059 = vadd.f32 %v735, %v1058
      %v1060 = vpop.f32.mrf.mxu0
      %1061 = vmatprep.mubr.f32.mxu0 0.0
      %1062 = vmatmul.mubr.f32.gmra.mxu0 %v859
      %v1063 = vpop.f32.mrf.mxu0
      %v1064 = vadd.f32 %v740, %v1063
      %v1065 = vpop.f32.mrf.mxu0
      %1066 = vmatprep.mubr.f32.mxu0 0.0
      %1067 = vmatmul.mubr.f32.gmra.mxu0 %v862
      %v1068 = vpop.f32.mrf.mxu0
      %v1069 = vadd.f32 %v745, %v1068
      %v1070 = vpop.f32.mrf.mxu0
      %1071 = vmatprep.mubr.f32.mxu0 0.0
      %1072 = vmatmul.mubr.f32.gmra.mxu0 %v865
      %v1073 = vpop.f32.mrf.mxu0
      %v1074 = vadd.f32 %v750, %v1073
      %v1075 = vpop.f32.mrf.mxu0
      %1076 = vmatprep.mubr.f32.mxu0 0.0
      %1077 = vmatmul.mubr.f32.gmra.mxu0 %v868
      %v1078 = vpop.f32.mrf.mxu0
      %v1079 = vadd.f32 %v755, %v1078
      %v1080 = vpop.f32.mrf.mxu0
      %1081 = vmatprep.mubr.f32.mxu0 0.0
      %1082 = vmatmul.mubr.f32.gmra.mxu0 %v871
      %v1083 = vpop.f32.mrf.mxu0
      %v1084 = vadd.f32 %v760, %v1083
      %v1085 = vpop.f32.mrf.mxu0
      %1086 = vmatprep.mubr.f32.mxu0 0.0
      %1087 = vmatmul.mubr.f32.gmra.mxu0 %v874
      %v1088 = vpop.f32.mrf.mxu0
      %v1089 = vadd.f32 %v765, %v1088
      %v1090 = vpop.f32.mrf.mxu0
      %1091 = vmatprep.mubr.f32.mxu0 0.0
      %1092 = vmatmul.mubr.f32.gmra.mxu0 %v877
      %v1093 = vpop.f32.mrf.mxu0
      %v1094 = vadd.f32 %v770, %v1093
      %v1095 = vpop.f32.mrf.mxu0
      %1096 = vmatprep.mubr.f32.mxu0 0.0
      %1097 = vmatmul.mubr.f32.gmra.mxu0 %v880
      %v1098 = vpop.f32.mrf.mxu0
      %v1099 = vadd.f32 %v775, %v1098
      %v1100 = vpop.f32.mrf.mxu0
      %1101 = vmatprep.mubr.f32.mxu0 0.0
      %1102 = vmatmul.mubr.f32.gmra.mxu0 %v883
      %v1103 = vpop.f32.mrf.mxu0
      %v1104 = vadd.f32 %v780, %v1103
      %v1105 = vpop.f32.mrf.mxu0
      %1106 = vmatprep.mubr.f32.mxu0 0.0
      %1107 = vmatmul.mubr.f32.gmra.mxu0 %v886
      %v1108 = vpop.f32.mrf.mxu0
      %v1109 = vadd.f32 %v785, %v1108
      %v1110 = vpop.f32.mrf.mxu0
      %1111 = vmatprep.mubr.f32.mxu0 0.0
      %1112 = vmatmul.mubr.f32.gmra.mxu0 %v889
      %v1113 = vpop.f32.mrf.mxu0
      %v1114 = vadd.f32 %v790, %v1113
      %v1115 = vpop.f32.mrf.mxu0
      %1116 = vmatprep.mubr.f32.mxu0 0.0
      %1117 = vmatmul.mubr.f32.gmra.mxu0 %v892
      %v1118 = vpop.f32.mrf.mxu0
      %v1119 = vadd.f32 %v795, %v1118
      %v1120 = vpop.f32.mrf.mxu0
      %1121 = vdwg.mxu0
      %v1122 = vld [vmem:[#allocation2 + $0x2] sm:$0xff]
      %v1123 = vld [vmem:[#allocation2 + $0xa] sm:$0xff]
      %v1124 = vld [vmem:[#allocation2 + $0x1a] sm:$0xff]
      %v1125 = vld [vmem:[#allocation2 + $0x22] sm:$0xff]
      %v1126 = vld [vmem:[#allocation2 + $0x32] sm:$0xff]
      %v1127 = vld [vmem:[#allocation2 + $0x3a] sm:$0xff]
      %v1128 = vld [vmem:[#allocation2 + $0x4a] sm:$0xff]
      %v1129 = vld [vmem:[#allocation2 + $0x52] sm:$0xff]
      %v1130 = vld [vmem:[#allocation2 + $0x62] sm:$0xff]
      %v1131 = vld [vmem:[#allocation2 + $0x6a] sm:$0xff]
      %v1132 = vld [vmem:[#allocation2 + $0x7a] sm:$0xff]
      %v1133 = vld [vmem:[#allocation2 + $0x82] sm:$0xff]
      %v1134 = vld [vmem:[#allocation2 + $0x92] sm:$0xff]
      %v1135 = vld [vmem:[#allocation2 + $0x9a] sm:$0xff]
      %v1136 = vld [vmem:[#allocation2 + $0xaa] sm:$0xff]
      %v1137 = vld [vmem:[#allocation2 + $0xb2] sm:$0xff]
      %v1138 = vld [vmem:[#allocation2 + $0xc2] sm:$0xff]
      %v1139 = vld [vmem:[#allocation2 + $0xca] sm:$0xff]
      %v1140 = vld [vmem:[#allocation2 + $0xda] sm:$0xff]
      %v1141 = vld [vmem:[#allocation2 + $0xe2] sm:$0xff]
      %v1142 = vld [vmem:[#allocation2 + $0xf2] sm:$0xff]
      %v1143 = vld [vmem:[#allocation2 + $0xfa] sm:$0xff]
      %v1144 = vld [vmem:[#allocation2 + $0x10a] sm:$0xff]
      %v1145 = vld [vmem:[#allocation2 + $0x112] sm:$0xff]
      %v1146 = vld [vmem:[#allocation2 + $0x122] sm:$0xff]
      %v1147 = vld [vmem:[#allocation2 + $0x12a] sm:$0xff]
      %v1148 = vld [vmem:[#allocation2 + $0x13a] sm:$0xff]
      %v1149 = vld [vmem:[#allocation2 + $0x142] sm:$0xff]
      %v1150 = vld [vmem:[#allocation2 + $0x152] sm:$0xff]
      %v1151 = vld [vmem:[#allocation2 + $0x15a] sm:$0xff]
      %v1152 = vld [vmem:[#allocation2 + $0x16a] sm:$0xff]
      %v1153 = vld [vmem:[#allocation2 + $0x172] sm:$0xff]
      %s1154 = scalar_lea.vmem %s2, 8
      %v1155 = vld [vmem:[%s1154] sm:$0xf]
      %v1157 = vsel %vm343, %v1122, 0
      %v1160 = vsel %vm343, %v1123, 0
      %v1163 = vsel %vm343, %v1124, 0
      %v1166 = vsel %vm343, %v1125, 0
      %v1169 = vsel %vm343, %v1126, 0
      %v1172 = vsel %vm343, %v1127, 0
      %v1175 = vsel %vm343, %v1128, 0
      %v1178 = vsel %vm343, %v1129, 0
      %v1181 = vsel %vm343, %v1130, 0
      %v1184 = vsel %vm343, %v1131, 0
      %v1187 = vsel %vm343, %v1132, 0
      %v1190 = vsel %vm343, %v1133, 0
      %v1193 = vsel %vm343, %v1134, 0
      %v1196 = vsel %vm343, %v1135, 0
      %v1199 = vsel %vm343, %v1136, 0
      %v1202 = vsel %vm343, %v1137, 0
      %v1205 = vsel %vm343, %v1138, 0
      %v1208 = vsel %vm343, %v1139, 0
      %v1211 = vsel %vm343, %v1140, 0
      %v1214 = vsel %vm343, %v1141, 0
      %v1217 = vsel %vm343, %v1142, 0
      %v1220 = vsel %vm343, %v1143, 0
      %v1223 = vsel %vm343, %v1144, 0
      %v1226 = vsel %vm343, %v1145, 0
      %v1229 = vsel %vm343, %v1146, 0
      %v1232 = vsel %vm343, %v1147, 0
      %v1235 = vsel %vm343, %v1148, 0
      %v1238 = vsel %vm343, %v1149, 0
      %v1241 = vsel %vm343, %v1150, 0
      %v1244 = vsel %vm343, %v1151, 0
      %v1247 = vsel %vm343, %v1152, 0
      %v1250 = vsel %vm343, %v1153, 0
      %v1253 = vsel %vm569, %v1155, 0
      %1255 = vmatprep.subr.mxu0 0.0
      %1256 = vmatpush1.msra.mxu0 0.0
      %1257 = vmatprep.subr.mxu0 0.0
      %1258 = vmatpush1.msra.mxu0 0.0
      %1259 = vmatprep.subr.mxu0 0.0
      %1260 = vmatpush1.msra.mxu0 0.0
      %1261 = vmatprep.subr.mxu0 0.0
      %1262 = vmatpush1.msra.mxu0 0.0
      %1263 = vmatprep.subr.mxu0 0.0
      %1264 = vmatpush1.msra.mxu0 0.0
      %1265 = vmatprep.subr.mxu0 0.0
      %1266 = vmatpush1.msra.mxu0 0.0
      %1267 = vmatprep.subr.mxu0 0.0
      %1268 = vmatpush1.msra.mxu0 0.0
      %1269 = vmatprep.subr.mxu0 0.0
      %1270 = vmatpush1.msra.mxu0 0.0
      %1271 = vmatprep.subr.mxu0 0.0
      %1272 = vmatpush1.msra.mxu0 0.0
      %1273 = vmatprep.subr.mxu0 0.0
      %1274 = vmatpush1.msra.mxu0 0.0
      %1275 = vmatprep.subr.mxu0 0.0
      %1276 = vmatpush1.msra.mxu0 0.0
      %1277 = vmatprep.subr.mxu0 0.0
      %1278 = vmatpush1.msra.mxu0 0.0
      %1279 = vmatprep.subr.mxu0 0.0
      %1280 = vmatpush1.msra.mxu0 0.0
      %1281 = vmatprep.subr.mxu0 0.0
      %1282 = vmatpush1.msra.mxu0 0.0
      %1283 = vmatprep.subr.mxu0 0.0
      %1284 = vmatpush1.msra.mxu0 0.0
      %1285 = vmatprep.subr.mxu0 0.0
      %1286 = vmatpush1.msra.mxu0 %v1253
      %1287 = vmatprep.subr.mxu0 0.0
      %1288 = vmatpush2.msra.mxu0 0.0
      %1289 = vmatprep.subr.mxu0 0.0
      %1290 = vmatpush2.msra.mxu0 0.0
      %1291 = vmatprep.subr.mxu0 0.0
      %1292 = vmatpush2.msra.mxu0 0.0
      %1293 = vmatprep.subr.mxu0 0.0
      %1294 = vmatpush2.msra.mxu0 0.0
      %1295 = vmatprep.subr.mxu0 0.0
      %1296 = vmatpush2.msra.mxu0 0.0
      %1297 = vmatprep.subr.mxu0 0.0
      %1298 = vmatpush2.msra.mxu0 0.0
      %1299 = vmatprep.subr.mxu0 0.0
      %1300 = vmatpush2.msra.mxu0 0.0
      %1301 = vmatprep.subr.mxu0 0.0
      %1302 = vmatpush2.msra.mxu0 0.0
      %1303 = vmatprep.subr.mxu0 0.0
      %1304 = vmatpush2.msra.mxu0 0.0
      %1305 = vmatprep.subr.mxu0 0.0
      %1306 = vmatpush2.msra.mxu0 0.0
      %1307 = vmatprep.subr.mxu0 0.0
      %1308 = vmatpush2.msra.mxu0 0.0
      %1309 = vmatprep.subr.mxu0 0.0
      %1310 = vmatpush2.msra.mxu0 0.0
      %1311 = vmatprep.subr.mxu0 0.0
      %1312 = vmatpush2.msra.mxu0 0.0
      %1313 = vmatprep.subr.mxu0 0.0
      %1314 = vmatpush2.msra.mxu0 0.0
      %1315 = vmatprep.subr.mxu0 0.0
      %1316 = vmatpush2.msra.mxu0 0.0
      %1317 = vmatprep.subr.mxu0 0.0
      %1318 = vmatpush2.msra.mxu0 0.0
      %1319 = vmatprep.mubr.f32.mxu0 0.0
      %1320 = vmatmul.mubr.f32.gmra.mxu0 %v1157
      %v1321 = vpop.f32.mrf.mxu0
      %v1322 = vadd.f32 0.0, %v1321
      %v1323 = vpop.f32.mrf.mxu0
      %1324 = vmatprep.mubr.f32.mxu0 0.0
      %1325 = vmatmul.mubr.f32.gmra.mxu0 %v1160
      %v1326 = vpop.f32.mrf.mxu0
      %v1327 = vadd.f32 0.0, %v1326
      %v1328 = vpop.f32.mrf.mxu0
      %1329 = vmatprep.mubr.f32.mxu0 0.0
      %1330 = vmatmul.mubr.f32.gmra.mxu0 %v1163
      %v1331 = vpop.f32.mrf.mxu0
      %v1332 = vadd.f32 0.0, %v1331
      %v1333 = vpop.f32.mrf.mxu0
      %1334 = vmatprep.mubr.f32.mxu0 0.0
      %1335 = vmatmul.mubr.f32.gmra.mxu0 %v1166
      %v1336 = vpop.f32.mrf.mxu0
      %v1337 = vadd.f32 0.0, %v1336
      %v1338 = vpop.f32.mrf.mxu0
      %1339 = vmatprep.mubr.f32.mxu0 0.0
      %1340 = vmatmul.mubr.f32.gmra.mxu0 %v1169
      %v1341 = vpop.f32.mrf.mxu0
      %v1342 = vadd.f32 0.0, %v1341
      %v1343 = vpop.f32.mrf.mxu0
      %1344 = vmatprep.mubr.f32.mxu0 0.0
      %1345 = vmatmul.mubr.f32.gmra.mxu0 %v1172
      %v1346 = vpop.f32.mrf.mxu0
      %v1347 = vadd.f32 0.0, %v1346
      %v1348 = vpop.f32.mrf.mxu0
      %1349 = vmatprep.mubr.f32.mxu0 0.0
      %1350 = vmatmul.mubr.f32.gmra.mxu0 %v1175
      %v1351 = vpop.f32.mrf.mxu0
      %v1352 = vadd.f32 0.0, %v1351
      %v1353 = vpop.f32.mrf.mxu0
      %1354 = vmatprep.mubr.f32.mxu0 0.0
      %1355 = vmatmul.mubr.f32.gmra.mxu0 %v1178
      %v1356 = vpop.f32.mrf.mxu0
      %v1357 = vadd.f32 0.0, %v1356
      %v1358 = vpop.f32.mrf.mxu0
      %1359 = vmatprep.mubr.f32.mxu0 0.0
      %1360 = vmatmul.mubr.f32.gmra.mxu0 %v1181
      %v1361 = vpop.f32.mrf.mxu0
      %v1362 = vadd.f32 0.0, %v1361
      %v1363 = vpop.f32.mrf.mxu0
      %1364 = vmatprep.mubr.f32.mxu0 0.0
      %1365 = vmatmul.mubr.f32.gmra.mxu0 %v1184
      %v1366 = vpop.f32.mrf.mxu0
      %v1367 = vadd.f32 0.0, %v1366
      %v1368 = vpop.f32.mrf.mxu0
      %1369 = vmatprep.mubr.f32.mxu0 0.0
      %1370 = vmatmul.mubr.f32.gmra.mxu0 %v1187
      %v1371 = vpop.f32.mrf.mxu0
      %v1372 = vadd.f32 0.0, %v1371
      %v1373 = vpop.f32.mrf.mxu0
      %1374 = vmatprep.mubr.f32.mxu0 0.0
      %1375 = vmatmul.mubr.f32.gmra.mxu0 %v1190
      %v1376 = vpop.f32.mrf.mxu0
      %v1377 = vadd.f32 0.0, %v1376
      %v1378 = vpop.f32.mrf.mxu0
      %1379 = vmatprep.mubr.f32.mxu0 0.0
      %1380 = vmatmul.mubr.f32.gmra.mxu0 %v1193
      %v1381 = vpop.f32.mrf.mxu0
      %v1382 = vadd.f32 0.0, %v1381
      %v1383 = vpop.f32.mrf.mxu0
      %1384 = vmatprep.mubr.f32.mxu0 0.0
      %1385 = vmatmul.mubr.f32.gmra.mxu0 %v1196
      %v1386 = vpop.f32.mrf.mxu0
      %v1387 = vadd.f32 0.0, %v1386
      %v1388 = vpop.f32.mrf.mxu0
      %1389 = vmatprep.mubr.f32.mxu0 0.0
      %1390 = vmatmul.mubr.f32.gmra.mxu0 %v1199
      %v1391 = vpop.f32.mrf.mxu0
      %v1392 = vadd.f32 0.0, %v1391
      %v1393 = vpop.f32.mrf.mxu0
      %1394 = vmatprep.mubr.f32.mxu0 0.0
      %1395 = vmatmul.mubr.f32.gmra.mxu0 %v1202
      %v1396 = vpop.f32.mrf.mxu0
      %v1397 = vadd.f32 0.0, %v1396
      %v1398 = vpop.f32.mrf.mxu0
      %1399 = vmatprep.mubr.f32.mxu0 0.0
      %1400 = vmatmul.mubr.f32.gmra.mxu0 %v1205
      %v1401 = vpop.f32.mrf.mxu0
      %v1402 = vadd.f32 0.0, %v1401
      %v1403 = vpop.f32.mrf.mxu0
      %1404 = vmatprep.mubr.f32.mxu0 0.0
      %1405 = vmatmul.mubr.f32.gmra.mxu0 %v1208
      %v1406 = vpop.f32.mrf.mxu0
      %v1407 = vadd.f32 0.0, %v1406
      %v1408 = vpop.f32.mrf.mxu0
      %1409 = vmatprep.mubr.f32.mxu0 0.0
      %1410 = vmatmul.mubr.f32.gmra.mxu0 %v1211
      %v1411 = vpop.f32.mrf.mxu0
      %v1412 = vadd.f32 0.0, %v1411
      %v1413 = vpop.f32.mrf.mxu0
      %1414 = vmatprep.mubr.f32.mxu0 0.0
      %1415 = vmatmul.mubr.f32.gmra.mxu0 %v1214
      %v1416 = vpop.f32.mrf.mxu0
      %v1417 = vadd.f32 0.0, %v1416
      %v1418 = vpop.f32.mrf.mxu0
      %1419 = vmatprep.mubr.f32.mxu0 0.0
      %1420 = vmatmul.mubr.f32.gmra.mxu0 %v1217
      %v1421 = vpop.f32.mrf.mxu0
      %v1422 = vadd.f32 0.0, %v1421
      %v1423 = vpop.f32.mrf.mxu0
      %1424 = vmatprep.mubr.f32.mxu0 0.0
      %1425 = vmatmul.mubr.f32.gmra.mxu0 %v1220
      %v1426 = vpop.f32.mrf.mxu0
      %v1427 = vadd.f32 0.0, %v1426
      %v1428 = vpop.f32.mrf.mxu0
      %1429 = vmatprep.mubr.f32.mxu0 0.0
      %1430 = vmatmul.mubr.f32.gmra.mxu0 %v1223
      %v1431 = vpop.f32.mrf.mxu0
      %v1432 = vadd.f32 0.0, %v1431
      %v1433 = vpop.f32.mrf.mxu0
      %1434 = vmatprep.mubr.f32.mxu0 0.0
      %1435 = vmatmul.mubr.f32.gmra.mxu0 %v1226
      %v1436 = vpop.f32.mrf.mxu0
      %v1437 = vadd.f32 0.0, %v1436
      %v1438 = vpop.f32.mrf.mxu0
      %1439 = vmatprep.mubr.f32.mxu0 0.0
      %1440 = vmatmul.mubr.f32.gmra.mxu0 %v1229
      %v1441 = vpop.f32.mrf.mxu0
      %v1442 = vadd.f32 0.0, %v1441
      %v1443 = vpop.f32.mrf.mxu0
      %1444 = vmatprep.mubr.f32.mxu0 0.0
      %1445 = vmatmul.mubr.f32.gmra.mxu0 %v1232
      %v1446 = vpop.f32.mrf.mxu0
      %v1447 = vadd.f32 0.0, %v1446
      %v1448 = vpop.f32.mrf.mxu0
      %1449 = vmatprep.mubr.f32.mxu0 0.0
      %1450 = vmatmul.mubr.f32.gmra.mxu0 %v1235
      %v1451 = vpop.f32.mrf.mxu0
      %v1452 = vadd.f32 0.0, %v1451
      %v1453 = vpop.f32.mrf.mxu0
      %1454 = vmatprep.mubr.f32.mxu0 0.0
      %1455 = vmatmul.mubr.f32.gmra.mxu0 %v1238
      %v1456 = vpop.f32.mrf.mxu0
      %v1457 = vadd.f32 0.0, %v1456
      %v1458 = vpop.f32.mrf.mxu0
      %1459 = vmatprep.mubr.f32.mxu0 0.0
      %1460 = vmatmul.mubr.f32.gmra.mxu0 %v1241
      %v1461 = vpop.f32.mrf.mxu0
      %v1462 = vadd.f32 0.0, %v1461
      %v1463 = vpop.f32.mrf.mxu0
      %1464 = vmatprep.mubr.f32.mxu0 0.0
      %1465 = vmatmul.mubr.f32.gmra.mxu0 %v1244
      %v1466 = vpop.f32.mrf.mxu0
      %v1467 = vadd.f32 0.0, %v1466
      %v1468 = vpop.f32.mrf.mxu0
      %1469 = vmatprep.mubr.f32.mxu0 0.0
      %1470 = vmatmul.mubr.f32.gmra.mxu0 %v1247
      %v1471 = vpop.f32.mrf.mxu0
      %v1472 = vadd.f32 0.0, %v1471
      %v1473 = vpop.f32.mrf.mxu0
      %1474 = vmatprep.mubr.f32.mxu0 0.0
      %1475 = vmatmul.mubr.f32.gmra.mxu0 %v1250
      %v1476 = vpop.f32.mrf.mxu0
      %v1477 = vadd.f32 0.0, %v1476
      %v1478 = vpop.f32.mrf.mxu0
      %1479 = vdwg.mxu0
      %v1480 = vadd.f32 %v964, %v1322
      %v1481 = vadd.f32 %v969, %v1327
      %v1482 = vadd.f32 %v974, %v1332
      %v1483 = vadd.f32 %v979, %v1337
      %v1484 = vadd.f32 %v984, %v1342
      %v1485 = vadd.f32 %v989, %v1347
      %v1486 = vadd.f32 %v994, %v1352
      %v1487 = vadd.f32 %v999, %v1357
      %v1488 = vadd.f32 %v1004, %v1362
      %v1489 = vadd.f32 %v1009, %v1367
      %v1490 = vadd.f32 %v1014, %v1372
      %v1491 = vadd.f32 %v1019, %v1377
      %v1492 = vadd.f32 %v1024, %v1382
      %v1493 = vadd.f32 %v1029, %v1387
      %v1494 = vadd.f32 %v1034, %v1392
      %v1495 = vadd.f32 %v1039, %v1397
      %v1496 = vadd.f32 %v1044, %v1402
      %v1497 = vadd.f32 %v1049, %v1407
      %v1498 = vadd.f32 %v1054, %v1412
      %v1499 = vadd.f32 %v1059, %v1417
      %v1500 = vadd.f32 %v1064, %v1422
      %v1501 = vadd.f32 %v1069, %v1427
      %v1502 = vadd.f32 %v1074, %v1432
      %v1503 = vadd.f32 %v1079, %v1437
      %v1504 = vadd.f32 %v1084, %v1442
      %v1505 = vadd.f32 %v1089, %v1447
      %v1506 = vadd.f32 %v1094, %v1452
      %v1507 = vadd.f32 %v1099, %v1457
      %v1508 = vadd.f32 %v1104, %v1462
      %v1509 = vadd.f32 %v1109, %v1467
      %v1510 = vadd.f32 %v1114, %v1472
      %v1511 = vadd.f32 %v1119, %v1477
      %s1512 = scalar_lea.vmem [#allocation2], 24
      %v1513 = vld [vmem:[%s1512] sm:$0xff]
      %v1514 = vld [vmem:[%s1512 + $0x8] sm:$0xff]
      %v1515 = vld [vmem:[%s1512 + $0x18] sm:$0xff]
      %v1516 = vld [vmem:[%s1512 + $0x20] sm:$0xff]
      %v1517 = vld [vmem:[%s1512 + $0x30] sm:$0xff]
      %v1518 = vld [vmem:[%s1512 + $0x38] sm:$0xff]
      %v1519 = vld [vmem:[%s1512 + $0x48] sm:$0xff]
      %v1520 = vld [vmem:[%s1512 + $0x50] sm:$0xff]
      %v1521 = vld [vmem:[%s1512 + $0x60] sm:$0xff]
      %v1522 = vld [vmem:[%s1512 + $0x68] sm:$0xff]
      %v1523 = vld [vmem:[%s1512 + $0x78] sm:$0xff]
      %v1524 = vld [vmem:[%s1512 + $0x80] sm:$0xff]
      %v1525 = vld [vmem:[%s1512 + $0x90] sm:$0xff]
      %v1526 = vld [vmem:[%s1512 + $0x98] sm:$0xff]
      %v1527 = vld [vmem:[%s1512 + $0xa8] sm:$0xff]
      %v1528 = vld [vmem:[%s1512 + $0xb0] sm:$0xff]
      %v1529 = vld [vmem:[%s1512 + $0xc0] sm:$0xff]
      %v1530 = vld [vmem:[%s1512 + $0xc8] sm:$0xff]
      %v1531 = vld [vmem:[%s1512 + $0xd8] sm:$0xff]
      %v1532 = vld [vmem:[%s1512 + $0xe0] sm:$0xff]
      %v1533 = vld [vmem:[%s1512 + $0xf0] sm:$0xff]
      %v1534 = vld [vmem:[%s1512 + $0xf8] sm:$0xff]
      %v1535 = vld [vmem:[%s1512 + $0x108] sm:$0xff]
      %v1536 = vld [vmem:[%s1512 + $0x110] sm:$0xff]
      %v1537 = vld [vmem:[%s1512 + $0x120] sm:$0xff]
      %v1538 = vld [vmem:[%s1512 + $0x128] sm:$0xff]
      %v1539 = vld [vmem:[%s1512 + $0x138] sm:$0xff]
      %v1540 = vld [vmem:[%s1512 + $0x140] sm:$0xff]
      %v1541 = vld [vmem:[%s1512 + $0x150] sm:$0xff]
      %v1542 = vld [vmem:[%s1512 + $0x158] sm:$0xff]
      %v1543 = vld [vmem:[%s1512 + $0x168] sm:$0xff]
      %v1544 = vld [vmem:[%s1512 + $0x170] sm:$0xff]
      %s1545 = scalar_lea.vmem %s2, 12
      %v1546 = vld [vmem:[%s1545] sm:$0xf]
      %v1548 = vsel %vm343, %v1513, 0
      %v1551 = vsel %vm343, %v1514, 0
      %v1554 = vsel %vm343, %v1515, 0
      %v1557 = vsel %vm343, %v1516, 0
      %v1560 = vsel %vm343, %v1517, 0
      %v1563 = vsel %vm343, %v1518, 0
      %v1566 = vsel %vm343, %v1519, 0
      %v1569 = vsel %vm343, %v1520, 0
      %v1572 = vsel %vm343, %v1521, 0
      %v1575 = vsel %vm343, %v1522, 0
      %v1578 = vsel %vm343, %v1523, 0
      %v1581 = vsel %vm343, %v1524, 0
      %v1584 = vsel %vm343, %v1525, 0
      %v1587 = vsel %vm343, %v1526, 0
      %v1590 = vsel %vm343, %v1527, 0
      %v1593 = vsel %vm343, %v1528, 0
      %v1596 = vsel %vm343, %v1529, 0
      %v1599 = vsel %vm343, %v1530, 0
      %v1602 = vsel %vm343, %v1531, 0
      %v1605 = vsel %vm343, %v1532, 0
      %v1608 = vsel %vm343, %v1533, 0
      %v1611 = vsel %vm343, %v1534, 0
      %v1614 = vsel %vm343, %v1535, 0
      %v1617 = vsel %vm343, %v1536, 0
      %v1620 = vsel %vm343, %v1537, 0
      %v1623 = vsel %vm343, %v1538, 0
      %v1626 = vsel %vm343, %v1539, 0
      %v1629 = vsel %vm343, %v1540, 0
      %v1632 = vsel %vm343, %v1541, 0
      %v1635 = vsel %vm343, %v1542, 0
      %v1638 = vsel %vm343, %v1543, 0
      %v1641 = vsel %vm343, %v1544, 0
      %v1644 = vsel %vm569, %v1546, 0
      %1646 = vmatprep.subr.mxu0 0.0
      %1647 = vmatpush1.msra.mxu0 0.0
      %1648 = vmatprep.subr.mxu0 0.0
      %1649 = vmatpush1.msra.mxu0 0.0
      %1650 = vmatprep.subr.mxu0 0.0
      %1651 = vmatpush1.msra.mxu0 0.0
      %1652 = vmatprep.subr.mxu0 0.0
      %1653 = vmatpush1.msra.mxu0 0.0
      %1654 = vmatprep.subr.mxu0 0.0
      %1655 = vmatpush1.msra.mxu0 0.0
      %1656 = vmatprep.subr.mxu0 0.0
      %1657 = vmatpush1.msra.mxu0 0.0
      %1658 = vmatprep.subr.mxu0 0.0
      %1659 = vmatpush1.msra.mxu0 0.0
      %1660 = vmatprep.subr.mxu0 0.0
      %1661 = vmatpush1.msra.mxu0 0.0
      %1662 = vmatprep.subr.mxu0 0.0
      %1663 = vmatpush1.msra.mxu0 0.0
      %1664 = vmatprep.subr.mxu0 0.0
      %1665 = vmatpush1.msra.mxu0 0.0
      %1666 = vmatprep.subr.mxu0 0.0
      %1667 = vmatpush1.msra.mxu0 0.0
      %1668 = vmatprep.subr.mxu0 0.0
      %1669 = vmatpush1.msra.mxu0 0.0
      %1670 = vmatprep.subr.mxu0 0.0
      %1671 = vmatpush1.msra.mxu0 0.0
      %1672 = vmatprep.subr.mxu0 0.0
      %1673 = vmatpush1.msra.mxu0 0.0
      %1674 = vmatprep.subr.mxu0 0.0
      %1675 = vmatpush1.msra.mxu0 0.0
      %1676 = vmatprep.subr.mxu0 0.0
      %1677 = vmatpush1.msra.mxu0 %v1644
      %1678 = vmatprep.subr.mxu0 0.0
      %1679 = vmatpush2.msra.mxu0 0.0
      %1680 = vmatprep.subr.mxu0 0.0
      %1681 = vmatpush2.msra.mxu0 0.0
      %1682 = vmatprep.subr.mxu0 0.0
      %1683 = vmatpush2.msra.mxu0 0.0
      %1684 = vmatprep.subr.mxu0 0.0
      %1685 = vmatpush2.msra.mxu0 0.0
      %1686 = vmatprep.subr.mxu0 0.0
      %1687 = vmatpush2.msra.mxu0 0.0
      %1688 = vmatprep.subr.mxu0 0.0
      %1689 = vmatpush2.msra.mxu0 0.0
      %1690 = vmatprep.subr.mxu0 0.0
      %1691 = vmatpush2.msra.mxu0 0.0
      %1692 = vmatprep.subr.mxu0 0.0
      %1693 = vmatpush2.msra.mxu0 0.0
      %1694 = vmatprep.subr.mxu0 0.0
      %1695 = vmatpush2.msra.mxu0 0.0
      %1696 = vmatprep.subr.mxu0 0.0
      %1697 = vmatpush2.msra.mxu0 0.0
      %1698 = vmatprep.subr.mxu0 0.0
      %1699 = vmatpush2.msra.mxu0 0.0
      %1700 = vmatprep.subr.mxu0 0.0
      %1701 = vmatpush2.msra.mxu0 0.0
      %1702 = vmatprep.subr.mxu0 0.0
      %1703 = vmatpush2.msra.mxu0 0.0
      %1704 = vmatprep.subr.mxu0 0.0
      %1705 = vmatpush2.msra.mxu0 0.0
      %1706 = vmatprep.subr.mxu0 0.0
      %1707 = vmatpush2.msra.mxu0 0.0
      %1708 = vmatprep.subr.mxu0 0.0
      %1709 = vmatpush2.msra.mxu0 0.0
      %1710 = vmatprep.mubr.f32.mxu0 0.0
      %1711 = vmatmul.mubr.f32.gmra.mxu0 %v1548
      %v1712 = vpop.f32.mrf.mxu0
      %v1713 = vadd.f32 0.0, %v1712
      %v1714 = vpop.f32.mrf.mxu0
      %1715 = vmatprep.mubr.f32.mxu0 0.0
      %1716 = vmatmul.mubr.f32.gmra.mxu0 %v1551
      %v1717 = vpop.f32.mrf.mxu0
      %v1718 = vadd.f32 0.0, %v1717
      %v1719 = vpop.f32.mrf.mxu0
      %1720 = vmatprep.mubr.f32.mxu0 0.0
      %1721 = vmatmul.mubr.f32.gmra.mxu0 %v1554
      %v1722 = vpop.f32.mrf.mxu0
      %v1723 = vadd.f32 0.0, %v1722
      %v1724 = vpop.f32.mrf.mxu0
      %1725 = vmatprep.mubr.f32.mxu0 0.0
      %1726 = vmatmul.mubr.f32.gmra.mxu0 %v1557
      %v1727 = vpop.f32.mrf.mxu0
      %v1728 = vadd.f32 0.0, %v1727
      %v1729 = vpop.f32.mrf.mxu0
      %1730 = vmatprep.mubr.f32.mxu0 0.0
      %1731 = vmatmul.mubr.f32.gmra.mxu0 %v1560
      %v1732 = vpop.f32.mrf.mxu0
      %v1733 = vadd.f32 0.0, %v1732
      %v1734 = vpop.f32.mrf.mxu0
      %1735 = vmatprep.mubr.f32.mxu0 0.0
      %1736 = vmatmul.mubr.f32.gmra.mxu0 %v1563
      %v1737 = vpop.f32.mrf.mxu0
      %v1738 = vadd.f32 0.0, %v1737
      %v1739 = vpop.f32.mrf.mxu0
      %1740 = vmatprep.mubr.f32.mxu0 0.0
      %1741 = vmatmul.mubr.f32.gmra.mxu0 %v1566
      %v1742 = vpop.f32.mrf.mxu0
      %v1743 = vadd.f32 0.0, %v1742
      %v1744 = vpop.f32.mrf.mxu0
      %1745 = vmatprep.mubr.f32.mxu0 0.0
      %1746 = vmatmul.mubr.f32.gmra.mxu0 %v1569
      %v1747 = vpop.f32.mrf.mxu0
      %v1748 = vadd.f32 0.0, %v1747
      %v1749 = vpop.f32.mrf.mxu0
      %1750 = vmatprep.mubr.f32.mxu0 0.0
      %1751 = vmatmul.mubr.f32.gmra.mxu0 %v1572
      %v1752 = vpop.f32.mrf.mxu0
      %v1753 = vadd.f32 0.0, %v1752
      %v1754 = vpop.f32.mrf.mxu0
      %1755 = vmatprep.mubr.f32.mxu0 0.0
      %1756 = vmatmul.mubr.f32.gmra.mxu0 %v1575
      %v1757 = vpop.f32.mrf.mxu0
      %v1758 = vadd.f32 0.0, %v1757
      %v1759 = vpop.f32.mrf.mxu0
      %1760 = vmatprep.mubr.f32.mxu0 0.0
      %1761 = vmatmul.mubr.f32.gmra.mxu0 %v1578
      %v1762 = vpop.f32.mrf.mxu0
      %v1763 = vadd.f32 0.0, %v1762
      %v1764 = vpop.f32.mrf.mxu0
      %1765 = vmatprep.mubr.f32.mxu0 0.0
      %1766 = vmatmul.mubr.f32.gmra.mxu0 %v1581
      %v1767 = vpop.f32.mrf.mxu0
      %v1768 = vadd.f32 0.0, %v1767
      %v1769 = vpop.f32.mrf.mxu0
      %1770 = vmatprep.mubr.f32.mxu0 0.0
      %1771 = vmatmul.mubr.f32.gmra.mxu0 %v1584
      %v1772 = vpop.f32.mrf.mxu0
      %v1773 = vadd.f32 0.0, %v1772
      %v1774 = vpop.f32.mrf.mxu0
      %1775 = vmatprep.mubr.f32.mxu0 0.0
      %1776 = vmatmul.mubr.f32.gmra.mxu0 %v1587
      %v1777 = vpop.f32.mrf.mxu0
      %v1778 = vadd.f32 0.0, %v1777
      %v1779 = vpop.f32.mrf.mxu0
      %1780 = vmatprep.mubr.f32.mxu0 0.0
      %1781 = vmatmul.mubr.f32.gmra.mxu0 %v1590
      %v1782 = vpop.f32.mrf.mxu0
      %v1783 = vadd.f32 0.0, %v1782
      %v1784 = vpop.f32.mrf.mxu0
      %1785 = vmatprep.mubr.f32.mxu0 0.0
      %1786 = vmatmul.mubr.f32.gmra.mxu0 %v1593
      %v1787 = vpop.f32.mrf.mxu0
      %v1788 = vadd.f32 0.0, %v1787
      %v1789 = vpop.f32.mrf.mxu0
      %1790 = vmatprep.mubr.f32.mxu0 0.0
      %1791 = vmatmul.mubr.f32.gmra.mxu0 %v1596
      %v1792 = vpop.f32.mrf.mxu0
      %v1793 = vadd.f32 0.0, %v1792
      %v1794 = vpop.f32.mrf.mxu0
      %1795 = vmatprep.mubr.f32.mxu0 0.0
      %1796 = vmatmul.mubr.f32.gmra.mxu0 %v1599
      %v1797 = vpop.f32.mrf.mxu0
      %v1798 = vadd.f32 0.0, %v1797
      %v1799 = vpop.f32.mrf.mxu0
      %1800 = vmatprep.mubr.f32.mxu0 0.0
      %1801 = vmatmul.mubr.f32.gmra.mxu0 %v1602
      %v1802 = vpop.f32.mrf.mxu0
      %v1803 = vadd.f32 0.0, %v1802
      %v1804 = vpop.f32.mrf.mxu0
      %1805 = vmatprep.mubr.f32.mxu0 0.0
      %1806 = vmatmul.mubr.f32.gmra.mxu0 %v1605
      %v1807 = vpop.f32.mrf.mxu0
      %v1808 = vadd.f32 0.0, %v1807
      %v1809 = vpop.f32.mrf.mxu0
      %1810 = vmatprep.mubr.f32.mxu0 0.0
      %1811 = vmatmul.mubr.f32.gmra.mxu0 %v1608
      %v1812 = vpop.f32.mrf.mxu0
      %v1813 = vadd.f32 0.0, %v1812
      %v1814 = vpop.f32.mrf.mxu0
      %1815 = vmatprep.mubr.f32.mxu0 0.0
      %1816 = vmatmul.mubr.f32.gmra.mxu0 %v1611
      %v1817 = vpop.f32.mrf.mxu0
      %v1818 = vadd.f32 0.0, %v1817
      %v1819 = vpop.f32.mrf.mxu0
      %1820 = vmatprep.mubr.f32.mxu0 0.0
      %1821 = vmatmul.mubr.f32.gmra.mxu0 %v1614
      %v1822 = vpop.f32.mrf.mxu0
      %v1823 = vadd.f32 0.0, %v1822
      %v1824 = vpop.f32.mrf.mxu0
      %1825 = vmatprep.mubr.f32.mxu0 0.0
      %1826 = vmatmul.mubr.f32.gmra.mxu0 %v1617
      %v1827 = vpop.f32.mrf.mxu0
      %v1828 = vadd.f32 0.0, %v1827
      %v1829 = vpop.f32.mrf.mxu0
      %1830 = vmatprep.mubr.f32.mxu0 0.0
      %1831 = vmatmul.mubr.f32.gmra.mxu0 %v1620
      %v1832 = vpop.f32.mrf.mxu0
      %v1833 = vadd.f32 0.0, %v1832
      %v1834 = vpop.f32.mrf.mxu0
      %1835 = vmatprep.mubr.f32.mxu0 0.0
      %1836 = vmatmul.mubr.f32.gmra.mxu0 %v1623
      %v1837 = vpop.f32.mrf.mxu0
      %v1838 = vadd.f32 0.0, %v1837
      %v1839 = vpop.f32.mrf.mxu0
      %1840 = vmatprep.mubr.f32.mxu0 0.0
      %1841 = vmatmul.mubr.f32.gmra.mxu0 %v1626
      %v1842 = vpop.f32.mrf.mxu0
      %v1843 = vadd.f32 0.0, %v1842
      %v1844 = vpop.f32.mrf.mxu0
      %1845 = vmatprep.mubr.f32.mxu0 0.0
      %1846 = vmatmul.mubr.f32.gmra.mxu0 %v1629
      %v1847 = vpop.f32.mrf.mxu0
      %v1848 = vadd.f32 0.0, %v1847
      %v1849 = vpop.f32.mrf.mxu0
      %1850 = vmatprep.mubr.f32.mxu0 0.0
      %1851 = vmatmul.mubr.f32.gmra.mxu0 %v1632
      %v1852 = vpop.f32.mrf.mxu0
      %v1853 = vadd.f32 0.0, %v1852
      %v1854 = vpop.f32.mrf.mxu0
      %1855 = vmatprep.mubr.f32.mxu0 0.0
      %1856 = vmatmul.mubr.f32.gmra.mxu0 %v1635
      %v1857 = vpop.f32.mrf.mxu0
      %v1858 = vadd.f32 0.0, %v1857
      %v1859 = vpop.f32.mrf.mxu0
      %1860 = vmatprep.mubr.f32.mxu0 0.0
      %1861 = vmatmul.mubr.f32.gmra.mxu0 %v1638
      %v1862 = vpop.f32.mrf.mxu0
      %v1863 = vadd.f32 0.0, %v1862
      %v1864 = vpop.f32.mrf.mxu0
      %1865 = vmatprep.mubr.f32.mxu0 0.0
      %1866 = vmatmul.mubr.f32.gmra.mxu0 %v1641
      %v1867 = vpop.f32.mrf.mxu0
      %v1868 = vadd.f32 0.0, %v1867
      %v1869 = vpop.f32.mrf.mxu0
      %1870 = vdwg.mxu0
      %v1871 = vadd.f32 %v1480, %v1713
      %v1872 = vadd.f32 %v1481, %v1718
      %v1873 = vadd.f32 %v1482, %v1723
      %v1874 = vadd.f32 %v1483, %v1728
      %v1875 = vadd.f32 %v1484, %v1733
      %v1876 = vadd.f32 %v1485, %v1738
      %v1877 = vadd.f32 %v1486, %v1743
      %v1878 = vadd.f32 %v1487, %v1748
      %v1879 = vadd.f32 %v1488, %v1753
      %v1880 = vadd.f32 %v1489, %v1758
      %v1881 = vadd.f32 %v1490, %v1763
      %v1882 = vadd.f32 %v1491, %v1768
      %v1883 = vadd.f32 %v1492, %v1773
      %v1884 = vadd.f32 %v1493, %v1778
      %v1885 = vadd.f32 %v1494, %v1783
      %v1886 = vadd.f32 %v1495, %v1788
      %v1887 = vadd.f32 %v1496, %v1793
      %v1888 = vadd.f32 %v1497, %v1798
      %v1889 = vadd.f32 %v1498, %v1803
      %v1890 = vadd.f32 %v1499, %v1808
      %v1891 = vadd.f32 %v1500, %v1813
      %v1892 = vadd.f32 %v1501, %v1818
      %v1893 = vadd.f32 %v1502, %v1823
      %v1894 = vadd.f32 %v1503, %v1828
      %v1895 = vadd.f32 %v1504, %v1833
      %v1896 = vadd.f32 %v1505, %v1838
      %v1897 = vadd.f32 %v1506, %v1843
      %v1898 = vadd.f32 %v1507, %v1848
      %v1899 = vadd.f32 %v1508, %v1853
      %v1900 = vadd.f32 %v1509, %v1858
      %v1901 = vadd.f32 %v1510, %v1863
      %v1902 = vadd.f32 %v1511, %v1868
      %v1903 = vld [vmem:[%s1512 + $0x1] sm:$0xff]
      %v1904 = vld [vmem:[%s1512 + $0x9] sm:$0xff]
      %v1905 = vld [vmem:[%s1512 + $0x19] sm:$0xff]
      %v1906 = vld [vmem:[%s1512 + $0x21] sm:$0xff]
      %v1907 = vld [vmem:[%s1512 + $0x31] sm:$0xff]
      %v1908 = vld [vmem:[%s1512 + $0x39] sm:$0xff]
      %v1909 = vld [vmem:[%s1512 + $0x49] sm:$0xff]
      %v1910 = vld [vmem:[%s1512 + $0x51] sm:$0xff]
      %v1911 = vld [vmem:[%s1512 + $0x61] sm:$0xff]
      %v1912 = vld [vmem:[%s1512 + $0x69] sm:$0xff]
      %v1913 = vld [vmem:[%s1512 + $0x79] sm:$0xff]
      %v1914 = vld [vmem:[%s1512 + $0x81] sm:$0xff]
      %v1915 = vld [vmem:[%s1512 + $0x91] sm:$0xff]
      %v1916 = vld [vmem:[%s1512 + $0x99] sm:$0xff]
      %v1917 = vld [vmem:[%s1512 + $0xa9] sm:$0xff]
      %v1918 = vld [vmem:[%s1512 + $0xb1] sm:$0xff]
      %v1919 = vld [vmem:[%s1512 + $0xc1] sm:$0xff]
      %v1920 = vld [vmem:[%s1512 + $0xc9] sm:$0xff]
      %v1921 = vld [vmem:[%s1512 + $0xd9] sm:$0xff]
      %v1922 = vld [vmem:[%s1512 + $0xe1] sm:$0xff]
      %v1923 = vld [vmem:[%s1512 + $0xf1] sm:$0xff]
      %v1924 = vld [vmem:[%s1512 + $0xf9] sm:$0xff]
      %v1925 = vld [vmem:[%s1512 + $0x109] sm:$0xff]
      %v1926 = vld [vmem:[%s1512 + $0x111] sm:$0xff]
      %v1927 = vld [vmem:[%s1512 + $0x121] sm:$0xff]
      %v1928 = vld [vmem:[%s1512 + $0x129] sm:$0xff]
      %v1929 = vld [vmem:[%s1512 + $0x139] sm:$0xff]
      %v1930 = vld [vmem:[%s1512 + $0x141] sm:$0xff]
      %v1931 = vld [vmem:[%s1512 + $0x151] sm:$0xff]
      %v1932 = vld [vmem:[%s1512 + $0x159] sm:$0xff]
      %v1933 = vld [vmem:[%s1512 + $0x169] sm:$0xff]
      %v1934 = vld [vmem:[%s1512 + $0x171] sm:$0xff]
      %s1935 = scalar_lea.vmem %s2, 16
      %v1936 = vld [vmem:[%s1935] sm:$0xf]
      %v1938 = vsel %vm343, %v1903, 0
      %v1941 = vsel %vm343, %v1904, 0
      %v1944 = vsel %vm343, %v1905, 0
      %v1947 = vsel %vm343, %v1906, 0
      %v1950 = vsel %vm343, %v1907, 0
      %v1953 = vsel %vm343, %v1908, 0
      %v1956 = vsel %vm343, %v1909, 0
      %v1959 = vsel %vm343, %v1910, 0
      %v1962 = vsel %vm343, %v1911, 0
      %v1965 = vsel %vm343, %v1912, 0
      %v1968 = vsel %vm343, %v1913, 0
      %v1971 = vsel %vm343, %v1914, 0
      %v1974 = vsel %vm343, %v1915, 0
      %v1977 = vsel %vm343, %v1916, 0
      %v1980 = vsel %vm343, %v1917, 0
      %v1983 = vsel %vm343, %v1918, 0
      %v1986 = vsel %vm343, %v1919, 0
      %v1989 = vsel %vm343, %v1920, 0
      %v1992 = vsel %vm343, %v1921, 0
      %v1995 = vsel %vm343, %v1922, 0
      %v1998 = vsel %vm343, %v1923, 0
      %v2001 = vsel %vm343, %v1924, 0
      %v2004 = vsel %vm343, %v1925, 0
      %v2007 = vsel %vm343, %v1926, 0
      %v2010 = vsel %vm343, %v1927, 0
      %v2013 = vsel %vm343, %v1928, 0
      %v2016 = vsel %vm343, %v1929, 0
      %v2019 = vsel %vm343, %v1930, 0
      %v2022 = vsel %vm343, %v1931, 0
      %v2025 = vsel %vm343, %v1932, 0
      %v2028 = vsel %vm343, %v1933, 0
      %v2031 = vsel %vm343, %v1934, 0
      %v2034 = vsel %vm569, %v1936, 0
      %2036 = vmatprep.subr.mxu0 0.0
      %2037 = vmatpush1.msra.mxu0 0.0
      %2038 = vmatprep.subr.mxu0 0.0
      %2039 = vmatpush1.msra.mxu0 0.0
      %2040 = vmatprep.subr.mxu0 0.0
      %2041 = vmatpush1.msra.mxu0 0.0
      %2042 = vmatprep.subr.mxu0 0.0
      %2043 = vmatpush1.msra.mxu0 0.0
      %2044 = vmatprep.subr.mxu0 0.0
      %2045 = vmatpush1.msra.mxu0 0.0
      %2046 = vmatprep.subr.mxu0 0.0
      %2047 = vmatpush1.msra.mxu0 0.0
      %2048 = vmatprep.subr.mxu0 0.0
      %2049 = vmatpush1.msra.mxu0 0.0
      %2050 = vmatprep.subr.mxu0 0.0
      %2051 = vmatpush1.msra.mxu0 0.0
      %2052 = vmatprep.subr.mxu0 0.0
      %2053 = vmatpush1.msra.mxu0 0.0
      %2054 = vmatprep.subr.mxu0 0.0
      %2055 = vmatpush1.msra.mxu0 0.0
      %2056 = vmatprep.subr.mxu0 0.0
      %2057 = vmatpush1.msra.mxu0 0.0
      %2058 = vmatprep.subr.mxu0 0.0
      %2059 = vmatpush1.msra.mxu0 0.0
      %2060 = vmatprep.subr.mxu0 0.0
      %2061 = vmatpush1.msra.mxu0 0.0
      %2062 = vmatprep.subr.mxu0 0.0
      %2063 = vmatpush1.msra.mxu0 0.0
      %2064 = vmatprep.subr.mxu0 0.0
      %2065 = vmatpush1.msra.mxu0 0.0
      %2066 = vmatprep.subr.mxu0 0.0
      %2067 = vmatpush1.msra.mxu0 %v2034
      %2068 = vmatprep.subr.mxu0 0.0
      %2069 = vmatpush2.msra.mxu0 0.0
      %2070 = vmatprep.subr.mxu0 0.0
      %2071 = vmatpush2.msra.mxu0 0.0
      %2072 = vmatprep.subr.mxu0 0.0
      %2073 = vmatpush2.msra.mxu0 0.0
      %2074 = vmatprep.subr.mxu0 0.0
      %2075 = vmatpush2.msra.mxu0 0.0
      %2076 = vmatprep.subr.mxu0 0.0
      %2077 = vmatpush2.msra.mxu0 0.0
      %2078 = vmatprep.subr.mxu0 0.0
      %2079 = vmatpush2.msra.mxu0 0.0
      %2080 = vmatprep.subr.mxu0 0.0
      %2081 = vmatpush2.msra.mxu0 0.0
      %2082 = vmatprep.subr.mxu0 0.0
      %2083 = vmatpush2.msra.mxu0 0.0
      %2084 = vmatprep.subr.mxu0 0.0
      %2085 = vmatpush2.msra.mxu0 0.0
      %2086 = vmatprep.subr.mxu0 0.0
      %2087 = vmatpush2.msra.mxu0 0.0
      %2088 = vmatprep.subr.mxu0 0.0
      %2089 = vmatpush2.msra.mxu0 0.0
      %2090 = vmatprep.subr.mxu0 0.0
      %2091 = vmatpush2.msra.mxu0 0.0
      %2092 = vmatprep.subr.mxu0 0.0
      %2093 = vmatpush2.msra.mxu0 0.0
      %2094 = vmatprep.subr.mxu0 0.0
      %2095 = vmatpush2.msra.mxu0 0.0
      %2096 = vmatprep.subr.mxu0 0.0
      %2097 = vmatpush2.msra.mxu0 0.0
      %2098 = vmatprep.subr.mxu0 0.0
      %2099 = vmatpush2.msra.mxu0 0.0
      %2100 = vmatprep.mubr.f32.mxu0 0.0
      %2101 = vmatmul.mubr.f32.gmra.mxu0 %v1938
      %v2102 = vpop.f32.mrf.mxu0
      %v2103 = vadd.f32 0.0, %v2102
      %v2104 = vpop.f32.mrf.mxu0
      %2105 = vmatprep.mubr.f32.mxu0 0.0
      %2106 = vmatmul.mubr.f32.gmra.mxu0 %v1941
      %v2107 = vpop.f32.mrf.mxu0
      %v2108 = vadd.f32 0.0, %v2107
      %v2109 = vpop.f32.mrf.mxu0
      %2110 = vmatprep.mubr.f32.mxu0 0.0
      %2111 = vmatmul.mubr.f32.gmra.mxu0 %v1944
      %v2112 = vpop.f32.mrf.mxu0
      %v2113 = vadd.f32 0.0, %v2112
      %v2114 = vpop.f32.mrf.mxu0
      %2115 = vmatprep.mubr.f32.mxu0 0.0
      %2116 = vmatmul.mubr.f32.gmra.mxu0 %v1947
      %v2117 = vpop.f32.mrf.mxu0
      %v2118 = vadd.f32 0.0, %v2117
      %v2119 = vpop.f32.mrf.mxu0
      %2120 = vmatprep.mubr.f32.mxu0 0.0
      %2121 = vmatmul.mubr.f32.gmra.mxu0 %v1950
      %v2122 = vpop.f32.mrf.mxu0
      %v2123 = vadd.f32 0.0, %v2122
      %v2124 = vpop.f32.mrf.mxu0
      %2125 = vmatprep.mubr.f32.mxu0 0.0
      %2126 = vmatmul.mubr.f32.gmra.mxu0 %v1953
      %v2127 = vpop.f32.mrf.mxu0
      %v2128 = vadd.f32 0.0, %v2127
      %v2129 = vpop.f32.mrf.mxu0
      %2130 = vmatprep.mubr.f32.mxu0 0.0
      %2131 = vmatmul.mubr.f32.gmra.mxu0 %v1956
      %v2132 = vpop.f32.mrf.mxu0
      %v2133 = vadd.f32 0.0, %v2132
      %v2134 = vpop.f32.mrf.mxu0
      %2135 = vmatprep.mubr.f32.mxu0 0.0
      %2136 = vmatmul.mubr.f32.gmra.mxu0 %v1959
      %v2137 = vpop.f32.mrf.mxu0
      %v2138 = vadd.f32 0.0, %v2137
      %v2139 = vpop.f32.mrf.mxu0
      %2140 = vmatprep.mubr.f32.mxu0 0.0
      %2141 = vmatmul.mubr.f32.gmra.mxu0 %v1962
      %v2142 = vpop.f32.mrf.mxu0
      %v2143 = vadd.f32 0.0, %v2142
      %v2144 = vpop.f32.mrf.mxu0
      %2145 = vmatprep.mubr.f32.mxu0 0.0
      %2146 = vmatmul.mubr.f32.gmra.mxu0 %v1965
      %v2147 = vpop.f32.mrf.mxu0
      %v2148 = vadd.f32 0.0, %v2147
      %v2149 = vpop.f32.mrf.mxu0
      %2150 = vmatprep.mubr.f32.mxu0 0.0
      %2151 = vmatmul.mubr.f32.gmra.mxu0 %v1968
      %v2152 = vpop.f32.mrf.mxu0
      %v2153 = vadd.f32 0.0, %v2152
      %v2154 = vpop.f32.mrf.mxu0
      %2155 = vmatprep.mubr.f32.mxu0 0.0
      %2156 = vmatmul.mubr.f32.gmra.mxu0 %v1971
      %v2157 = vpop.f32.mrf.mxu0
      %v2158 = vadd.f32 0.0, %v2157
      %v2159 = vpop.f32.mrf.mxu0
      %2160 = vmatprep.mubr.f32.mxu0 0.0
      %2161 = vmatmul.mubr.f32.gmra.mxu0 %v1974
      %v2162 = vpop.f32.mrf.mxu0
      %v2163 = vadd.f32 0.0, %v2162
      %v2164 = vpop.f32.mrf.mxu0
      %2165 = vmatprep.mubr.f32.mxu0 0.0
      %2166 = vmatmul.mubr.f32.gmra.mxu0 %v1977
      %v2167 = vpop.f32.mrf.mxu0
      %v2168 = vadd.f32 0.0, %v2167
      %v2169 = vpop.f32.mrf.mxu0
      %2170 = vmatprep.mubr.f32.mxu0 0.0
      %2171 = vmatmul.mubr.f32.gmra.mxu0 %v1980
      %v2172 = vpop.f32.mrf.mxu0
      %v2173 = vadd.f32 0.0, %v2172
      %v2174 = vpop.f32.mrf.mxu0
      %2175 = vmatprep.mubr.f32.mxu0 0.0
      %2176 = vmatmul.mubr.f32.gmra.mxu0 %v1983
      %v2177 = vpop.f32.mrf.mxu0
      %v2178 = vadd.f32 0.0, %v2177
      %v2179 = vpop.f32.mrf.mxu0
      %2180 = vmatprep.mubr.f32.mxu0 0.0
      %2181 = vmatmul.mubr.f32.gmra.mxu0 %v1986
      %v2182 = vpop.f32.mrf.mxu0
      %v2183 = vadd.f32 0.0, %v2182
      %v2184 = vpop.f32.mrf.mxu0
      %2185 = vmatprep.mubr.f32.mxu0 0.0
      %2186 = vmatmul.mubr.f32.gmra.mxu0 %v1989
      %v2187 = vpop.f32.mrf.mxu0
      %v2188 = vadd.f32 0.0, %v2187
      %v2189 = vpop.f32.mrf.mxu0
      %2190 = vmatprep.mubr.f32.mxu0 0.0
      %2191 = vmatmul.mubr.f32.gmra.mxu0 %v1992
      %v2192 = vpop.f32.mrf.mxu0
      %v2193 = vadd.f32 0.0, %v2192
      %v2194 = vpop.f32.mrf.mxu0
      %2195 = vmatprep.mubr.f32.mxu0 0.0
      %2196 = vmatmul.mubr.f32.gmra.mxu0 %v1995
      %v2197 = vpop.f32.mrf.mxu0
      %v2198 = vadd.f32 0.0, %v2197
      %v2199 = vpop.f32.mrf.mxu0
      %2200 = vmatprep.mubr.f32.mxu0 0.0
      %2201 = vmatmul.mubr.f32.gmra.mxu0 %v1998
      %v2202 = vpop.f32.mrf.mxu0
      %v2203 = vadd.f32 0.0, %v2202
      %v2204 = vpop.f32.mrf.mxu0
      %2205 = vmatprep.mubr.f32.mxu0 0.0
      %2206 = vmatmul.mubr.f32.gmra.mxu0 %v2001
      %v2207 = vpop.f32.mrf.mxu0
      %v2208 = vadd.f32 0.0, %v2207
      %v2209 = vpop.f32.mrf.mxu0
      %2210 = vmatprep.mubr.f32.mxu0 0.0
      %2211 = vmatmul.mubr.f32.gmra.mxu0 %v2004
      %v2212 = vpop.f32.mrf.mxu0
      %v2213 = vadd.f32 0.0, %v2212
      %v2214 = vpop.f32.mrf.mxu0
      %2215 = vmatprep.mubr.f32.mxu0 0.0
      %2216 = vmatmul.mubr.f32.gmra.mxu0 %v2007
      %v2217 = vpop.f32.mrf.mxu0
      %v2218 = vadd.f32 0.0, %v2217
      %v2219 = vpop.f32.mrf.mxu0
      %2220 = vmatprep.mubr.f32.mxu0 0.0
      %2221 = vmatmul.mubr.f32.gmra.mxu0 %v2010
      %v2222 = vpop.f32.mrf.mxu0
      %v2223 = vadd.f32 0.0, %v2222
      %v2224 = vpop.f32.mrf.mxu0
      %2225 = vmatprep.mubr.f32.mxu0 0.0
      %2226 = vmatmul.mubr.f32.gmra.mxu0 %v2013
      %v2227 = vpop.f32.mrf.mxu0
      %v2228 = vadd.f32 0.0, %v2227
      %v2229 = vpop.f32.mrf.mxu0
      %2230 = vmatprep.mubr.f32.mxu0 0.0
      %2231 = vmatmul.mubr.f32.gmra.mxu0 %v2016
      %v2232 = vpop.f32.mrf.mxu0
      %v2233 = vadd.f32 0.0, %v2232
      %v2234 = vpop.f32.mrf.mxu0
      %2235 = vmatprep.mubr.f32.mxu0 0.0
      %2236 = vmatmul.mubr.f32.gmra.mxu0 %v2019
      %v2237 = vpop.f32.mrf.mxu0
      %v2238 = vadd.f32 0.0, %v2237
      %v2239 = vpop.f32.mrf.mxu0
      %2240 = vmatprep.mubr.f32.mxu0 0.0
      %2241 = vmatmul.mubr.f32.gmra.mxu0 %v2022
      %v2242 = vpop.f32.mrf.mxu0
      %v2243 = vadd.f32 0.0, %v2242
      %v2244 = vpop.f32.mrf.mxu0
      %2245 = vmatprep.mubr.f32.mxu0 0.0
      %2246 = vmatmul.mubr.f32.gmra.mxu0 %v2025
      %v2247 = vpop.f32.mrf.mxu0
      %v2248 = vadd.f32 0.0, %v2247
      %v2249 = vpop.f32.mrf.mxu0
      %2250 = vmatprep.mubr.f32.mxu0 0.0
      %2251 = vmatmul.mubr.f32.gmra.mxu0 %v2028
      %v2252 = vpop.f32.mrf.mxu0
      %v2253 = vadd.f32 0.0, %v2252
      %v2254 = vpop.f32.mrf.mxu0
      %2255 = vmatprep.mubr.f32.mxu0 0.0
      %2256 = vmatmul.mubr.f32.gmra.mxu0 %v2031
      %v2257 = vpop.f32.mrf.mxu0
      %v2258 = vadd.f32 0.0, %v2257
      %v2259 = vpop.f32.mrf.mxu0
      %2260 = vdwg.mxu0
      %v2261 = vadd.f32 %v1871, %v2103
      %v2262 = vadd.f32 %v1872, %v2108
      %v2263 = vadd.f32 %v1873, %v2113
      %v2264 = vadd.f32 %v1874, %v2118
      %v2265 = vadd.f32 %v1875, %v2123
      %v2266 = vadd.f32 %v1876, %v2128
      %v2267 = vadd.f32 %v1877, %v2133
      %v2268 = vadd.f32 %v1878, %v2138
      %v2269 = vadd.f32 %v1879, %v2143
      %v2270 = vadd.f32 %v1880, %v2148
      %v2271 = vadd.f32 %v1881, %v2153
      %v2272 = vadd.f32 %v1882, %v2158
      %v2273 = vadd.f32 %v1883, %v2163
      %v2274 = vadd.f32 %v1884, %v2168
      %v2275 = vadd.f32 %v1885, %v2173
      %v2276 = vadd.f32 %v1886, %v2178
      %v2277 = vadd.f32 %v1887, %v2183
      %v2278 = vadd.f32 %v1888, %v2188
      %v2279 = vadd.f32 %v1889, %v2193
      %v2280 = vadd.f32 %v1890, %v2198
      %v2281 = vadd.f32 %v1891, %v2203
      %v2282 = vadd.f32 %v1892, %v2208
      %v2283 = vadd.f32 %v1893, %v2213
      %v2284 = vadd.f32 %v1894, %v2218
      %v2285 = vadd.f32 %v1895, %v2223
      %v2286 = vadd.f32 %v1896, %v2228
      %v2287 = vadd.f32 %v1897, %v2233
      %v2288 = vadd.f32 %v1898, %v2238
      %v2289 = vadd.f32 %v1899, %v2243
      %v2290 = vadd.f32 %v1900, %v2248
      %v2291 = vadd.f32 %v1901, %v2253
      %v2292 = vadd.f32 %v1902, %v2258
      %v2293 = vld [vmem:[%s1512 + $0x2] sm:$0xff]
      %v2294 = vld [vmem:[%s1512 + $0xa] sm:$0xff]
      %v2295 = vld [vmem:[%s1512 + $0x1a] sm:$0xff]
      %v2296 = vld [vmem:[%s1512 + $0x22] sm:$0xff]
      %v2297 = vld [vmem:[%s1512 + $0x32] sm:$0xff]
      %v2298 = vld [vmem:[%s1512 + $0x3a] sm:$0xff]
      %v2299 = vld [vmem:[%s1512 + $0x4a] sm:$0xff]
      %v2300 = vld [vmem:[%s1512 + $0x52] sm:$0xff]
      %v2301 = vld [vmem:[%s1512 + $0x62] sm:$0xff]
      %v2302 = vld [vmem:[%s1512 + $0x6a] sm:$0xff]
      %v2303 = vld [vmem:[%s1512 + $0x7a] sm:$0xff]
      %v2304 = vld [vmem:[%s1512 + $0x82] sm:$0xff]
      %v2305 = vld [vmem:[%s1512 + $0x92] sm:$0xff]
      %v2306 = vld [vmem:[%s1512 + $0x9a] sm:$0xff]
      %v2307 = vld [vmem:[%s1512 + $0xaa] sm:$0xff]
      %v2308 = vld [vmem:[%s1512 + $0xb2] sm:$0xff]
      %v2309 = vld [vmem:[%s1512 + $0xc2] sm:$0xff]
      %v2310 = vld [vmem:[%s1512 + $0xca] sm:$0xff]
      %v2311 = vld [vmem:[%s1512 + $0xda] sm:$0xff]
      %v2312 = vld [vmem:[%s1512 + $0xe2] sm:$0xff]
      %v2313 = vld [vmem:[%s1512 + $0xf2] sm:$0xff]
      %v2314 = vld [vmem:[%s1512 + $0xfa] sm:$0xff]
      %v2315 = vld [vmem:[%s1512 + $0x10a] sm:$0xff]
      %v2316 = vld [vmem:[%s1512 + $0x112] sm:$0xff]
      %v2317 = vld [vmem:[%s1512 + $0x122] sm:$0xff]
      %v2318 = vld [vmem:[%s1512 + $0x12a] sm:$0xff]
      %v2319 = vld [vmem:[%s1512 + $0x13a] sm:$0xff]
      %v2320 = vld [vmem:[%s1512 + $0x142] sm:$0xff]
      %v2321 = vld [vmem:[%s1512 + $0x152] sm:$0xff]
      %v2322 = vld [vmem:[%s1512 + $0x15a] sm:$0xff]
      %v2323 = vld [vmem:[%s1512 + $0x16a] sm:$0xff]
      %v2324 = vld [vmem:[%s1512 + $0x172] sm:$0xff]
      %s2325 = scalar_lea.vmem %s2, 20
      %v2326 = vld [vmem:[%s2325] sm:$0xf]
      %v2328 = vsel %vm343, %v2293, 0
      %v2331 = vsel %vm343, %v2294, 0
      %v2334 = vsel %vm343, %v2295, 0
      %v2337 = vsel %vm343, %v2296, 0
      %v2340 = vsel %vm343, %v2297, 0
      %v2343 = vsel %vm343, %v2298, 0
      %v2346 = vsel %vm343, %v2299, 0
      %v2349 = vsel %vm343, %v2300, 0
      %v2352 = vsel %vm343, %v2301, 0
      %v2355 = vsel %vm343, %v2302, 0
      %v2358 = vsel %vm343, %v2303, 0
      %v2361 = vsel %vm343, %v2304, 0
      %v2364 = vsel %vm343, %v2305, 0
      %v2367 = vsel %vm343, %v2306, 0
      %v2370 = vsel %vm343, %v2307, 0
      %v2373 = vsel %vm343, %v2308, 0
      %v2376 = vsel %vm343, %v2309, 0
      %v2379 = vsel %vm343, %v2310, 0
      %v2382 = vsel %vm343, %v2311, 0
      %v2385 = vsel %vm343, %v2312, 0
      %v2388 = vsel %vm343, %v2313, 0
      %v2391 = vsel %vm343, %v2314, 0
      %v2394 = vsel %vm343, %v2315, 0
      %v2397 = vsel %vm343, %v2316, 0
      %v2400 = vsel %vm343, %v2317, 0
      %v2403 = vsel %vm343, %v2318, 0
      %v2406 = vsel %vm343, %v2319, 0
      %v2409 = vsel %vm343, %v2320, 0
      %v2412 = vsel %vm343, %v2321, 0
      %v2415 = vsel %vm343, %v2322, 0
      %v2418 = vsel %vm343, %v2323, 0
      %v2421 = vsel %vm343, %v2324, 0
      %v2424 = vsel %vm569, %v2326, 0
      %2426 = vmatprep.subr.mxu0 0.0
      %2427 = vmatpush1.msra.mxu0 0.0
      %2428 = vmatprep.subr.mxu0 0.0
      %2429 = vmatpush1.msra.mxu0 0.0
      %2430 = vmatprep.subr.mxu0 0.0
      %2431 = vmatpush1.msra.mxu0 0.0
      %2432 = vmatprep.subr.mxu0 0.0
      %2433 = vmatpush1.msra.mxu0 0.0
      %2434 = vmatprep.subr.mxu0 0.0
      %2435 = vmatpush1.msra.mxu0 0.0
      %2436 = vmatprep.subr.mxu0 0.0
      %2437 = vmatpush1.msra.mxu0 0.0
      %2438 = vmatprep.subr.mxu0 0.0
      %2439 = vmatpush1.msra.mxu0 0.0
      %2440 = vmatprep.subr.mxu0 0.0
      %2441 = vmatpush1.msra.mxu0 0.0
      %2442 = vmatprep.subr.mxu0 0.0
      %2443 = vmatpush1.msra.mxu0 0.0
      %2444 = vmatprep.subr.mxu0 0.0
      %2445 = vmatpush1.msra.mxu0 0.0
      %2446 = vmatprep.subr.mxu0 0.0
      %2447 = vmatpush1.msra.mxu0 0.0
      %2448 = vmatprep.subr.mxu0 0.0
      %2449 = vmatpush1.msra.mxu0 0.0
      %2450 = vmatprep.subr.mxu0 0.0
      %2451 = vmatpush1.msra.mxu0 0.0
      %2452 = vmatprep.subr.mxu0 0.0
      %2453 = vmatpush1.msra.mxu0 0.0
      %2454 = vmatprep.subr.mxu0 0.0
      %2455 = vmatpush1.msra.mxu0 0.0
      %2456 = vmatprep.subr.mxu0 0.0
      %2457 = vmatpush1.msra.mxu0 %v2424
      %2458 = vmatprep.subr.mxu0 0.0
      %2459 = vmatpush2.msra.mxu0 0.0
      %2460 = vmatprep.subr.mxu0 0.0
      %2461 = vmatpush2.msra.mxu0 0.0
      %2462 = vmatprep.subr.mxu0 0.0
      %2463 = vmatpush2.msra.mxu0 0.0
      %2464 = vmatprep.subr.mxu0 0.0
      %2465 = vmatpush2.msra.mxu0 0.0
      %2466 = vmatprep.subr.mxu0 0.0
      %2467 = vmatpush2.msra.mxu0 0.0
      %2468 = vmatprep.subr.mxu0 0.0
      %2469 = vmatpush2.msra.mxu0 0.0
      %2470 = vmatprep.subr.mxu0 0.0
      %2471 = vmatpush2.msra.mxu0 0.0
      %2472 = vmatprep.subr.mxu0 0.0
      %2473 = vmatpush2.msra.mxu0 0.0
      %2474 = vmatprep.subr.mxu0 0.0
      %2475 = vmatpush2.msra.mxu0 0.0
      %2476 = vmatprep.subr.mxu0 0.0
      %2477 = vmatpush2.msra.mxu0 0.0
      %2478 = vmatprep.subr.mxu0 0.0
      %2479 = vmatpush2.msra.mxu0 0.0
      %2480 = vmatprep.subr.mxu0 0.0
      %2481 = vmatpush2.msra.mxu0 0.0
      %2482 = vmatprep.subr.mxu0 0.0
      %2483 = vmatpush2.msra.mxu0 0.0
      %2484 = vmatprep.subr.mxu0 0.0
      %2485 = vmatpush2.msra.mxu0 0.0
      %2486 = vmatprep.subr.mxu0 0.0
      %2487 = vmatpush2.msra.mxu0 0.0
      %2488 = vmatprep.subr.mxu0 0.0
      %2489 = vmatpush2.msra.mxu0 0.0
      %2490 = vmatprep.mubr.f32.mxu0 0.0
      %2491 = vmatmul.mubr.f32.gmra.mxu0 %v2328
      %v2492 = vpop.f32.mrf.mxu0
      %v2493 = vadd.f32 0.0, %v2492
      %v2494 = vpop.f32.mrf.mxu0
      %2495 = vmatprep.mubr.f32.mxu0 0.0
      %2496 = vmatmul.mubr.f32.gmra.mxu0 %v2331
      %v2497 = vpop.f32.mrf.mxu0
      %v2498 = vadd.f32 0.0, %v2497
      %v2499 = vpop.f32.mrf.mxu0
      %2500 = vmatprep.mubr.f32.mxu0 0.0
      %2501 = vmatmul.mubr.f32.gmra.mxu0 %v2334
      %v2502 = vpop.f32.mrf.mxu0
      %v2503 = vadd.f32 0.0, %v2502
      %v2504 = vpop.f32.mrf.mxu0
      %2505 = vmatprep.mubr.f32.mxu0 0.0
      %2506 = vmatmul.mubr.f32.gmra.mxu0 %v2337
      %v2507 = vpop.f32.mrf.mxu0
      %v2508 = vadd.f32 0.0, %v2507
      %v2509 = vpop.f32.mrf.mxu0
      %2510 = vmatprep.mubr.f32.mxu0 0.0
      %2511 = vmatmul.mubr.f32.gmra.mxu0 %v2340
      %v2512 = vpop.f32.mrf.mxu0
      %v2513 = vadd.f32 0.0, %v2512
      %v2514 = vpop.f32.mrf.mxu0
      %2515 = vmatprep.mubr.f32.mxu0 0.0
      %2516 = vmatmul.mubr.f32.gmra.mxu0 %v2343
      %v2517 = vpop.f32.mrf.mxu0
      %v2518 = vadd.f32 0.0, %v2517
      %v2519 = vpop.f32.mrf.mxu0
      %2520 = vmatprep.mubr.f32.mxu0 0.0
      %2521 = vmatmul.mubr.f32.gmra.mxu0 %v2346
      %v2522 = vpop.f32.mrf.mxu0
      %v2523 = vadd.f32 0.0, %v2522
      %v2524 = vpop.f32.mrf.mxu0
      %2525 = vmatprep.mubr.f32.mxu0 0.0
      %2526 = vmatmul.mubr.f32.gmra.mxu0 %v2349
      %v2527 = vpop.f32.mrf.mxu0
      %v2528 = vadd.f32 0.0, %v2527
      %v2529 = vpop.f32.mrf.mxu0
      %2530 = vmatprep.mubr.f32.mxu0 0.0
      %2531 = vmatmul.mubr.f32.gmra.mxu0 %v2352
      %v2532 = vpop.f32.mrf.mxu0
      %v2533 = vadd.f32 0.0, %v2532
      %v2534 = vpop.f32.mrf.mxu0
      %2535 = vmatprep.mubr.f32.mxu0 0.0
      %2536 = vmatmul.mubr.f32.gmra.mxu0 %v2355
      %v2537 = vpop.f32.mrf.mxu0
      %v2538 = vadd.f32 0.0, %v2537
      %v2539 = vpop.f32.mrf.mxu0
      %2540 = vmatprep.mubr.f32.mxu0 0.0
      %2541 = vmatmul.mubr.f32.gmra.mxu0 %v2358
      %v2542 = vpop.f32.mrf.mxu0
      %v2543 = vadd.f32 0.0, %v2542
      %v2544 = vpop.f32.mrf.mxu0
      %2545 = vmatprep.mubr.f32.mxu0 0.0
      %2546 = vmatmul.mubr.f32.gmra.mxu0 %v2361
      %v2547 = vpop.f32.mrf.mxu0
      %v2548 = vadd.f32 0.0, %v2547
      %v2549 = vpop.f32.mrf.mxu0
      %2550 = vmatprep.mubr.f32.mxu0 0.0
      %2551 = vmatmul.mubr.f32.gmra.mxu0 %v2364
      %v2552 = vpop.f32.mrf.mxu0
      %v2553 = vadd.f32 0.0, %v2552
      %v2554 = vpop.f32.mrf.mxu0
      %2555 = vmatprep.mubr.f32.mxu0 0.0
      %2556 = vmatmul.mubr.f32.gmra.mxu0 %v2367
      %v2557 = vpop.f32.mrf.mxu0
      %v2558 = vadd.f32 0.0, %v2557
      %v2559 = vpop.f32.mrf.mxu0
      %2560 = vmatprep.mubr.f32.mxu0 0.0
      %2561 = vmatmul.mubr.f32.gmra.mxu0 %v2370
      %v2562 = vpop.f32.mrf.mxu0
      %v2563 = vadd.f32 0.0, %v2562
      %v2564 = vpop.f32.mrf.mxu0
      %2565 = vmatprep.mubr.f32.mxu0 0.0
      %2566 = vmatmul.mubr.f32.gmra.mxu0 %v2373
      %v2567 = vpop.f32.mrf.mxu0
      %v2568 = vadd.f32 0.0, %v2567
      %v2569 = vpop.f32.mrf.mxu0
      %2570 = vmatprep.mubr.f32.mxu0 0.0
      %2571 = vmatmul.mubr.f32.gmra.mxu0 %v2376
      %v2572 = vpop.f32.mrf.mxu0
      %v2573 = vadd.f32 0.0, %v2572
      %v2574 = vpop.f32.mrf.mxu0
      %2575 = vmatprep.mubr.f32.mxu0 0.0
      %2576 = vmatmul.mubr.f32.gmra.mxu0 %v2379
      %v2577 = vpop.f32.mrf.mxu0
      %v2578 = vadd.f32 0.0, %v2577
      %v2579 = vpop.f32.mrf.mxu0
      %2580 = vmatprep.mubr.f32.mxu0 0.0
      %2581 = vmatmul.mubr.f32.gmra.mxu0 %v2382
      %v2582 = vpop.f32.mrf.mxu0
      %v2583 = vadd.f32 0.0, %v2582
      %v2584 = vpop.f32.mrf.mxu0
      %2585 = vmatprep.mubr.f32.mxu0 0.0
      %2586 = vmatmul.mubr.f32.gmra.mxu0 %v2385
      %v2587 = vpop.f32.mrf.mxu0
      %v2588 = vadd.f32 0.0, %v2587
      %v2589 = vpop.f32.mrf.mxu0
      %2590 = vmatprep.mubr.f32.mxu0 0.0
      %2591 = vmatmul.mubr.f32.gmra.mxu0 %v2388
      %v2592 = vpop.f32.mrf.mxu0
      %v2593 = vadd.f32 0.0, %v2592
      %v2594 = vpop.f32.mrf.mxu0
      %2595 = vmatprep.mubr.f32.mxu0 0.0
      %2596 = vmatmul.mubr.f32.gmra.mxu0 %v2391
      %v2597 = vpop.f32.mrf.mxu0
      %v2598 = vadd.f32 0.0, %v2597
      %v2599 = vpop.f32.mrf.mxu0
      %2600 = vmatprep.mubr.f32.mxu0 0.0
      %2601 = vmatmul.mubr.f32.gmra.mxu0 %v2394
      %v2602 = vpop.f32.mrf.mxu0
      %v2603 = vadd.f32 0.0, %v2602
      %v2604 = vpop.f32.mrf.mxu0
      %2605 = vmatprep.mubr.f32.mxu0 0.0
      %2606 = vmatmul.mubr.f32.gmra.mxu0 %v2397
      %v2607 = vpop.f32.mrf.mxu0
      %v2608 = vadd.f32 0.0, %v2607
      %v2609 = vpop.f32.mrf.mxu0
      %2610 = vmatprep.mubr.f32.mxu0 0.0
      %2611 = vmatmul.mubr.f32.gmra.mxu0 %v2400
      %v2612 = vpop.f32.mrf.mxu0
      %v2613 = vadd.f32 0.0, %v2612
      %v2614 = vpop.f32.mrf.mxu0
      %2615 = vmatprep.mubr.f32.mxu0 0.0
      %2616 = vmatmul.mubr.f32.gmra.mxu0 %v2403
      %v2617 = vpop.f32.mrf.mxu0
      %v2618 = vadd.f32 0.0, %v2617
      %v2619 = vpop.f32.mrf.mxu0
      %2620 = vmatprep.mubr.f32.mxu0 0.0
      %2621 = vmatmul.mubr.f32.gmra.mxu0 %v2406
      %v2622 = vpop.f32.mrf.mxu0
      %v2623 = vadd.f32 0.0, %v2622
      %v2624 = vpop.f32.mrf.mxu0
      %2625 = vmatprep.mubr.f32.mxu0 0.0
      %2626 = vmatmul.mubr.f32.gmra.mxu0 %v2409
      %v2627 = vpop.f32.mrf.mxu0
      %v2628 = vadd.f32 0.0, %v2627
      %v2629 = vpop.f32.mrf.mxu0
      %2630 = vmatprep.mubr.f32.mxu0 0.0
      %2631 = vmatmul.mubr.f32.gmra.mxu0 %v2412
      %v2632 = vpop.f32.mrf.mxu0
      %v2633 = vadd.f32 0.0, %v2632
      %v2634 = vpop.f32.mrf.mxu0
      %2635 = vmatprep.mubr.f32.mxu0 0.0
      %2636 = vmatmul.mubr.f32.gmra.mxu0 %v2415
      %v2637 = vpop.f32.mrf.mxu0
      %v2638 = vadd.f32 0.0, %v2637
      %v2639 = vpop.f32.mrf.mxu0
      %2640 = vmatprep.mubr.f32.mxu0 0.0
      %2641 = vmatmul.mubr.f32.gmra.mxu0 %v2418
      %v2642 = vpop.f32.mrf.mxu0
      %v2643 = vadd.f32 0.0, %v2642
      %v2644 = vpop.f32.mrf.mxu0
      %2645 = vmatprep.mubr.f32.mxu0 0.0
      %2646 = vmatmul.mubr.f32.gmra.mxu0 %v2421
      %v2647 = vpop.f32.mrf.mxu0
      %v2648 = vadd.f32 0.0, %v2647
      %v2649 = vpop.f32.mrf.mxu0
      %2650 = vdwg.mxu0
      %v2651 = vadd.f32 %v2261, %v2493
      %v2652 = vadd.f32 %v2262, %v2498
      %v2653 = vadd.f32 %v2263, %v2503
      %v2654 = vadd.f32 %v2264, %v2508
      %v2655 = vadd.f32 %v2265, %v2513
      %v2656 = vadd.f32 %v2266, %v2518
      %v2657 = vadd.f32 %v2267, %v2523
      %v2658 = vadd.f32 %v2268, %v2528
      %v2659 = vadd.f32 %v2269, %v2533
      %v2660 = vadd.f32 %v2270, %v2538
      %v2661 = vadd.f32 %v2271, %v2543
      %v2662 = vadd.f32 %v2272, %v2548
      %v2663 = vadd.f32 %v2273, %v2553
      %v2664 = vadd.f32 %v2274, %v2558
      %v2665 = vadd.f32 %v2275, %v2563
      %v2666 = vadd.f32 %v2276, %v2568
      %v2667 = vadd.f32 %v2277, %v2573
      %v2668 = vadd.f32 %v2278, %v2578
      %v2669 = vadd.f32 %v2279, %v2583
      %v2670 = vadd.f32 %v2280, %v2588
      %v2671 = vadd.f32 %v2281, %v2593
      %v2672 = vadd.f32 %v2282, %v2598
      %v2673 = vadd.f32 %v2283, %v2603
      %v2674 = vadd.f32 %v2284, %v2608
      %v2675 = vadd.f32 %v2285, %v2613
      %v2676 = vadd.f32 %v2286, %v2618
      %v2677 = vadd.f32 %v2287, %v2623
      %v2678 = vadd.f32 %v2288, %v2628
      %v2679 = vadd.f32 %v2289, %v2633
      %v2680 = vadd.f32 %v2290, %v2638
      %v2681 = vadd.f32 %v2291, %v2643
      %v2682 = vadd.f32 %v2292, %v2648
      %s2683 = scalar_lea.vmem [#allocation2], 48
      %v2684 = vld [vmem:[%s2683] sm:$0xff]
      %v2685 = vld [vmem:[%s2683 + $0x8] sm:$0xff]
      %v2686 = vld [vmem:[%s2683 + $0x18] sm:$0xff]
      %v2687 = vld [vmem:[%s2683 + $0x20] sm:$0xff]
      %v2688 = vld [vmem:[%s2683 + $0x30] sm:$0xff]
      %v2689 = vld [vmem:[%s2683 + $0x38] sm:$0xff]
      %v2690 = vld [vmem:[%s2683 + $0x48] sm:$0xff]
      %v2691 = vld [vmem:[%s2683 + $0x50] sm:$0xff]
      %v2692 = vld [vmem:[%s2683 + $0x60] sm:$0xff]
      %v2693 = vld [vmem:[%s2683 + $0x68] sm:$0xff]
      %v2694 = vld [vmem:[%s2683 + $0x78] sm:$0xff]
      %v2695 = vld [vmem:[%s2683 + $0x80] sm:$0xff]
      %v2696 = vld [vmem:[%s2683 + $0x90] sm:$0xff]
      %v2697 = vld [vmem:[%s2683 + $0x98] sm:$0xff]
      %v2698 = vld [vmem:[%s2683 + $0xa8] sm:$0xff]
      %v2699 = vld [vmem:[%s2683 + $0xb0] sm:$0xff]
      %v2700 = vld [vmem:[%s2683 + $0xc0] sm:$0xff]
      %v2701 = vld [vmem:[%s2683 + $0xc8] sm:$0xff]
      %v2702 = vld [vmem:[%s2683 + $0xd8] sm:$0xff]
      %v2703 = vld [vmem:[%s2683 + $0xe0] sm:$0xff]
      %v2704 = vld [vmem:[%s2683 + $0xf0] sm:$0xff]
      %v2705 = vld [vmem:[%s2683 + $0xf8] sm:$0xff]
      %v2706 = vld [vmem:[%s2683 + $0x108] sm:$0xff]
      %v2707 = vld [vmem:[%s2683 + $0x110] sm:$0xff]
      %v2708 = vld [vmem:[%s2683 + $0x120] sm:$0xff]
      %v2709 = vld [vmem:[%s2683 + $0x128] sm:$0xff]
      %v2710 = vld [vmem:[%s2683 + $0x138] sm:$0xff]
      %v2711 = vld [vmem:[%s2683 + $0x140] sm:$0xff]
      %v2712 = vld [vmem:[%s2683 + $0x150] sm:$0xff]
      %v2713 = vld [vmem:[%s2683 + $0x158] sm:$0xff]
      %v2714 = vld [vmem:[%s2683 + $0x168] sm:$0xff]
      %v2715 = vld [vmem:[%s2683 + $0x170] sm:$0xff]
      %s2716 = scalar_lea.vmem %s2, 24
      %v2717 = vld [vmem:[%s2716] sm:$0xf]
      %v2719 = vsel %vm343, %v2684, 0
      %v2722 = vsel %vm343, %v2685, 0
      %v2725 = vsel %vm343, %v2686, 0
      %v2728 = vsel %vm343, %v2687, 0
      %v2731 = vsel %vm343, %v2688, 0
      %v2734 = vsel %vm343, %v2689, 0
      %v2737 = vsel %vm343, %v2690, 0
      %v2740 = vsel %vm343, %v2691, 0
      %v2743 = vsel %vm343, %v2692, 0
      %v2746 = vsel %vm343, %v2693, 0
      %v2749 = vsel %vm343, %v2694, 0
      %v2752 = vsel %vm343, %v2695, 0
      %v2755 = vsel %vm343, %v2696, 0
      %v2758 = vsel %vm343, %v2697, 0
      %v2761 = vsel %vm343, %v2698, 0
      %v2764 = vsel %vm343, %v2699, 0
      %v2767 = vsel %vm343, %v2700, 0
      %v2770 = vsel %vm343, %v2701, 0
      %v2773 = vsel %vm343, %v2702, 0
      %v2776 = vsel %vm343, %v2703, 0
      %v2779 = vsel %vm343, %v2704, 0
      %v2782 = vsel %vm343, %v2705, 0
      %v2785 = vsel %vm343, %v2706, 0
      %v2788 = vsel %vm343, %v2707, 0
      %v2791 = vsel %vm343, %v2708, 0
      %v2794 = vsel %vm343, %v2709, 0
      %v2797 = vsel %vm343, %v2710, 0
      %v2800 = vsel %vm343, %v2711, 0
      %v2803 = vsel %vm343, %v2712, 0
      %v2806 = vsel %vm343, %v2713, 0
      %v2809 = vsel %vm343, %v2714, 0
      %v2812 = vsel %vm343, %v2715, 0
      %v2815 = vsel %vm569, %v2717, 0
      %2817 = vmatprep.subr.mxu0 0.0
      %2818 = vmatpush1.msra.mxu0 0.0
      %2819 = vmatprep.subr.mxu0 0.0
      %2820 = vmatpush1.msra.mxu0 0.0
      %2821 = vmatprep.subr.mxu0 0.0
      %2822 = vmatpush1.msra.mxu0 0.0
      %2823 = vmatprep.subr.mxu0 0.0
      %2824 = vmatpush1.msra.mxu0 0.0
      %2825 = vmatprep.subr.mxu0 0.0
      %2826 = vmatpush1.msra.mxu0 0.0
      %2827 = vmatprep.subr.mxu0 0.0
      %2828 = vmatpush1.msra.mxu0 0.0
      %2829 = vmatprep.subr.mxu0 0.0
      %2830 = vmatpush1.msra.mxu0 0.0
      %2831 = vmatprep.subr.mxu0 0.0
      %2832 = vmatpush1.msra.mxu0 0.0
      %2833 = vmatprep.subr.mxu0 0.0
      %2834 = vmatpush1.msra.mxu0 0.0
      %2835 = vmatprep.subr.mxu0 0.0
      %2836 = vmatpush1.msra.mxu0 0.0
      %2837 = vmatprep.subr.mxu0 0.0
      %2838 = vmatpush1.msra.mxu0 0.0
      %2839 = vmatprep.subr.mxu0 0.0
      %2840 = vmatpush1.msra.mxu0 0.0
      %2841 = vmatprep.subr.mxu0 0.0
      %2842 = vmatpush1.msra.mxu0 0.0
      %2843 = vmatprep.subr.mxu0 0.0
      %2844 = vmatpush1.msra.mxu0 0.0
      %2845 = vmatprep.subr.mxu0 0.0
      %2846 = vmatpush1.msra.mxu0 0.0
      %2847 = vmatprep.subr.mxu0 0.0
      %2848 = vmatpush1.msra.mxu0 %v2815
      %2849 = vmatprep.subr.mxu0 0.0
      %2850 = vmatpush2.msra.mxu0 0.0
      %2851 = vmatprep.subr.mxu0 0.0
      %2852 = vmatpush2.msra.mxu0 0.0
      %2853 = vmatprep.subr.mxu0 0.0
      %2854 = vmatpush2.msra.mxu0 0.0
      %2855 = vmatprep.subr.mxu0 0.0
      %2856 = vmatpush2.msra.mxu0 0.0
      %2857 = vmatprep.subr.mxu0 0.0
      %2858 = vmatpush2.msra.mxu0 0.0
      %2859 = vmatprep.subr.mxu0 0.0
      %2860 = vmatpush2.msra.mxu0 0.0
      %2861 = vmatprep.subr.mxu0 0.0
      %2862 = vmatpush2.msra.mxu0 0.0
      %2863 = vmatprep.subr.mxu0 0.0
      %2864 = vmatpush2.msra.mxu0 0.0
      %2865 = vmatprep.subr.mxu0 0.0
      %2866 = vmatpush2.msra.mxu0 0.0
      %2867 = vmatprep.subr.mxu0 0.0
      %2868 = vmatpush2.msra.mxu0 0.0
      %2869 = vmatprep.subr.mxu0 0.0
      %2870 = vmatpush2.msra.mxu0 0.0
      %2871 = vmatprep.subr.mxu0 0.0
      %2872 = vmatpush2.msra.mxu0 0.0
      %2873 = vmatprep.subr.mxu0 0.0
      %2874 = vmatpush2.msra.mxu0 0.0
      %2875 = vmatprep.subr.mxu0 0.0
      %2876 = vmatpush2.msra.mxu0 0.0
      %2877 = vmatprep.subr.mxu0 0.0
      %2878 = vmatpush2.msra.mxu0 0.0
      %2879 = vmatprep.subr.mxu0 0.0
      %2880 = vmatpush2.msra.mxu0 0.0
      %2881 = vmatprep.mubr.f32.mxu0 0.0
      %2882 = vmatmul.mubr.f32.gmra.mxu0 %v2719
      %v2883 = vpop.f32.mrf.mxu0
      %v2884 = vadd.f32 0.0, %v2883
      %v2885 = vpop.f32.mrf.mxu0
      %2886 = vmatprep.mubr.f32.mxu0 0.0
      %2887 = vmatmul.mubr.f32.gmra.mxu0 %v2722
      %v2888 = vpop.f32.mrf.mxu0
      %v2889 = vadd.f32 0.0, %v2888
      %v2890 = vpop.f32.mrf.mxu0
      %2891 = vmatprep.mubr.f32.mxu0 0.0
      %2892 = vmatmul.mubr.f32.gmra.mxu0 %v2725
      %v2893 = vpop.f32.mrf.mxu0
      %v2894 = vadd.f32 0.0, %v2893
      %v2895 = vpop.f32.mrf.mxu0
      %2896 = vmatprep.mubr.f32.mxu0 0.0
      %2897 = vmatmul.mubr.f32.gmra.mxu0 %v2728
      %v2898 = vpop.f32.mrf.mxu0
      %v2899 = vadd.f32 0.0, %v2898
      %v2900 = vpop.f32.mrf.mxu0
      %2901 = vmatprep.mubr.f32.mxu0 0.0
      %2902 = vmatmul.mubr.f32.gmra.mxu0 %v2731
      %v2903 = vpop.f32.mrf.mxu0
      %v2904 = vadd.f32 0.0, %v2903
      %v2905 = vpop.f32.mrf.mxu0
      %2906 = vmatprep.mubr.f32.mxu0 0.0
      %2907 = vmatmul.mubr.f32.gmra.mxu0 %v2734
      %v2908 = vpop.f32.mrf.mxu0
      %v2909 = vadd.f32 0.0, %v2908
      %v2910 = vpop.f32.mrf.mxu0
      %2911 = vmatprep.mubr.f32.mxu0 0.0
      %2912 = vmatmul.mubr.f32.gmra.mxu0 %v2737
      %v2913 = vpop.f32.mrf.mxu0
      %v2914 = vadd.f32 0.0, %v2913
      %v2915 = vpop.f32.mrf.mxu0
      %2916 = vmatprep.mubr.f32.mxu0 0.0
      %2917 = vmatmul.mubr.f32.gmra.mxu0 %v2740
      %v2918 = vpop.f32.mrf.mxu0
      %v2919 = vadd.f32 0.0, %v2918
      %v2920 = vpop.f32.mrf.mxu0
      %2921 = vmatprep.mubr.f32.mxu0 0.0
      %2922 = vmatmul.mubr.f32.gmra.mxu0 %v2743
      %v2923 = vpop.f32.mrf.mxu0
      %v2924 = vadd.f32 0.0, %v2923
      %v2925 = vpop.f32.mrf.mxu0
      %2926 = vmatprep.mubr.f32.mxu0 0.0
      %2927 = vmatmul.mubr.f32.gmra.mxu0 %v2746
      %v2928 = vpop.f32.mrf.mxu0
      %v2929 = vadd.f32 0.0, %v2928
      %v2930 = vpop.f32.mrf.mxu0
      %2931 = vmatprep.mubr.f32.mxu0 0.0
      %2932 = vmatmul.mubr.f32.gmra.mxu0 %v2749
      %v2933 = vpop.f32.mrf.mxu0
      %v2934 = vadd.f32 0.0, %v2933
      %v2935 = vpop.f32.mrf.mxu0
      %2936 = vmatprep.mubr.f32.mxu0 0.0
      %2937 = vmatmul.mubr.f32.gmra.mxu0 %v2752
      %v2938 = vpop.f32.mrf.mxu0
      %v2939 = vadd.f32 0.0, %v2938
      %v2940 = vpop.f32.mrf.mxu0
      %2941 = vmatprep.mubr.f32.mxu0 0.0
      %2942 = vmatmul.mubr.f32.gmra.mxu0 %v2755
      %v2943 = vpop.f32.mrf.mxu0
      %v2944 = vadd.f32 0.0, %v2943
      %v2945 = vpop.f32.mrf.mxu0
      %2946 = vmatprep.mubr.f32.mxu0 0.0
      %2947 = vmatmul.mubr.f32.gmra.mxu0 %v2758
      %v2948 = vpop.f32.mrf.mxu0
      %v2949 = vadd.f32 0.0, %v2948
      %v2950 = vpop.f32.mrf.mxu0
      %2951 = vmatprep.mubr.f32.mxu0 0.0
      %2952 = vmatmul.mubr.f32.gmra.mxu0 %v2761
      %v2953 = vpop.f32.mrf.mxu0
      %v2954 = vadd.f32 0.0, %v2953
      %v2955 = vpop.f32.mrf.mxu0
      %2956 = vmatprep.mubr.f32.mxu0 0.0
      %2957 = vmatmul.mubr.f32.gmra.mxu0 %v2764
      %v2958 = vpop.f32.mrf.mxu0
      %v2959 = vadd.f32 0.0, %v2958
      %v2960 = vpop.f32.mrf.mxu0
      %2961 = vmatprep.mubr.f32.mxu0 0.0
      %2962 = vmatmul.mubr.f32.gmra.mxu0 %v2767
      %v2963 = vpop.f32.mrf.mxu0
      %v2964 = vadd.f32 0.0, %v2963
      %v2965 = vpop.f32.mrf.mxu0
      %2966 = vmatprep.mubr.f32.mxu0 0.0
      %2967 = vmatmul.mubr.f32.gmra.mxu0 %v2770
      %v2968 = vpop.f32.mrf.mxu0
      %v2969 = vadd.f32 0.0, %v2968
      %v2970 = vpop.f32.mrf.mxu0
      %2971 = vmatprep.mubr.f32.mxu0 0.0
      %2972 = vmatmul.mubr.f32.gmra.mxu0 %v2773
      %v2973 = vpop.f32.mrf.mxu0
      %v2974 = vadd.f32 0.0, %v2973
      %v2975 = vpop.f32.mrf.mxu0
      %2976 = vmatprep.mubr.f32.mxu0 0.0
      %2977 = vmatmul.mubr.f32.gmra.mxu0 %v2776
      %v2978 = vpop.f32.mrf.mxu0
      %v2979 = vadd.f32 0.0, %v2978
      %v2980 = vpop.f32.mrf.mxu0
      %2981 = vmatprep.mubr.f32.mxu0 0.0
      %2982 = vmatmul.mubr.f32.gmra.mxu0 %v2779
      %v2983 = vpop.f32.mrf.mxu0
      %v2984 = vadd.f32 0.0, %v2983
      %v2985 = vpop.f32.mrf.mxu0
      %2986 = vmatprep.mubr.f32.mxu0 0.0
      %2987 = vmatmul.mubr.f32.gmra.mxu0 %v2782
      %v2988 = vpop.f32.mrf.mxu0
      %v2989 = vadd.f32 0.0, %v2988
      %v2990 = vpop.f32.mrf.mxu0
      %2991 = vmatprep.mubr.f32.mxu0 0.0
      %2992 = vmatmul.mubr.f32.gmra.mxu0 %v2785
      %v2993 = vpop.f32.mrf.mxu0
      %v2994 = vadd.f32 0.0, %v2993
      %v2995 = vpop.f32.mrf.mxu0
      %2996 = vmatprep.mubr.f32.mxu0 0.0
      %2997 = vmatmul.mubr.f32.gmra.mxu0 %v2788
      %v2998 = vpop.f32.mrf.mxu0
      %v2999 = vadd.f32 0.0, %v2998
      %v3000 = vpop.f32.mrf.mxu0
      %3001 = vmatprep.mubr.f32.mxu0 0.0
      %3002 = vmatmul.mubr.f32.gmra.mxu0 %v2791
      %v3003 = vpop.f32.mrf.mxu0
      %v3004 = vadd.f32 0.0, %v3003
      %v3005 = vpop.f32.mrf.mxu0
      %3006 = vmatprep.mubr.f32.mxu0 0.0
      %3007 = vmatmul.mubr.f32.gmra.mxu0 %v2794
      %v3008 = vpop.f32.mrf.mxu0
      %v3009 = vadd.f32 0.0, %v3008
      %v3010 = vpop.f32.mrf.mxu0
      %3011 = vmatprep.mubr.f32.mxu0 0.0
      %3012 = vmatmul.mubr.f32.gmra.mxu0 %v2797
      %v3013 = vpop.f32.mrf.mxu0
      %v3014 = vadd.f32 0.0, %v3013
      %v3015 = vpop.f32.mrf.mxu0
      %3016 = vmatprep.mubr.f32.mxu0 0.0
      %3017 = vmatmul.mubr.f32.gmra.mxu0 %v2800
      %v3018 = vpop.f32.mrf.mxu0
      %v3019 = vadd.f32 0.0, %v3018
      %v3020 = vpop.f32.mrf.mxu0
      %3021 = vmatprep.mubr.f32.mxu0 0.0
      %3022 = vmatmul.mubr.f32.gmra.mxu0 %v2803
      %v3023 = vpop.f32.mrf.mxu0
      %v3024 = vadd.f32 0.0, %v3023
      %v3025 = vpop.f32.mrf.mxu0
      %3026 = vmatprep.mubr.f32.mxu0 0.0
      %3027 = vmatmul.mubr.f32.gmra.mxu0 %v2806
      %v3028 = vpop.f32.mrf.mxu0
      %v3029 = vadd.f32 0.0, %v3028
      %v3030 = vpop.f32.mrf.mxu0
      %3031 = vmatprep.mubr.f32.mxu0 0.0
      %3032 = vmatmul.mubr.f32.gmra.mxu0 %v2809
      %v3033 = vpop.f32.mrf.mxu0
      %v3034 = vadd.f32 0.0, %v3033
      %v3035 = vpop.f32.mrf.mxu0
      %3036 = vmatprep.mubr.f32.mxu0 0.0
      %3037 = vmatmul.mubr.f32.gmra.mxu0 %v2812
      %v3038 = vpop.f32.mrf.mxu0
      %v3039 = vadd.f32 0.0, %v3038
      %v3040 = vpop.f32.mrf.mxu0
      %3041 = vdwg.mxu0
      %v3042 = vadd.f32 %v2651, %v2884
      %v3043 = vadd.f32 %v2652, %v2889
      %v3044 = vadd.f32 %v2653, %v2894
      %v3045 = vadd.f32 %v2654, %v2899
      %v3046 = vadd.f32 %v2655, %v2904
      %v3047 = vadd.f32 %v2656, %v2909
      %v3048 = vadd.f32 %v2657, %v2914
      %v3049 = vadd.f32 %v2658, %v2919
      %v3050 = vadd.f32 %v2659, %v2924
      %v3051 = vadd.f32 %v2660, %v2929
      %v3052 = vadd.f32 %v2661, %v2934
      %v3053 = vadd.f32 %v2662, %v2939
      %v3054 = vadd.f32 %v2663, %v2944
      %v3055 = vadd.f32 %v2664, %v2949
      %v3056 = vadd.f32 %v2665, %v2954
      %v3057 = vadd.f32 %v2666, %v2959
      %v3058 = vadd.f32 %v2667, %v2964
      %v3059 = vadd.f32 %v2668, %v2969
      %v3060 = vadd.f32 %v2669, %v2974
      %v3061 = vadd.f32 %v2670, %v2979
      %v3062 = vadd.f32 %v2671, %v2984
      %v3063 = vadd.f32 %v2672, %v2989
      %v3064 = vadd.f32 %v2673, %v2994
      %v3065 = vadd.f32 %v2674, %v2999
      %v3066 = vadd.f32 %v2675, %v3004
      %v3067 = vadd.f32 %v2676, %v3009
      %v3068 = vadd.f32 %v2677, %v3014
      %v3069 = vadd.f32 %v2678, %v3019
      %v3070 = vadd.f32 %v2679, %v3024
      %v3071 = vadd.f32 %v2680, %v3029
      %v3072 = vadd.f32 %v2681, %v3034
      %v3073 = vadd.f32 %v2682, %v3039
      %v3074 = vld [vmem:[%s2683 + $0x1] sm:$0xff]
      %v3075 = vld [vmem:[%s2683 + $0x9] sm:$0xff]
      %v3076 = vld [vmem:[%s2683 + $0x19] sm:$0xff]
      %v3077 = vld [vmem:[%s2683 + $0x21] sm:$0xff]
      %v3078 = vld [vmem:[%s2683 + $0x31] sm:$0xff]
      %v3079 = vld [vmem:[%s2683 + $0x39] sm:$0xff]
      %v3080 = vld [vmem:[%s2683 + $0x49] sm:$0xff]
      %v3081 = vld [vmem:[%s2683 + $0x51] sm:$0xff]
      %v3082 = vld [vmem:[%s2683 + $0x61] sm:$0xff]
      %v3083 = vld [vmem:[%s2683 + $0x69] sm:$0xff]
      %v3084 = vld [vmem:[%s2683 + $0x79] sm:$0xff]
      %v3085 = vld [vmem:[%s2683 + $0x81] sm:$0xff]
      %v3086 = vld [vmem:[%s2683 + $0x91] sm:$0xff]
      %v3087 = vld [vmem:[%s2683 + $0x99] sm:$0xff]
      %v3088 = vld [vmem:[%s2683 + $0xa9] sm:$0xff]
      %v3089 = vld [vmem:[%s2683 + $0xb1] sm:$0xff]
      %v3090 = vld [vmem:[%s2683 + $0xc1] sm:$0xff]
      %v3091 = vld [vmem:[%s2683 + $0xc9] sm:$0xff]
      %v3092 = vld [vmem:[%s2683 + $0xd9] sm:$0xff]
      %v3093 = vld [vmem:[%s2683 + $0xe1] sm:$0xff]
      %v3094 = vld [vmem:[%s2683 + $0xf1] sm:$0xff]
      %v3095 = vld [vmem:[%s2683 + $0xf9] sm:$0xff]
      %v3096 = vld [vmem:[%s2683 + $0x109] sm:$0xff]
      %v3097 = vld [vmem:[%s2683 + $0x111] sm:$0xff]
      %v3098 = vld [vmem:[%s2683 + $0x121] sm:$0xff]
      %v3099 = vld [vmem:[%s2683 + $0x129] sm:$0xff]
      %v3100 = vld [vmem:[%s2683 + $0x139] sm:$0xff]
      %v3101 = vld [vmem:[%s2683 + $0x141] sm:$0xff]
      %v3102 = vld [vmem:[%s2683 + $0x151] sm:$0xff]
      %v3103 = vld [vmem:[%s2683 + $0x159] sm:$0xff]
      %v3104 = vld [vmem:[%s2683 + $0x169] sm:$0xff]
      %v3105 = vld [vmem:[%s2683 + $0x171] sm:$0xff]
      %s3106 = scalar_lea.vmem %s2, 28
      %v3107 = vld [vmem:[%s3106] sm:$0xf]
      %v3109 = vsel %vm343, %v3074, 0
      %v3112 = vsel %vm343, %v3075, 0
      %v3115 = vsel %vm343, %v3076, 0
      %v3118 = vsel %vm343, %v3077, 0
      %v3121 = vsel %vm343, %v3078, 0
      %v3124 = vsel %vm343, %v3079, 0
      %v3127 = vsel %vm343, %v3080, 0
      %v3130 = vsel %vm343, %v3081, 0
      %v3133 = vsel %vm343, %v3082, 0
      %v3136 = vsel %vm343, %v3083, 0
      %v3139 = vsel %vm343, %v3084, 0
      %v3142 = vsel %vm343, %v3085, 0
      %v3145 = vsel %vm343, %v3086, 0
      %v3148 = vsel %vm343, %v3087, 0
      %v3151 = vsel %vm343, %v3088, 0
      %v3154 = vsel %vm343, %v3089, 0
      %v3157 = vsel %vm343, %v3090, 0
      %v3160 = vsel %vm343, %v3091, 0
      %v3163 = vsel %vm343, %v3092, 0
      %v3166 = vsel %vm343, %v3093, 0
      %v3169 = vsel %vm343, %v3094, 0
      %v3172 = vsel %vm343, %v3095, 0
      %v3175 = vsel %vm343, %v3096, 0
      %v3178 = vsel %vm343, %v3097, 0
      %v3181 = vsel %vm343, %v3098, 0
      %v3184 = vsel %vm343, %v3099, 0
      %v3187 = vsel %vm343, %v3100, 0
      %v3190 = vsel %vm343, %v3101, 0
      %v3193 = vsel %vm343, %v3102, 0
      %v3196 = vsel %vm343, %v3103, 0
      %v3199 = vsel %vm343, %v3104, 0
      %v3202 = vsel %vm343, %v3105, 0
      %v3205 = vsel %vm569, %v3107, 0
      %3207 = vmatprep.subr.mxu0 0.0
      %3208 = vmatpush1.msra.mxu0 0.0
      %3209 = vmatprep.subr.mxu0 0.0
      %3210 = vmatpush1.msra.mxu0 0.0
      %3211 = vmatprep.subr.mxu0 0.0
      %3212 = vmatpush1.msra.mxu0 0.0
      %3213 = vmatprep.subr.mxu0 0.0
      %3214 = vmatpush1.msra.mxu0 0.0
      %3215 = vmatprep.subr.mxu0 0.0
      %3216 = vmatpush1.msra.mxu0 0.0
      %3217 = vmatprep.subr.mxu0 0.0
      %3218 = vmatpush1.msra.mxu0 0.0
      %3219 = vmatprep.subr.mxu0 0.0
      %3220 = vmatpush1.msra.mxu0 0.0
      %3221 = vmatprep.subr.mxu0 0.0
      %3222 = vmatpush1.msra.mxu0 0.0
      %3223 = vmatprep.subr.mxu0 0.0
      %3224 = vmatpush1.msra.mxu0 0.0
      %3225 = vmatprep.subr.mxu0 0.0
      %3226 = vmatpush1.msra.mxu0 0.0
      %3227 = vmatprep.subr.mxu0 0.0
      %3228 = vmatpush1.msra.mxu0 0.0
      %3229 = vmatprep.subr.mxu0 0.0
      %3230 = vmatpush1.msra.mxu0 0.0
      %3231 = vmatprep.subr.mxu0 0.0
      %3232 = vmatpush1.msra.mxu0 0.0
      %3233 = vmatprep.subr.mxu0 0.0
      %3234 = vmatpush1.msra.mxu0 0.0
      %3235 = vmatprep.subr.mxu0 0.0
      %3236 = vmatpush1.msra.mxu0 0.0
      %3237 = vmatprep.subr.mxu0 0.0
      %3238 = vmatpush1.msra.mxu0 %v3205
      %3239 = vmatprep.subr.mxu0 0.0
      %3240 = vmatpush2.msra.mxu0 0.0
      %3241 = vmatprep.subr.mxu0 0.0
      %3242 = vmatpush2.msra.mxu0 0.0
      %3243 = vmatprep.subr.mxu0 0.0
      %3244 = vmatpush2.msra.mxu0 0.0
      %3245 = vmatprep.subr.mxu0 0.0
      %3246 = vmatpush2.msra.mxu0 0.0
      %3247 = vmatprep.subr.mxu0 0.0
      %3248 = vmatpush2.msra.mxu0 0.0
      %3249 = vmatprep.subr.mxu0 0.0
      %3250 = vmatpush2.msra.mxu0 0.0
      %3251 = vmatprep.subr.mxu0 0.0
      %3252 = vmatpush2.msra.mxu0 0.0
      %3253 = vmatprep.subr.mxu0 0.0
      %3254 = vmatpush2.msra.mxu0 0.0
      %3255 = vmatprep.subr.mxu0 0.0
      %3256 = vmatpush2.msra.mxu0 0.0
      %3257 = vmatprep.subr.mxu0 0.0
      %3258 = vmatpush2.msra.mxu0 0.0
      %3259 = vmatprep.subr.mxu0 0.0
      %3260 = vmatpush2.msra.mxu0 0.0
      %3261 = vmatprep.subr.mxu0 0.0
      %3262 = vmatpush2.msra.mxu0 0.0
      %3263 = vmatprep.subr.mxu0 0.0
      %3264 = vmatpush2.msra.mxu0 0.0
      %3265 = vmatprep.subr.mxu0 0.0
      %3266 = vmatpush2.msra.mxu0 0.0
      %3267 = vmatprep.subr.mxu0 0.0
      %3268 = vmatpush2.msra.mxu0 0.0
      %3269 = vmatprep.subr.mxu0 0.0
      %3270 = vmatpush2.msra.mxu0 0.0
      %3271 = vmatprep.mubr.f32.mxu0 0.0
      %3272 = vmatmul.mubr.f32.gmra.mxu0 %v3109
      %v3273 = vpop.f32.mrf.mxu0
      %v3274 = vadd.f32 0.0, %v3273
      %v3275 = vpop.f32.mrf.mxu0
      %3276 = vmatprep.mubr.f32.mxu0 0.0
      %3277 = vmatmul.mubr.f32.gmra.mxu0 %v3112
      %v3278 = vpop.f32.mrf.mxu0
      %v3279 = vadd.f32 0.0, %v3278
      %v3280 = vpop.f32.mrf.mxu0
      %3281 = vmatprep.mubr.f32.mxu0 0.0
      %3282 = vmatmul.mubr.f32.gmra.mxu0 %v3115
      %v3283 = vpop.f32.mrf.mxu0
      %v3284 = vadd.f32 0.0, %v3283
      %v3285 = vpop.f32.mrf.mxu0
      %3286 = vmatprep.mubr.f32.mxu0 0.0
      %3287 = vmatmul.mubr.f32.gmra.mxu0 %v3118
      %v3288 = vpop.f32.mrf.mxu0
      %v3289 = vadd.f32 0.0, %v3288
      %v3290 = vpop.f32.mrf.mxu0
      %3291 = vmatprep.mubr.f32.mxu0 0.0
      %3292 = vmatmul.mubr.f32.gmra.mxu0 %v3121
      %v3293 = vpop.f32.mrf.mxu0
      %v3294 = vadd.f32 0.0, %v3293
      %v3295 = vpop.f32.mrf.mxu0
      %3296 = vmatprep.mubr.f32.mxu0 0.0
      %3297 = vmatmul.mubr.f32.gmra.mxu0 %v3124
      %v3298 = vpop.f32.mrf.mxu0
      %v3299 = vadd.f32 0.0, %v3298
      %v3300 = vpop.f32.mrf.mxu0
      %3301 = vmatprep.mubr.f32.mxu0 0.0
      %3302 = vmatmul.mubr.f32.gmra.mxu0 %v3127
      %v3303 = vpop.f32.mrf.mxu0
      %v3304 = vadd.f32 0.0, %v3303
      %v3305 = vpop.f32.mrf.mxu0
      %3306 = vmatprep.mubr.f32.mxu0 0.0
      %3307 = vmatmul.mubr.f32.gmra.mxu0 %v3130
      %v3308 = vpop.f32.mrf.mxu0
      %v3309 = vadd.f32 0.0, %v3308
      %v3310 = vpop.f32.mrf.mxu0
      %3311 = vmatprep.mubr.f32.mxu0 0.0
      %3312 = vmatmul.mubr.f32.gmra.mxu0 %v3133
      %v3313 = vpop.f32.mrf.mxu0
      %v3314 = vadd.f32 0.0, %v3313
      %v3315 = vpop.f32.mrf.mxu0
      %3316 = vmatprep.mubr.f32.mxu0 0.0
      %3317 = vmatmul.mubr.f32.gmra.mxu0 %v3136
      %v3318 = vpop.f32.mrf.mxu0
      %v3319 = vadd.f32 0.0, %v3318
      %v3320 = vpop.f32.mrf.mxu0
      %3321 = vmatprep.mubr.f32.mxu0 0.0
      %3322 = vmatmul.mubr.f32.gmra.mxu0 %v3139
      %v3323 = vpop.f32.mrf.mxu0
      %v3324 = vadd.f32 0.0, %v3323
      %v3325 = vpop.f32.mrf.mxu0
      %3326 = vmatprep.mubr.f32.mxu0 0.0
      %3327 = vmatmul.mubr.f32.gmra.mxu0 %v3142
      %v3328 = vpop.f32.mrf.mxu0
      %v3329 = vadd.f32 0.0, %v3328
      %v3330 = vpop.f32.mrf.mxu0
      %3331 = vmatprep.mubr.f32.mxu0 0.0
      %3332 = vmatmul.mubr.f32.gmra.mxu0 %v3145
      %v3333 = vpop.f32.mrf.mxu0
      %v3334 = vadd.f32 0.0, %v3333
      %v3335 = vpop.f32.mrf.mxu0
      %3336 = vmatprep.mubr.f32.mxu0 0.0
      %3337 = vmatmul.mubr.f32.gmra.mxu0 %v3148
      %v3338 = vpop.f32.mrf.mxu0
      %v3339 = vadd.f32 0.0, %v3338
      %v3340 = vpop.f32.mrf.mxu0
      %3341 = vmatprep.mubr.f32.mxu0 0.0
      %3342 = vmatmul.mubr.f32.gmra.mxu0 %v3151
      %v3343 = vpop.f32.mrf.mxu0
      %v3344 = vadd.f32 0.0, %v3343
      %v3345 = vpop.f32.mrf.mxu0
      %3346 = vmatprep.mubr.f32.mxu0 0.0
      %3347 = vmatmul.mubr.f32.gmra.mxu0 %v3154
      %v3348 = vpop.f32.mrf.mxu0
      %v3349 = vadd.f32 0.0, %v3348
      %v3350 = vpop.f32.mrf.mxu0
      %3351 = vmatprep.mubr.f32.mxu0 0.0
      %3352 = vmatmul.mubr.f32.gmra.mxu0 %v3157
      %v3353 = vpop.f32.mrf.mxu0
      %v3354 = vadd.f32 0.0, %v3353
      %v3355 = vpop.f32.mrf.mxu0
      %3356 = vmatprep.mubr.f32.mxu0 0.0
      %3357 = vmatmul.mubr.f32.gmra.mxu0 %v3160
      %v3358 = vpop.f32.mrf.mxu0
      %v3359 = vadd.f32 0.0, %v3358
      %v3360 = vpop.f32.mrf.mxu0
      %3361 = vmatprep.mubr.f32.mxu0 0.0
      %3362 = vmatmul.mubr.f32.gmra.mxu0 %v3163
      %v3363 = vpop.f32.mrf.mxu0
      %v3364 = vadd.f32 0.0, %v3363
      %v3365 = vpop.f32.mrf.mxu0
      %3366 = vmatprep.mubr.f32.mxu0 0.0
      %3367 = vmatmul.mubr.f32.gmra.mxu0 %v3166
      %v3368 = vpop.f32.mrf.mxu0
      %v3369 = vadd.f32 0.0, %v3368
      %v3370 = vpop.f32.mrf.mxu0
      %3371 = vmatprep.mubr.f32.mxu0 0.0
      %3372 = vmatmul.mubr.f32.gmra.mxu0 %v3169
      %v3373 = vpop.f32.mrf.mxu0
      %v3374 = vadd.f32 0.0, %v3373
      %v3375 = vpop.f32.mrf.mxu0
      %3376 = vmatprep.mubr.f32.mxu0 0.0
      %3377 = vmatmul.mubr.f32.gmra.mxu0 %v3172
      %v3378 = vpop.f32.mrf.mxu0
      %v3379 = vadd.f32 0.0, %v3378
      %v3380 = vpop.f32.mrf.mxu0
      %3381 = vmatprep.mubr.f32.mxu0 0.0
      %3382 = vmatmul.mubr.f32.gmra.mxu0 %v3175
      %v3383 = vpop.f32.mrf.mxu0
      %v3384 = vadd.f32 0.0, %v3383
      %v3385 = vpop.f32.mrf.mxu0
      %3386 = vmatprep.mubr.f32.mxu0 0.0
      %3387 = vmatmul.mubr.f32.gmra.mxu0 %v3178
      %v3388 = vpop.f32.mrf.mxu0
      %v3389 = vadd.f32 0.0, %v3388
      %v3390 = vpop.f32.mrf.mxu0
      %3391 = vmatprep.mubr.f32.mxu0 0.0
      %3392 = vmatmul.mubr.f32.gmra.mxu0 %v3181
      %v3393 = vpop.f32.mrf.mxu0
      %v3394 = vadd.f32 0.0, %v3393
      %v3395 = vpop.f32.mrf.mxu0
      %3396 = vmatprep.mubr.f32.mxu0 0.0
      %3397 = vmatmul.mubr.f32.gmra.mxu0 %v3184
      %v3398 = vpop.f32.mrf.mxu0
      %v3399 = vadd.f32 0.0, %v3398
      %v3400 = vpop.f32.mrf.mxu0
      %3401 = vmatprep.mubr.f32.mxu0 0.0
      %3402 = vmatmul.mubr.f32.gmra.mxu0 %v3187
      %v3403 = vpop.f32.mrf.mxu0
      %v3404 = vadd.f32 0.0, %v3403
      %v3405 = vpop.f32.mrf.mxu0
      %3406 = vmatprep.mubr.f32.mxu0 0.0
      %3407 = vmatmul.mubr.f32.gmra.mxu0 %v3190
      %v3408 = vpop.f32.mrf.mxu0
      %v3409 = vadd.f32 0.0, %v3408
      %v3410 = vpop.f32.mrf.mxu0
      %3411 = vmatprep.mubr.f32.mxu0 0.0
      %3412 = vmatmul.mubr.f32.gmra.mxu0 %v3193
      %v3413 = vpop.f32.mrf.mxu0
      %v3414 = vadd.f32 0.0, %v3413
      %v3415 = vpop.f32.mrf.mxu0
      %3416 = vmatprep.mubr.f32.mxu0 0.0
      %3417 = vmatmul.mubr.f32.gmra.mxu0 %v3196
      %v3418 = vpop.f32.mrf.mxu0
      %v3419 = vadd.f32 0.0, %v3418
      %v3420 = vpop.f32.mrf.mxu0
      %3421 = vmatprep.mubr.f32.mxu0 0.0
      %3422 = vmatmul.mubr.f32.gmra.mxu0 %v3199
      %v3423 = vpop.f32.mrf.mxu0
      %v3424 = vadd.f32 0.0, %v3423
      %v3425 = vpop.f32.mrf.mxu0
      %3426 = vmatprep.mubr.f32.mxu0 0.0
      %3427 = vmatmul.mubr.f32.gmra.mxu0 %v3202
      %v3428 = vpop.f32.mrf.mxu0
      %v3429 = vadd.f32 0.0, %v3428
      %v3430 = vpop.f32.mrf.mxu0
      %3431 = vdwg.mxu0
      %v3432 = vadd.f32 %v3042, %v3274
      %v3433 = vadd.f32 %v3043, %v3279
      %v3434 = vadd.f32 %v3044, %v3284
      %v3435 = vadd.f32 %v3045, %v3289
      %v3436 = vadd.f32 %v3046, %v3294
      %v3437 = vadd.f32 %v3047, %v3299
      %v3438 = vadd.f32 %v3048, %v3304
      %v3439 = vadd.f32 %v3049, %v3309
      %v3440 = vadd.f32 %v3050, %v3314
      %v3441 = vadd.f32 %v3051, %v3319
      %v3442 = vadd.f32 %v3052, %v3324
      %v3443 = vadd.f32 %v3053, %v3329
      %v3444 = vadd.f32 %v3054, %v3334
      %v3445 = vadd.f32 %v3055, %v3339
      %v3446 = vadd.f32 %v3056, %v3344
      %v3447 = vadd.f32 %v3057, %v3349
      %v3448 = vadd.f32 %v3058, %v3354
      %v3449 = vadd.f32 %v3059, %v3359
      %v3450 = vadd.f32 %v3060, %v3364
      %v3451 = vadd.f32 %v3061, %v3369
      %v3452 = vadd.f32 %v3062, %v3374
      %v3453 = vadd.f32 %v3063, %v3379
      %v3454 = vadd.f32 %v3064, %v3384
      %v3455 = vadd.f32 %v3065, %v3389
      %v3456 = vadd.f32 %v3066, %v3394
      %v3457 = vadd.f32 %v3067, %v3399
      %v3458 = vadd.f32 %v3068, %v3404
      %v3459 = vadd.f32 %v3069, %v3409
      %v3460 = vadd.f32 %v3070, %v3414
      %v3461 = vadd.f32 %v3071, %v3419
      %v3462 = vadd.f32 %v3072, %v3424
      %v3463 = vadd.f32 %v3073, %v3429
      %v3464 = vld [vmem:[%s2683 + $0x2] sm:$0xff]
      %v3465 = vld [vmem:[%s2683 + $0xa] sm:$0xff]
      %v3466 = vld [vmem:[%s2683 + $0x1a] sm:$0xff]
      %v3467 = vld [vmem:[%s2683 + $0x22] sm:$0xff]
      %v3468 = vld [vmem:[%s2683 + $0x32] sm:$0xff]
      %v3469 = vld [vmem:[%s2683 + $0x3a] sm:$0xff]
      %v3470 = vld [vmem:[%s2683 + $0x4a] sm:$0xff]
      %v3471 = vld [vmem:[%s2683 + $0x52] sm:$0xff]
      %v3472 = vld [vmem:[%s2683 + $0x62] sm:$0xff]
      %v3473 = vld [vmem:[%s2683 + $0x6a] sm:$0xff]
      %v3474 = vld [vmem:[%s2683 + $0x7a] sm:$0xff]
      %v3475 = vld [vmem:[%s2683 + $0x82] sm:$0xff]
      %v3476 = vld [vmem:[%s2683 + $0x92] sm:$0xff]
      %v3477 = vld [vmem:[%s2683 + $0x9a] sm:$0xff]
      %v3478 = vld [vmem:[%s2683 + $0xaa] sm:$0xff]
      %v3479 = vld [vmem:[%s2683 + $0xb2] sm:$0xff]
      %v3480 = vld [vmem:[%s2683 + $0xc2] sm:$0xff]
      %v3481 = vld [vmem:[%s2683 + $0xca] sm:$0xff]
      %v3482 = vld [vmem:[%s2683 + $0xda] sm:$0xff]
      %v3483 = vld [vmem:[%s2683 + $0xe2] sm:$0xff]
      %v3484 = vld [vmem:[%s2683 + $0xf2] sm:$0xff]
      %v3485 = vld [vmem:[%s2683 + $0xfa] sm:$0xff]
      %v3486 = vld [vmem:[%s2683 + $0x10a] sm:$0xff]
      %v3487 = vld [vmem:[%s2683 + $0x112] sm:$0xff]
      %v3488 = vld [vmem:[%s2683 + $0x122] sm:$0xff]
      %v3489 = vld [vmem:[%s2683 + $0x12a] sm:$0xff]
      %v3490 = vld [vmem:[%s2683 + $0x13a] sm:$0xff]
      %v3491 = vld [vmem:[%s2683 + $0x142] sm:$0xff]
      %v3492 = vld [vmem:[%s2683 + $0x152] sm:$0xff]
      %v3493 = vld [vmem:[%s2683 + $0x15a] sm:$0xff]
      %v3494 = vld [vmem:[%s2683 + $0x16a] sm:$0xff]
      %v3495 = vld [vmem:[%s2683 + $0x172] sm:$0xff]
      %s3496 = scalar_lea.vmem %s2, 32
      %v3497 = vld [vmem:[%s3496] sm:$0xf]
      %v3499 = vsel %vm343, %v3464, 0
      %v3502 = vsel %vm343, %v3465, 0
      %v3505 = vsel %vm343, %v3466, 0
      %v3508 = vsel %vm343, %v3467, 0
      %v3511 = vsel %vm343, %v3468, 0
      %v3514 = vsel %vm343, %v3469, 0
      %v3517 = vsel %vm343, %v3470, 0
      %v3520 = vsel %vm343, %v3471, 0
      %v3523 = vsel %vm343, %v3472, 0
      %v3526 = vsel %vm343, %v3473, 0
      %v3529 = vsel %vm343, %v3474, 0
      %v3532 = vsel %vm343, %v3475, 0
      %v3535 = vsel %vm343, %v3476, 0
      %v3538 = vsel %vm343, %v3477, 0
      %v3541 = vsel %vm343, %v3478, 0
      %v3544 = vsel %vm343, %v3479, 0
      %v3547 = vsel %vm343, %v3480, 0
      %v3550 = vsel %vm343, %v3481, 0
      %v3553 = vsel %vm343, %v3482, 0
      %v3556 = vsel %vm343, %v3483, 0
      %v3559 = vsel %vm343, %v3484, 0
      %v3562 = vsel %vm343, %v3485, 0
      %v3565 = vsel %vm343, %v3486, 0
      %v3568 = vsel %vm343, %v3487, 0
      %v3571 = vsel %vm343, %v3488, 0
      %v3574 = vsel %vm343, %v3489, 0
      %v3577 = vsel %vm343, %v3490, 0
      %v3580 = vsel %vm343, %v3491, 0
      %v3583 = vsel %vm343, %v3492, 0
      %v3586 = vsel %vm343, %v3493, 0
      %v3589 = vsel %vm343, %v3494, 0
      %v3592 = vsel %vm343, %v3495, 0
      %v3595 = vsel %vm569, %v3497, 0
      %3597 = vmatprep.subr.mxu0 0.0
      %3598 = vmatpush1.msra.mxu0 0.0
      %3599 = vmatprep.subr.mxu0 0.0
      %3600 = vmatpush1.msra.mxu0 0.0
      %3601 = vmatprep.subr.mxu0 0.0
      %3602 = vmatpush1.msra.mxu0 0.0
      %3603 = vmatprep.subr.mxu0 0.0
      %3604 = vmatpush1.msra.mxu0 0.0
      %3605 = vmatprep.subr.mxu0 0.0
      %3606 = vmatpush1.msra.mxu0 0.0
      %3607 = vmatprep.subr.mxu0 0.0
      %3608 = vmatpush1.msra.mxu0 0.0
      %3609 = vmatprep.subr.mxu0 0.0
      %3610 = vmatpush1.msra.mxu0 0.0
      %3611 = vmatprep.subr.mxu0 0.0
      %3612 = vmatpush1.msra.mxu0 0.0
      %3613 = vmatprep.subr.mxu0 0.0
      %3614 = vmatpush1.msra.mxu0 0.0
      %3615 = vmatprep.subr.mxu0 0.0
      %3616 = vmatpush1.msra.mxu0 0.0
      %3617 = vmatprep.subr.mxu0 0.0
      %3618 = vmatpush1.msra.mxu0 0.0
      %3619 = vmatprep.subr.mxu0 0.0
      %3620 = vmatpush1.msra.mxu0 0.0
      %3621 = vmatprep.subr.mxu0 0.0
      %3622 = vmatpush1.msra.mxu0 0.0
      %3623 = vmatprep.subr.mxu0 0.0
      %3624 = vmatpush1.msra.mxu0 0.0
      %3625 = vmatprep.subr.mxu0 0.0
      %3626 = vmatpush1.msra.mxu0 0.0
      %3627 = vmatprep.subr.mxu0 0.0
      %3628 = vmatpush1.msra.mxu0 %v3595
      %3629 = vmatprep.subr.mxu0 0.0
      %3630 = vmatpush2.msra.mxu0 0.0
      %3631 = vmatprep.subr.mxu0 0.0
      %3632 = vmatpush2.msra.mxu0 0.0
      %3633 = vmatprep.subr.mxu0 0.0
      %3634 = vmatpush2.msra.mxu0 0.0
      %3635 = vmatprep.subr.mxu0 0.0
      %3636 = vmatpush2.msra.mxu0 0.0
      %3637 = vmatprep.subr.mxu0 0.0
      %3638 = vmatpush2.msra.mxu0 0.0
      %3639 = vmatprep.subr.mxu0 0.0
      %3640 = vmatpush2.msra.mxu0 0.0
      %3641 = vmatprep.subr.mxu0 0.0
      %3642 = vmatpush2.msra.mxu0 0.0
      %3643 = vmatprep.subr.mxu0 0.0
      %3644 = vmatpush2.msra.mxu0 0.0
      %3645 = vmatprep.subr.mxu0 0.0
      %3646 = vmatpush2.msra.mxu0 0.0
      %3647 = vmatprep.subr.mxu0 0.0
      %3648 = vmatpush2.msra.mxu0 0.0
      %3649 = vmatprep.subr.mxu0 0.0
      %3650 = vmatpush2.msra.mxu0 0.0
      %3651 = vmatprep.subr.mxu0 0.0
      %3652 = vmatpush2.msra.mxu0 0.0
      %3653 = vmatprep.subr.mxu0 0.0
      %3654 = vmatpush2.msra.mxu0 0.0
      %3655 = vmatprep.subr.mxu0 0.0
      %3656 = vmatpush2.msra.mxu0 0.0
      %3657 = vmatprep.subr.mxu0 0.0
      %3658 = vmatpush2.msra.mxu0 0.0
      %3659 = vmatprep.subr.mxu0 0.0
      %3660 = vmatpush2.msra.mxu0 0.0
      %3661 = vmatprep.mubr.f32.mxu0 0.0
      %3662 = vmatmul.mubr.f32.gmra.mxu0 %v3499
      %v3663 = vpop.f32.mrf.mxu0
      %v3664 = vadd.f32 0.0, %v3663
      %v3665 = vpop.f32.mrf.mxu0
      %3666 = vmatprep.mubr.f32.mxu0 0.0
      %3667 = vmatmul.mubr.f32.gmra.mxu0 %v3502
      %v3668 = vpop.f32.mrf.mxu0
      %v3669 = vadd.f32 0.0, %v3668
      %v3670 = vpop.f32.mrf.mxu0
      %3671 = vmatprep.mubr.f32.mxu0 0.0
      %3672 = vmatmul.mubr.f32.gmra.mxu0 %v3505
      %v3673 = vpop.f32.mrf.mxu0
      %v3674 = vadd.f32 0.0, %v3673
      %v3675 = vpop.f32.mrf.mxu0
      %3676 = vmatprep.mubr.f32.mxu0 0.0
      %3677 = vmatmul.mubr.f32.gmra.mxu0 %v3508
      %v3678 = vpop.f32.mrf.mxu0
      %v3679 = vadd.f32 0.0, %v3678
      %v3680 = vpop.f32.mrf.mxu0
      %3681 = vmatprep.mubr.f32.mxu0 0.0
      %3682 = vmatmul.mubr.f32.gmra.mxu0 %v3511
      %v3683 = vpop.f32.mrf.mxu0
      %v3684 = vadd.f32 0.0, %v3683
      %v3685 = vpop.f32.mrf.mxu0
      %3686 = vmatprep.mubr.f32.mxu0 0.0
      %3687 = vmatmul.mubr.f32.gmra.mxu0 %v3514
      %v3688 = vpop.f32.mrf.mxu0
      %v3689 = vadd.f32 0.0, %v3688
      %v3690 = vpop.f32.mrf.mxu0
      %3691 = vmatprep.mubr.f32.mxu0 0.0
      %3692 = vmatmul.mubr.f32.gmra.mxu0 %v3517
      %v3693 = vpop.f32.mrf.mxu0
      %v3694 = vadd.f32 0.0, %v3693
      %v3695 = vpop.f32.mrf.mxu0
      %3696 = vmatprep.mubr.f32.mxu0 0.0
      %3697 = vmatmul.mubr.f32.gmra.mxu0 %v3520
      %v3698 = vpop.f32.mrf.mxu0
      %v3699 = vadd.f32 0.0, %v3698
      %v3700 = vpop.f32.mrf.mxu0
      %3701 = vmatprep.mubr.f32.mxu0 0.0
      %3702 = vmatmul.mubr.f32.gmra.mxu0 %v3523
      %v3703 = vpop.f32.mrf.mxu0
      %v3704 = vadd.f32 0.0, %v3703
      %v3705 = vpop.f32.mrf.mxu0
      %3706 = vmatprep.mubr.f32.mxu0 0.0
      %3707 = vmatmul.mubr.f32.gmra.mxu0 %v3526
      %v3708 = vpop.f32.mrf.mxu0
      %v3709 = vadd.f32 0.0, %v3708
      %v3710 = vpop.f32.mrf.mxu0
      %3711 = vmatprep.mubr.f32.mxu0 0.0
      %3712 = vmatmul.mubr.f32.gmra.mxu0 %v3529
      %v3713 = vpop.f32.mrf.mxu0
      %v3714 = vadd.f32 0.0, %v3713
      %v3715 = vpop.f32.mrf.mxu0
      %3716 = vmatprep.mubr.f32.mxu0 0.0
      %3717 = vmatmul.mubr.f32.gmra.mxu0 %v3532
      %v3718 = vpop.f32.mrf.mxu0
      %v3719 = vadd.f32 0.0, %v3718
      %v3720 = vpop.f32.mrf.mxu0
      %3721 = vmatprep.mubr.f32.mxu0 0.0
      %3722 = vmatmul.mubr.f32.gmra.mxu0 %v3535
      %v3723 = vpop.f32.mrf.mxu0
      %v3724 = vadd.f32 0.0, %v3723
      %v3725 = vpop.f32.mrf.mxu0
      %3726 = vmatprep.mubr.f32.mxu0 0.0
      %3727 = vmatmul.mubr.f32.gmra.mxu0 %v3538
      %v3728 = vpop.f32.mrf.mxu0
      %v3729 = vadd.f32 0.0, %v3728
      %v3730 = vpop.f32.mrf.mxu0
      %3731 = vmatprep.mubr.f32.mxu0 0.0
      %3732 = vmatmul.mubr.f32.gmra.mxu0 %v3541
      %v3733 = vpop.f32.mrf.mxu0
      %v3734 = vadd.f32 0.0, %v3733
      %v3735 = vpop.f32.mrf.mxu0
      %3736 = vmatprep.mubr.f32.mxu0 0.0
      %3737 = vmatmul.mubr.f32.gmra.mxu0 %v3544
      %v3738 = vpop.f32.mrf.mxu0
      %v3739 = vadd.f32 0.0, %v3738
      %v3740 = vpop.f32.mrf.mxu0
      %3741 = vmatprep.mubr.f32.mxu0 0.0
      %3742 = vmatmul.mubr.f32.gmra.mxu0 %v3547
      %v3743 = vpop.f32.mrf.mxu0
      %v3744 = vadd.f32 0.0, %v3743
      %v3745 = vpop.f32.mrf.mxu0
      %3746 = vmatprep.mubr.f32.mxu0 0.0
      %3747 = vmatmul.mubr.f32.gmra.mxu0 %v3550
      %v3748 = vpop.f32.mrf.mxu0
      %v3749 = vadd.f32 0.0, %v3748
      %v3750 = vpop.f32.mrf.mxu0
      %3751 = vmatprep.mubr.f32.mxu0 0.0
      %3752 = vmatmul.mubr.f32.gmra.mxu0 %v3553
      %v3753 = vpop.f32.mrf.mxu0
      %v3754 = vadd.f32 0.0, %v3753
      %v3755 = vpop.f32.mrf.mxu0
      %3756 = vmatprep.mubr.f32.mxu0 0.0
      %3757 = vmatmul.mubr.f32.gmra.mxu0 %v3556
      %v3758 = vpop.f32.mrf.mxu0
      %v3759 = vadd.f32 0.0, %v3758
      %v3760 = vpop.f32.mrf.mxu0
      %3761 = vmatprep.mubr.f32.mxu0 0.0
      %3762 = vmatmul.mubr.f32.gmra.mxu0 %v3559
      %v3763 = vpop.f32.mrf.mxu0
      %v3764 = vadd.f32 0.0, %v3763
      %v3765 = vpop.f32.mrf.mxu0
      %3766 = vmatprep.mubr.f32.mxu0 0.0
      %3767 = vmatmul.mubr.f32.gmra.mxu0 %v3562
      %v3768 = vpop.f32.mrf.mxu0
      %v3769 = vadd.f32 0.0, %v3768
      %v3770 = vpop.f32.mrf.mxu0
      %3771 = vmatprep.mubr.f32.mxu0 0.0
      %3772 = vmatmul.mubr.f32.gmra.mxu0 %v3565
      %v3773 = vpop.f32.mrf.mxu0
      %v3774 = vadd.f32 0.0, %v3773
      %v3775 = vpop.f32.mrf.mxu0
      %3776 = vmatprep.mubr.f32.mxu0 0.0
      %3777 = vmatmul.mubr.f32.gmra.mxu0 %v3568
      %v3778 = vpop.f32.mrf.mxu0
      %v3779 = vadd.f32 0.0, %v3778
      %v3780 = vpop.f32.mrf.mxu0
      %3781 = vmatprep.mubr.f32.mxu0 0.0
      %3782 = vmatmul.mubr.f32.gmra.mxu0 %v3571
      %v3783 = vpop.f32.mrf.mxu0
      %v3784 = vadd.f32 0.0, %v3783
      %v3785 = vpop.f32.mrf.mxu0
      %3786 = vmatprep.mubr.f32.mxu0 0.0
      %3787 = vmatmul.mubr.f32.gmra.mxu0 %v3574
      %v3788 = vpop.f32.mrf.mxu0
      %v3789 = vadd.f32 0.0, %v3788
      %v3790 = vpop.f32.mrf.mxu0
      %3791 = vmatprep.mubr.f32.mxu0 0.0
      %3792 = vmatmul.mubr.f32.gmra.mxu0 %v3577
      %v3793 = vpop.f32.mrf.mxu0
      %v3794 = vadd.f32 0.0, %v3793
      %v3795 = vpop.f32.mrf.mxu0
      %3796 = vmatprep.mubr.f32.mxu0 0.0
      %3797 = vmatmul.mubr.f32.gmra.mxu0 %v3580
      %v3798 = vpop.f32.mrf.mxu0
      %v3799 = vadd.f32 0.0, %v3798
      %v3800 = vpop.f32.mrf.mxu0
      %3801 = vmatprep.mubr.f32.mxu0 0.0
      %3802 = vmatmul.mubr.f32.gmra.mxu0 %v3583
      %v3803 = vpop.f32.mrf.mxu0
      %v3804 = vadd.f32 0.0, %v3803
      %v3805 = vpop.f32.mrf.mxu0
      %3806 = vmatprep.mubr.f32.mxu0 0.0
      %3807 = vmatmul.mubr.f32.gmra.mxu0 %v3586
      %v3808 = vpop.f32.mrf.mxu0
      %v3809 = vadd.f32 0.0, %v3808
      %v3810 = vpop.f32.mrf.mxu0
      %3811 = vmatprep.mubr.f32.mxu0 0.0
      %3812 = vmatmul.mubr.f32.gmra.mxu0 %v3589
      %v3813 = vpop.f32.mrf.mxu0
      %v3814 = vadd.f32 0.0, %v3813
      %v3815 = vpop.f32.mrf.mxu0
      %3816 = vmatprep.mubr.f32.mxu0 0.0
      %3817 = vmatmul.mubr.f32.gmra.mxu0 %v3592
      %v3818 = vpop.f32.mrf.mxu0
      %v3819 = vadd.f32 0.0, %v3818
      %v3820 = vpop.f32.mrf.mxu0
      %3821 = vdwg.mxu0
      %v3822 = vadd.f32 %v3432, %v3664
      %v3823 = vadd.f32 %v3433, %v3669
      %v3824 = vadd.f32 %v3434, %v3674
      %v3825 = vadd.f32 %v3435, %v3679
      %v3826 = vadd.f32 %v3436, %v3684
      %v3827 = vadd.f32 %v3437, %v3689
      %v3828 = vadd.f32 %v3438, %v3694
      %v3829 = vadd.f32 %v3439, %v3699
      %v3830 = vadd.f32 %v3440, %v3704
      %v3831 = vadd.f32 %v3441, %v3709
      %v3832 = vadd.f32 %v3442, %v3714
      %v3833 = vadd.f32 %v3443, %v3719
      %v3834 = vadd.f32 %v3444, %v3724
      %v3835 = vadd.f32 %v3445, %v3729
      %v3836 = vadd.f32 %v3446, %v3734
      %v3837 = vadd.f32 %v3447, %v3739
      %v3838 = vadd.f32 %v3448, %v3744
      %v3839 = vadd.f32 %v3449, %v3749
      %v3840 = vadd.f32 %v3450, %v3754
      %v3841 = vadd.f32 %v3451, %v3759
      %v3842 = vadd.f32 %v3452, %v3764
      %v3843 = vadd.f32 %v3453, %v3769
      %v3844 = vadd.f32 %v3454, %v3774
      %v3845 = vadd.f32 %v3455, %v3779
      %v3846 = vadd.f32 %v3456, %v3784
      %v3847 = vadd.f32 %v3457, %v3789
      %v3848 = vadd.f32 %v3458, %v3794
      %v3849 = vadd.f32 %v3459, %v3799
      %v3850 = vadd.f32 %v3460, %v3804
      %v3851 = vadd.f32 %v3461, %v3809
      %v3852 = vadd.f32 %v3462, %v3814
      %v3853 = vadd.f32 %v3463, %v3819
      %v3854 = vld [vmem:[%s3] sm:$0x1]
      %v3856 = vlaneseq
      %v3857 = vshrl.u32 %v3856, 7
      %v3858 = vsub.s32 0, %v3857
      %v3859 = vrot.slane %v3854, %v3858
      %v3861 = vadd.f32 %v3822, %v3859
      %v3862 = vadd.f32 %v3823, %v3859
      %v3863 = vadd.f32 %v3824, %v3859
      %v3864 = vadd.f32 %v3825, %v3859
      %v3865 = vadd.f32 %v3826, %v3859
      %v3866 = vadd.f32 %v3827, %v3859
      %v3867 = vadd.f32 %v3828, %v3859
      %v3868 = vadd.f32 %v3829, %v3859
      %v3869 = vadd.f32 %v3830, %v3859
      %v3870 = vadd.f32 %v3831, %v3859
      %v3871 = vadd.f32 %v3832, %v3859
      %v3872 = vadd.f32 %v3833, %v3859
      %v3873 = vadd.f32 %v3834, %v3859
      %v3874 = vadd.f32 %v3835, %v3859
      %v3875 = vadd.f32 %v3836, %v3859
      %v3876 = vadd.f32 %v3837, %v3859
      %v3877 = vadd.f32 %v3838, %v3859
      %v3878 = vadd.f32 %v3839, %v3859
      %v3879 = vadd.f32 %v3840, %v3859
      %v3880 = vadd.f32 %v3841, %v3859
      %v3881 = vadd.f32 %v3842, %v3859
      %v3882 = vadd.f32 %v3843, %v3859
      %v3883 = vadd.f32 %v3844, %v3859
      %v3884 = vadd.f32 %v3845, %v3859
      %v3885 = vadd.f32 %v3846, %v3859
      %v3886 = vadd.f32 %v3847, %v3859
      %v3887 = vadd.f32 %v3848, %v3859
      %v3888 = vadd.f32 %v3849, %v3859
      %v3889 = vadd.f32 %v3850, %v3859
      %v3890 = vadd.f32 %v3851, %v3859
      %v3891 = vadd.f32 %v3852, %v3859
      %v3892 = vadd.f32 %v3853, %v3859
      %v3893 = vmax.f32 %v3861, 0.0
      %v3894 = vmax.f32 %v3862, 0.0
      %v3895 = vmax.f32 %v3863, 0.0
      %v3896 = vmax.f32 %v3864, 0.0
      %v3897 = vmax.f32 %v3865, 0.0
      %v3898 = vmax.f32 %v3866, 0.0
      %v3899 = vmax.f32 %v3867, 0.0
      %v3900 = vmax.f32 %v3868, 0.0
      %v3901 = vmax.f32 %v3869, 0.0
      %v3902 = vmax.f32 %v3870, 0.0
      %v3903 = vmax.f32 %v3871, 0.0
      %v3904 = vmax.f32 %v3872, 0.0
      %v3905 = vmax.f32 %v3873, 0.0
      %v3906 = vmax.f32 %v3874, 0.0
      %v3907 = vmax.f32 %v3875, 0.0
      %v3908 = vmax.f32 %v3876, 0.0
      %v3909 = vmax.f32 %v3877, 0.0
      %v3910 = vmax.f32 %v3878, 0.0
      %v3911 = vmax.f32 %v3879, 0.0
      %v3912 = vmax.f32 %v3880, 0.0
      %v3913 = vmax.f32 %v3881, 0.0
      %v3914 = vmax.f32 %v3882, 0.0
      %v3915 = vmax.f32 %v3883, 0.0
      %v3916 = vmax.f32 %v3884, 0.0
      %v3917 = vmax.f32 %v3885, 0.0
      %v3918 = vmax.f32 %v3886, 0.0
      %v3919 = vmax.f32 %v3887, 0.0
      %v3920 = vmax.f32 %v3888, 0.0
      %v3921 = vmax.f32 %v3889, 0.0
      %v3922 = vmax.f32 %v3890, 0.0
      %v3923 = vmax.f32 %v3891, 0.0
      %v3924 = vmax.f32 %v3892, 0.0
      %v3925 = vadd.f32 %v1903, %v3893
      %v3926 = vadd.f32 %v1904, %v3894
      %v3927 = vadd.f32 %v1905, %v3895
      %v3928 = vadd.f32 %v1906, %v3896
      %v3929 = vadd.f32 %v1907, %v3897
      %v3930 = vadd.f32 %v1908, %v3898
      %v3931 = vadd.f32 %v1909, %v3899
      %v3932 = vadd.f32 %v1910, %v3900
      %v3933 = vadd.f32 %v1911, %v3901
      %v3934 = vadd.f32 %v1912, %v3902
      %v3935 = vadd.f32 %v1913, %v3903
      %v3936 = vadd.f32 %v1914, %v3904
      %v3937 = vadd.f32 %v1915, %v3905
      %v3938 = vadd.f32 %v1916, %v3906
      %v3939 = vadd.f32 %v1917, %v3907
      %v3940 = vadd.f32 %v1918, %v3908
      %v3941 = vadd.f32 %v1919, %v3909
      %v3942 = vadd.f32 %v1920, %v3910
      %v3943 = vadd.f32 %v1921, %v3911
      %v3944 = vadd.f32 %v1922, %v3912
      %v3945 = vadd.f32 %v1923, %v3913
      %v3946 = vadd.f32 %v1924, %v3914
      %v3947 = vadd.f32 %v1925, %v3915
      %v3948 = vadd.f32 %v1926, %v3916
      %v3949 = vadd.f32 %v1927, %v3917
      %v3950 = vadd.f32 %v1928, %v3918
      %v3951 = vadd.f32 %v1929, %v3919
      %v3952 = vadd.f32 %v1930, %v3920
      %v3953 = vadd.f32 %v1931, %v3921
      %v3954 = vadd.f32 %v1932, %v3922
      %v3955 = vadd.f32 %v1933, %v3923
      %v3956 = vadd.f32 %v1934, %v3924
      %3957 = vst.msk [vmem:[%s293] sm:$0xff] %vm343, %v3925
      %3958 = vst.msk [vmem:[%s293 + $0x8] sm:$0xff] %vm343, %v3926
      %3959 = vst.msk [vmem:[%s293 + $0x10] sm:$0xff] %vm343, %v3927
      %3960 = vst.msk [vmem:[%s293 + $0x18] sm:$0xff] %vm343, %v3928
      %3961 = vst.msk [vmem:[%s293 + $0x20] sm:$0xff] %vm343, %v3929
      %3962 = vst.msk [vmem:[%s293 + $0x28] sm:$0xff] %vm343, %v3930
      %3963 = vst.msk [vmem:[%s293 + $0x30] sm:$0xff] %vm343, %v3931
      %3964 = vst.msk [vmem:[%s293 + $0x38] sm:$0xff] %vm343, %v3932
      %3965 = vst.msk [vmem:[%s293 + $0x40] sm:$0xff] %vm343, %v3933
      %3966 = vst.msk [vmem:[%s293 + $0x48] sm:$0xff] %vm343, %v3934
      %3967 = vst.msk [vmem:[%s293 + $0x50] sm:$0xff] %vm343, %v3935
      %3968 = vst.msk [vmem:[%s293 + $0x58] sm:$0xff] %vm343, %v3936
      %3969 = vst.msk [vmem:[%s293 + $0x60] sm:$0xff] %vm343, %v3937
      %3970 = vst.msk [vmem:[%s293 + $0x68] sm:$0xff] %vm343, %v3938
      %3971 = vst.msk [vmem:[%s293 + $0x70] sm:$0xff] %vm343, %v3939
      %3972 = vst.msk [vmem:[%s293 + $0x78] sm:$0xff] %vm343, %v3940
      %3973 = vst.msk [vmem:[%s293 + $0x80] sm:$0xff] %vm343, %v3941
      %3974 = vst.msk [vmem:[%s293 + $0x88] sm:$0xff] %vm343, %v3942
      %3975 = vst.msk [vmem:[%s293 + $0x90] sm:$0xff] %vm343, %v3943
      %3976 = vst.msk [vmem:[%s293 + $0x98] sm:$0xff] %vm343, %v3944
      %3977 = vst.msk [vmem:[%s293 + $0xa0] sm:$0xff] %vm343, %v3945
      %3978 = vst.msk [vmem:[%s293 + $0xa8] sm:$0xff] %vm343, %v3946
      %3979 = vst.msk [vmem:[%s293 + $0xb0] sm:$0xff] %vm343, %v3947
      %3980 = vst.msk [vmem:[%s293 + $0xb8] sm:$0xff] %vm343, %v3948
      %3981 = vst.msk [vmem:[%s293 + $0xc0] sm:$0xff] %vm343, %v3949
      %3982 = vst.msk [vmem:[%s293 + $0xc8] sm:$0xff] %vm343, %v3950
      %3983 = vst.msk [vmem:[%s293 + $0xd0] sm:$0xff] %vm343, %v3951
      %3984 = vst.msk [vmem:[%s293 + $0xd8] sm:$0xff] %vm343, %v3952
      %3985 = vst.msk [vmem:[%s293 + $0xe0] sm:$0xff] %vm343, %v3953
      %3986 = vst.msk [vmem:[%s293 + $0xe8] sm:$0xff] %vm343, %v3954
      %3987 = vst.msk [vmem:[%s293 + $0xf0] sm:$0xff] %vm343, %v3955
      %3988 = vst.msk [vmem:[%s293 + $0xf8] sm:$0xff] %vm343, %v3956
      %s3989 = smul.u32 16, %s20
      %p3990 = scmp.lt.s32.totalorder %s19, 1
      %s3991 = scalar_select %p3990, %s19, 1
      %p3992 = scmp.lt.s32.totalorder %s3989, 15
      %s3993 = scalar_select %p3992, %s3989, 15
      %s3994 = smul.addr %s3993, 2
      %s3995 = smul.addr %s3991, 32
      %s3996 = sadd.s32 %s3994, %s3995
      %s3997 = smul.addr %s3996, 8
      %s3998 = scalar_lea.vmem %s4, %s3997
      // Predicated region
      $region37: #{shortcut_block.1} parent=35 // pred_check
        %p3999 = pneg %p149
      $region38: #{shortcut_block.1} parent=35 // pred_check_branch
        %4001 = sbr.rel (%p3999) target = $region40
      $region39: #{shortcut_block.1} parent=35 // pred_region
        %s4002 = smul.u32 16, %s20
      $region40: #{shortcut_block.1} parent=35 // pred_fallthru
        _
    $region36: #{shortcut_block.1} parent=5 // pred_fallthru
      _
    %p4003 = scmp.le.s32.totalorder 2, %s10
    // Predicated region
    $region41: #{shortcut_block.1} parent=5 // pred_check
      %p4004 = pneg %p4003
    $region42: #{shortcut_block.1} parent=5 // pred_check_branch
      %4006 = sbr.rel (%p4004) target = $region44
    $region43: #{shortcut_block.1} parent=5 // pred_region
      %s4007 = ssub.s32 %s10, 2
      // Predicated region
      $region45: #{shortcut_block.1} parent=43 // pred_check
        %p4008 = pneg %p155
      $region46: #{shortcut_block.1} parent=43 // pred_check_branch
        %4010 = sbr.rel (%p4008) target = $region48
      $region47: #{shortcut_block.1} parent=43 // pred_region
        %s4011 = smul.u32 16, %s22
        %p4012 = scmp.lt.s32.totalorder %s21, 1
        %s4013 = scalar_select %p4012, %s21, 1
        %p4014 = scmp.lt.s32.totalorder %s4011, 15
        %s4015 = scalar_select %p4014, %s4011, 15
        %s4016 = smul.addr %s4015, 2
        %s4017 = smul.addr %s4013, 32
        %s4018 = sadd.s32 %s4016, %s4017
        %s4019 = smul.addr %s4018, 8
        %s4020 = scalar_lea.vmem %s4, %s4019
      $region48: #{shortcut_block.1} parent=43 // pred_fallthru
        _
    $region44: #{shortcut_block.1} parent=5 // pred_fallthru
      _
  $region6: #{shortcut_block.1} parent=0 // loop_footer
    %s14 = sadd.s32 1, %s10
  $region7: #{shortcut_block.1} parent=0 // loop_footer_branch
    %9 = sbr.rel target = $region3
  $region8: #{shortcut_block.1} parent=0 // loop_exit
    _

</llo_original>
